<compile_context>
chip_gen: v5e
topology: v5e:2x2
jax: 0.10.0
libtpu: 0.0.40
codegen_flags: <defaults>
</compile_context>

<pallas_src>
import functools

import jax
import jax.numpy as jnp
from jax.experimental import pallas as pl
from jax.experimental.pallas import tpu as pltpu

# Explicit scoped-VMEM budget: above the 16/32 MiB defaults, comfortably under
# v7x's 64 MiB physical VMEM.
_VMEM_LIMIT = 48 * 1024 * 1024


def _swish(x):
    # x * sigmoid(x); exp and approx-reciprocal both land on the EUP slot.
    return x * pl.reciprocal(1.0 + jnp.exp(-x), approx=True)


def _sigmoid(x):
    return pl.reciprocal(1.0 + jnp.exp(-x), approx=True)


def _pick_tile(m, min_steps=2, candidates=(512, 256, 128, 64, 32, 16, 8)):
    """Largest row tile dividing m; prefer >= min_steps grid steps (megacore)."""
    for t in candidates:
        if m % t == 0 and m // t >= min_steps:
            return t
    for t in candidates:
        if m % t == 0:
            return t
    return m


# --------------------------------------------------------------------------
# Kernel A: 1x1-conv matmul (bf16 MXU, f32 acc) fused with folded-BN affine
# and optional swish.  A:(M,K)bf16 @ W:(K,N)bf16 * scale(1,N) + bias(1,N)
# --------------------------------------------------------------------------
def _mm_bn_act_kernel(a_ref, w_ref, s_ref, b_ref, o_ref, *, act):
    acc = jnp.dot(a_ref[...], w_ref[...], preferred_element_type=jnp.float32)
    y = acc * s_ref[...] + b_ref[...]
    if act:
        y = _swish(y)
    o_ref[...] = y.astype(o_ref.dtype)


def matmul_bn_act(a, w, scale, bias, *, act, out_dtype=jnp.bfloat16):
    a = a.astype(jnp.bfloat16)
    M, K = a.shape
    _, N = w.shape
    tile_m = _pick_tile(M)
    kern = functools.partial(_mm_bn_act_kernel, act=act)
    return pl.pallas_call(
        kern,
        out_shape=jax.ShapeDtypeStruct((M, N), out_dtype),
        grid_spec=pltpu.PrefetchScalarGridSpec(
            num_scalar_prefetch=0,
            grid=(M // tile_m,),
            in_specs=[
                pl.BlockSpec((tile_m, K), lambda i: (i, 0)),
                pl.BlockSpec((K, N), lambda i: (0, 0)),
                pl.BlockSpec((1, N), lambda i: (0, 0)),
                pl.BlockSpec((1, N), lambda i: (0, 0)),
            ],
            out_specs=pl.BlockSpec((tile_m, N), lambda i: (i, 0)),
        ),
        compiler_params=pltpu.CompilerParams(
            dimension_semantics=("parallel",),
            vmem_limit_bytes=_VMEM_LIMIT),
    )(a, w, scale, bias)


# --------------------------------------------------------------------------
# Kernel B: stem conv 3x3 stride-2 'same' + BN + swish.
# Input is given as 4 space-to-depth phase images of the zero-padded input, so
# every stride-2 tap becomes a unit-stride static slice assembled in VMEM
# (no 9x im2col duplication in HBM).  Cin=3 is tiny, so the conv is done as
# 27 broadcast-FMAs on the VPU rather than a K=3 MXU matmul.
# --------------------------------------------------------------------------
def _stem_kernel(x_ref, w_ref, s_ref, b_ref, o_ref, *, Ho, Wo, cin):
    C0 = w_ref.shape[-1]
    acc = jnp.zeros((Ho, Wo, C0), jnp.float32)
    for i in range(3):
        for j in range(3):
            p = (i % 2) * 2 + (j % 2)          # phase index (row parity, col parity)
            di, dj = i // 2, j // 2            # offset inside the phase image
            tap = x_ref[p, 0, di:di + Ho, dj:dj + Wo, :]   # (Ho, Wo, cin) f32
            for ci in range(cin):
                acc = acc + tap[:, :, ci:ci + 1] * w_ref[i, j, ci, :]
    y = acc * s_ref[0] + b_ref[0]
    o_ref[0] = _swish(y).astype(o_ref.dtype)


def stem_conv_bn_swish(phases, w, scale, bias):
    # phases: (4, B, Hph, Wph, cin) f32;  w: (3, 3, cin, C0) f32
    _, B, Hph, Wph, cin = phases.shape
    C0 = w.shape[-1]
    Ho, Wo = Hph - 1, Wph - 1
    kern = functools.partial(_stem_kernel, Ho=Ho, Wo=Wo, cin=cin)
    return pl.pallas_call(
        kern,
        out_shape=jax.ShapeDtypeStruct((B, Ho, Wo, C0), jnp.bfloat16),
        grid_spec=pltpu.PrefetchScalarGridSpec(
            num_scalar_prefetch=0,
            grid=(B,),
            in_specs=[
                pl.BlockSpec((4, 1, Hph, Wph, cin), lambda b: (0, b, 0, 0, 0)),
                pl.BlockSpec((3, 3, cin, C0), lambda b: (0, 0, 0, 0)),
                pl.BlockSpec((1, C0), lambda b: (0, 0)),
                pl.BlockSpec((1, C0), lambda b: (0, 0)),
            ],
            out_specs=pl.BlockSpec((1, Ho, Wo, C0), lambda b: (b, 0, 0, 0)),
        ),
        compiler_params=pltpu.CompilerParams(
            dimension_semantics=("parallel",),
            vmem_limit_bytes=_VMEM_LIMIT),
    )(phases, w, scale, bias)


# --------------------------------------------------------------------------
# Kernel C: depthwise 3x3 (stride 1, 'same') + BN + swish, with the SE global
# average pool fused in (second output = per-batch channel sums).
# --------------------------------------------------------------------------
def _dw_bn_swish_pool_kernel(x_ref, w_ref, s_ref, b_ref, o_ref, osum_ref,
                             *, k, H, W):
    xp = x_ref[0].astype(jnp.float32)          # (H+k-1, W+k-1, C)
    C = w_ref.shape[-1]
    acc = jnp.zeros((H, W, C), jnp.float32)
    for i in range(k):                          # tap-by-tap, single live acc
        for j in range(k):
            acc = acc + xp[i:i + H, j:j + W, :] * w_ref[i, j, :]
    y = _swish(acc * s_ref[0] + b_ref[0])
    o_ref[0] = y.astype(o_ref.dtype)
    osum_ref[...] = jnp.sum(y, axis=(0, 1)).reshape(1, 1, C)


def depthwise_bn_swish_pool(x, w, scale, bias):
    B, H, W, C = x.shape
    k = w.shape[0]
    pad = k // 2
    xp = jnp.pad(x, ((0, 0), (pad, pad), (pad, pad), (0, 0)))
    Hp, Wp = H + 2 * pad, W + 2 * pad
    kern = functools.partial(_dw_bn_swish_pool_kernel, k=k, H=H, W=W)
    y, pooled = pl.pallas_call(
        kern,
        out_shape=(jax.ShapeDtypeStruct((B, H, W, C), jnp.bfloat16),
                   jax.ShapeDtypeStruct((B, 1, C), jnp.float32)),
        grid_spec=pltpu.PrefetchScalarGridSpec(
            num_scalar_prefetch=0,
            grid=(B,),
            in_specs=[
                pl.BlockSpec((1, Hp, Wp, C), lambda b: (b, 0, 0, 0)),
                pl.BlockSpec((k, k, C), lambda b: (0, 0, 0)),
                pl.BlockSpec((1, C), lambda b: (0, 0)),
                pl.BlockSpec((1, C), lambda b: (0, 0)),
            ],
            out_specs=[
                pl.BlockSpec((1, H, W, C), lambda b: (b, 0, 0, 0)),
                pl.BlockSpec((1, 1, C), lambda b: (b, 0, 0)),
            ],
        ),
        compiler_params=pltpu.CompilerParams(
            dimension_semantics=("parallel",),
            vmem_limit_bytes=_VMEM_LIMIT),
    )(xp, w, scale, bias)
    return y, pooled


# --------------------------------------------------------------------------
# Kernel D: squeeze-excite gate (tiny).  mean -> FC reduce + swish ->
# FC expand -> sigmoid.  Operates only on (B, C) pooled stats.
# --------------------------------------------------------------------------
def _se_gate_kernel(p_ref, w1_ref, b1_ref, w2_ref, b2_ref, g_ref, *, inv_hw):
    m = p_ref[...] * inv_hw                                   # (B, C) mean
    h = _swish(jnp.dot(m.astype(jnp.bfloat16), w1_ref[...],
                       preferred_element_type=jnp.float32) + b1_ref[...])
    z = jnp.dot(h.astype(jnp.bfloat16), w2_ref[...],
                preferred_element_type=jnp.float32) + b2_ref[...]
    g_ref[...] = _sigmoid(z)


def se_gate(pooled_sums, w1, b1, w2, b2, *, hw):
    B, C = pooled_sums.shape
    kern = functools.partial(_se_gate_kernel, inv_hw=1.0 / float(hw))
    return pl.pallas_call(
        kern,
        out_shape=jax.ShapeDtypeStruct((B, C), jnp.float32),
        compiler_params=pltpu.CompilerParams(vmem_limit_bytes=_VMEM_LIMIT),
    )(pooled_sums, w1, b1, w2, b2)


# --------------------------------------------------------------------------
# Kernel E: project 1x1 + BN with the SE channel rescale fused into the
# matmul prologue:  y = ((x * g) @ W) * scale + bias   (no activation).
# --------------------------------------------------------------------------
def _gated_mm_bn_kernel(x_ref, g_ref, w_ref, s_ref, b_ref, o_ref):
    xg = x_ref[0].astype(jnp.float32) * g_ref[0]      # (tile_r, C) * (1, C)
    acc = jnp.dot(xg.astype(jnp.bfloat16), w_ref[...],
                  preferred_element_type=jnp.float32)
    y = acc * s_ref[...] + b_ref[...]
    o_ref[0] = y.astype(o_ref.dtype)


def gated_matmul_bn(x, g, w, scale, bias):
    # x: (B, R, C) bf16, g: (B, 1, C) f32, w: (C, N) bf16
    B, R, C = x.shape
    N = w.shape[-1]
    tile_r = _pick_tile(R, min_steps=1)     # B axis already feeds megacore
    return pl.pallas_call(
        _gated_mm_bn_kernel,
        out_shape=jax.ShapeDtypeStruct((B, R, N), jnp.bfloat16),
        grid_spec=pltpu.PrefetchScalarGridSpec(
            num_scalar_prefetch=0,
            grid=(B, R // tile_r),
            in_specs=[
                pl.BlockSpec((1, tile_r, C), lambda b, r: (b, r, 0)),
                pl.BlockSpec((1, 1, C), lambda b, r: (b, 0, 0)),
                pl.BlockSpec((C, N), lambda b, r: (0, 0)),
                pl.BlockSpec((1, N), lambda b, r: (0, 0)),
                pl.BlockSpec((1, N), lambda b, r: (0, 0)),
            ],
            out_specs=pl.BlockSpec((1, tile_r, N), lambda b, r: (b, r, 0)),
        ),
        compiler_params=pltpu.CompilerParams(
            dimension_semantics=("parallel", "parallel"),
            vmem_limit_bytes=_VMEM_LIMIT),
    )(x, g, w, scale, bias)


# --------------------------------------------------------------------------
# Parameter construction (deterministic, synthetic).  Eval-mode BN (eps=1e-3)
# is folded into an affine (scale, bias).  Channel widths chosen lane-dense
# (multiples of 128); matmul weights stored bf16, BN affines f32.
# --------------------------------------------------------------------------
def _folded_bn(key, c):
    k1, k2, k3, k4 = jax.random.split(key, 4)
    gamma = 1.0 + 0.1 * jax.random.normal(k1, (c,), jnp.float32)
    beta = 0.1 * jax.random.normal(k2, (c,), jnp.float32)
    mean = 0.1 * jax.random.normal(k3, (c,), jnp.float32)
    var = 0.5 + jnp.abs(jax.random.normal(k4, (c,), jnp.float32))
    scale = gamma * jax.lax.rsqrt(var + 1e-3)
    bias = beta - mean * scale
    return scale, bias


def init_params(key, cin=3, c_stem=128, expand=2, c_block=128, c_head=128):
    c_exp = c_stem * expand
    c_se = max(8, c_stem // 4)
    ks = jax.random.split(key, 16)

    def w(k, shape):
        return 0.1 * jax.random.normal(k, shape, jnp.float32)

    p = {}
    # stem conv 3x3 s2: torch (C0, Cin, 3, 3) -> (3, 3, Cin, C0), f32 (VPU conv)
    p['stem_w'] = jnp.transpose(w(ks[0], (c_stem, cin, 3, 3)), (2, 3, 1, 0))
    s, b = _folded_bn(ks[1], c_stem)
    p['stem_scale'], p['stem_bias'] = s[None, :], b[None, :]
    # expand 1x1: (Cexp, C0, 1, 1) -> (C0, Cexp) bf16
    p['exp_w'] = w(ks[2], (c_exp, c_stem, 1, 1))[:, :, 0, 0].T.astype(jnp.bfloat16)
    s, b = _folded_bn(ks[3], c_exp)
    p['exp_scale'], p['exp_bias'] = s[None, :], b[None, :]
    # depthwise 3x3: (Cexp, 1, 3, 3) -> (3, 3, Cexp) f32 (VPU conv)
    p['dw_w'] = jnp.transpose(w(ks[4], (c_exp, 1, 3, 3))[:, 0], (1, 2, 0))
    s, b = _folded_bn(ks[5], c_exp)
    p['dw_scale'], p['dw_bias'] = s[None, :], b[None, :]
    # squeeze-excite
    p['se_w1'] = w(ks[6], (c_se, c_exp, 1, 1))[:, :, 0, 0].T.astype(jnp.bfloat16)
    p['se_b1'] = w(ks[7], (1, c_se))
    p['se_w2'] = w(ks[8], (c_exp, c_se, 1, 1))[:, :, 0, 0].T.astype(jnp.bfloat16)
    p['se_b2'] = w(ks[9], (1, c_exp))
    # project 1x1 (no activation)
    p['proj_w'] = w(ks[10], (c_block, c_exp, 1, 1))[:, :, 0, 0].T.astype(jnp.bfloat16)
    s, b = _folded_bn(ks[11], c_block)
    p['proj_scale'], p['proj_bias'] = s[None, :], b[None, :]
    # conv head 1x1 + BN + swish
    p['head_w'] = w(ks[12], (c_head, c_block, 1, 1))[:, :, 0, 0].T.astype(jnp.bfloat16)
    s, b = _folded_bn(ks[13], c_head)
    p['head_scale'], p['head_bias'] = s[None, :], b[None, :]
    return p


# --------------------------------------------------------------------------
# SEN.forward
# --------------------------------------------------------------------------
def sen_forward(x_nchw, p):
    x = jnp.transpose(x_nchw, (0, 2, 3, 1)).astype(jnp.float32)  # -> NHWC
    B, H, W, _ = x.shape

    # stem: conv3x3 s2 p1 + BN + swish.  Space-to-depth phase split of the
    # zero-padded input (plain JAX, same total bytes as the input — no 9x
    # im2col duplication); taps assembled inside the kernel.
    xp = jnp.pad(x, ((0, 0), (1, 1), (1, 1), (0, 0)))
    phases = jnp.stack([xp[:, pr::2, pc::2, :]
                        for pr in (0, 1) for pc in (0, 1)], axis=0)
    x = stem_conv_bn_swish(phases, p['stem_w'], p['stem_scale'], p['stem_bias'])
    B, Ho, Wo, c = x.shape

    # MBConv: expand 1x1 + BN + swish
    x = matmul_bn_act(x.reshape(-1, c), p['exp_w'], p['exp_scale'],
                      p['exp_bias'], act=True).reshape(B, Ho, Wo, -1)
    # depthwise 3x3 + BN + swish, with SE pooling fused in
    x, pooled = depthwise_bn_swish_pool(x, p['dw_w'], p['dw_scale'], p['dw_bias'])
    # squeeze-excite gate (tiny)
    g = se_gate(pooled[:, 0, :], p['se_w1'], p['se_b1'],
                p['se_w2'], p['se_b2'], hw=Ho * Wo)
    # project 1x1 + BN with SE rescale fused (no activation, Cin != Cout -> no residual)
    cexp = x.shape[-1]
    x = gated_matmul_bn(x.reshape(B, Ho * Wo, cexp), g.reshape(B, 1, cexp),
                        p['proj_w'], p['proj_scale'], p['proj_bias'])

    # conv head 1x1 + BN + swish (final stage emits f32)
    cb = x.shape[-1]
    x = matmul_bn_act(x.reshape(-1, cb), p['head_w'], p['head_scale'],
                      p['head_bias'], act=True,
                      out_dtype=jnp.float32).reshape(B, Ho, Wo, -1)

    return jnp.transpose(x, (0, 3, 1, 2))  # back to NCHW


if __name__ == "__main__":
    key = jax.random.PRNGKey(0)
    k_in, k_par = jax.random.split(key)
    x = jax.random.normal(k_in, (2, 3, 16, 16), jnp.float32)   # NCHW input
    params = init_params(k_par)

    out = jax.jit(sen_forward)(x, params)
    out = jax.block_until_ready(out)
    assert out.shape == (2, 128, 8, 8), out.shape
    assert bool(jnp.isfinite(out).all())
    print("KERNEL_OK")
</pallas_src>

<mosaic_0001>
module attributes {stable_mosaic.version = 11 : i64} {
  func.func @_stem_kernel(%arg0: i32, %arg1: memref<4x1x9x9x3xf32, #tpu.memory_space<vmem>>, %arg2: memref<3x3x3x128xf32, #tpu.memory_space<vmem>>, %arg3: memref<1x128xf32, #tpu.memory_space<vmem>>, %arg4: memref<1x128xf32, #tpu.memory_space<vmem>>, %arg5: memref<1x8x8x128xbf16, #tpu.memory_space<vmem>>) attributes {dimension_semantics = [#tpu.dimension_semantics<parallel>], iteration_bounds = array<i64: 2>, scalar_prefetch = 0 : i64, scratch_operands = 0 : i64, tpu.core_type = #tpu.core_type<tc>, window_params = [{transform_indices = @transform_0, window_bounds = array<i64: 4, 1, 9, 9, 3>}, {pipeline_mode = #tpu.pipeline_mode<synchronous>, transform_indices = @transform_1, window_bounds = array<i64: 3, 3, 3, 128>}, {pipeline_mode = #tpu.pipeline_mode<synchronous>, transform_indices = @transform_2, window_bounds = array<i64: 1, 128>}, {pipeline_mode = #tpu.pipeline_mode<synchronous>, transform_indices = @transform_3, window_bounds = array<i64: 1, 128>}, {transform_indices = @transform_4, window_bounds = array<i64: 1, 8, 8, 128>}]} {
    %cst = arith.constant 0.000000e+00 : f32
    %0 = vector.broadcast %cst : f32 to vector<8x8x128xf32>
    %c0 = arith.constant 0 : index
    %c0_0 = arith.constant 0 : index
    %c0_1 = arith.constant 0 : index
    %c0_2 = arith.constant 0 : index
    %c0_3 = arith.constant 0 : index
    %1 = vector.load %arg1[%c0, %c0_0, %c0_1, %c0_2, %c0_3] : memref<4x1x9x9x3xf32, #tpu.memory_space<vmem>>, vector<1x1x8x8x3xf32>
    %2 = vector.shape_cast %1 : vector<1x1x8x8x3xf32> to vector<8x8x3xf32>
    %3 = vector.extract_strided_slice %2 {offsets = [0, 0, 0], sizes = [8, 8, 1], strides = [1, 1, 1]} : vector<8x8x3xf32> to vector<8x8x1xf32>
    %c0_4 = arith.constant 0 : index
    %c0_5 = arith.constant 0 : index
    %c0_6 = arith.constant 0 : index
    %c0_7 = arith.constant 0 : index
    %4 = vector.load %arg2[%c0_4, %c0_5, %c0_6, %c0_7] : memref<3x3x3x128xf32, #tpu.memory_space<vmem>>, vector<1x1x1x128xf32>
    %5 = vector.shape_cast %4 : vector<1x1x1x128xf32> to vector<128xf32>
    %6 = vector.shape_cast %5 : vector<128xf32> to vector<1x1x128xf32>
    %7 = vector.broadcast %3 : vector<8x8x1xf32> to vector<8x8x128xf32>
    %8 = vector.broadcast %6 : vector<1x1x128xf32> to vector<8x8x128xf32>
    %9 = arith.mulf %7, %8 : vector<8x8x128xf32>
    %10 = arith.addf %0, %9 : vector<8x8x128xf32>
    %11 = vector.extract_strided_slice %2 {offsets = [0, 0, 1], sizes = [8, 8, 1], strides = [1, 1, 1]} : vector<8x8x3xf32> to vector<8x8x1xf32>
    %c0_8 = arith.constant 0 : index
    %c0_9 = arith.constant 0 : index
    %c1 = arith.constant 1 : index
    %c0_10 = arith.constant 0 : index
    %12 = vector.load %arg2[%c0_8, %c0_9, %c1, %c0_10] : memref<3x3x3x128xf32, #tpu.memory_space<vmem>>, vector<1x1x1x128xf32>
    %13 = vector.shape_cast %12 : vector<1x1x1x128xf32> to vector<128xf32>
    %14 = vector.shape_cast %13 : vector<128xf32> to vector<1x1x128xf32>
    %15 = vector.broadcast %11 : vector<8x8x1xf32> to vector<8x8x128xf32>
    %16 = vector.broadcast %14 : vector<1x1x128xf32> to vector<8x8x128xf32>
    %17 = arith.mulf %15, %16 : vector<8x8x128xf32>
    %18 = arith.addf %10, %17 : vector<8x8x128xf32>
    %19 = vector.extract_strided_slice %2 {offsets = [0, 0, 2], sizes = [8, 8, 1], strides = [1, 1, 1]} : vector<8x8x3xf32> to vector<8x8x1xf32>
    %c0_11 = arith.constant 0 : index
    %c0_12 = arith.constant 0 : index
    %c2 = arith.constant 2 : index
    %c0_13 = arith.constant 0 : index
    %20 = vector.load %arg2[%c0_11, %c0_12, %c2, %c0_13] : memref<3x3x3x128xf32, #tpu.memory_space<vmem>>, vector<1x1x1x128xf32>
    %21 = vector.shape_cast %20 : vector<1x1x1x128xf32> to vector<128xf32>
    %22 = vector.shape_cast %21 : vector<128xf32> to vector<1x1x128xf32>
    %23 = vector.broadcast %19 : vector<8x8x1xf32> to vector<8x8x128xf32>
    %24 = vector.broadcast %22 : vector<1x1x128xf32> to vector<8x8x128xf32>
    %25 = arith.mulf %23, %24 : vector<8x8x128xf32>
    %26 = arith.addf %18, %25 : vector<8x8x128xf32>
    %c1_14 = arith.constant 1 : index
    %c0_15 = arith.constant 0 : index
    %c0_16 = arith.constant 0 : index
    %c0_17 = arith.constant 0 : index
    %c0_18 = arith.constant 0 : index
    %27 = vector.load %arg1[%c1_14, %c0_15, %c0_16, %c0_17, %c0_18] : memref<4x1x9x9x3xf32, #tpu.memory_space<vmem>>, vector<1x1x8x8x3xf32>
    %28 = vector.shape_cast %27 : vector<1x1x8x8x3xf32> to vector<8x8x3xf32>
    %29 = vector.extract_strided_slice %28 {offsets = [0, 0, 0], sizes = [8, 8, 1], strides = [1, 1, 1]} : vector<8x8x3xf32> to vector<8x8x1xf32>
    %c0_19 = arith.constant 0 : index
    %c1_20 = arith.constant 1 : index
    %c0_21 = arith.constant 0 : index
    %c0_22 = arith.constant 0 : index
    %30 = vector.load %arg2[%c0_19, %c1_20, %c0_21, %c0_22] : memref<3x3x3x128xf32, #tpu.memory_space<vmem>>, vector<1x1x1x128xf32>
    %31 = vector.shape_cast %30 : vector<1x1x1x128xf32> to vector<128xf32>
    %32 = vector.shape_cast %31 : vector<128xf32> to vector<1x1x128xf32>
    %33 = vector.broadcast %29 : vector<8x8x1xf32> to vector<8x8x128xf32>
    %34 = vector.broadcast %32 : vector<1x1x128xf32> to vector<8x8x128xf32>
    %35 = arith.mulf %33, %34 : vector<8x8x128xf32>
    %36 = arith.addf %26, %35 : vector<8x8x128xf32>
    %37 = vector.extract_strided_slice %28 {offsets = [0, 0, 1], sizes = [8, 8, 1], strides = [1, 1, 1]} : vector<8x8x3xf32> to vector<8x8x1xf32>
    %c0_23 = arith.constant 0 : index
    %c1_24 = arith.constant 1 : index
    %c1_25 = arith.constant 1 : index
    %c0_26 = arith.constant 0 : index
    %38 = vector.load %arg2[%c0_23, %c1_24, %c1_25, %c0_26] : memref<3x3x3x128xf32, #tpu.memory_space<vmem>>, vector<1x1x1x128xf32>
    %39 = vector.shape_cast %38 : vector<1x1x1x128xf32> to vector<128xf32>
    %40 = vector.shape_cast %39 : vector<128xf32> to vector<1x1x128xf32>
    %41 = vector.broadcast %37 : vector<8x8x1xf32> to vector<8x8x128xf32>
    %42 = vector.broadcast %40 : vector<1x1x128xf32> to vector<8x8x128xf32>
    %43 = arith.mulf %41, %42 : vector<8x8x128xf32>
    %44 = arith.addf %36, %43 : vector<8x8x128xf32>
    %45 = vector.extract_strided_slice %28 {offsets = [0, 0, 2], sizes = [8, 8, 1], strides = [1, 1, 1]} : vector<8x8x3xf32> to vector<8x8x1xf32>
    %c0_27 = arith.constant 0 : index
    %c1_28 = arith.constant 1 : index
    %c2_29 = arith.constant 2 : index
    %c0_30 = arith.constant 0 : index
    %46 = vector.load %arg2[%c0_27, %c1_28, %c2_29, %c0_30] : memref<3x3x3x128xf32, #tpu.memory_space<vmem>>, vector<1x1x1x128xf32>
    %47 = vector.shape_cast %46 : vector<1x1x1x128xf32> to vector<128xf32>
    %48 = vector.shape_cast %47 : vector<128xf32> to vector<1x1x128xf32>
    %49 = vector.broadcast %45 : vector<8x8x1xf32> to vector<8x8x128xf32>
    %50 = vector.broadcast %48 : vector<1x1x128xf32> to vector<8x8x128xf32>
    %51 = arith.mulf %49, %50 : vector<8x8x128xf32>
    %52 = arith.addf %44, %51 : vector<8x8x128xf32>
    %c0_31 = arith.constant 0 : index
    %c0_32 = arith.constant 0 : index
    %c0_33 = arith.constant 0 : index
    %c1_34 = arith.constant 1 : index
    %c0_35 = arith.constant 0 : index
    %53 = vector.load %arg1[%c0_31, %c0_32, %c0_33, %c1_34, %c0_35] : memref<4x1x9x9x3xf32, #tpu.memory_space<vmem>>, vector<1x1x8x8x3xf32>
    %54 = vector.shape_cast %53 : vector<1x1x8x8x3xf32> to vector<8x8x3xf32>
    %55 = vector.extract_strided_slice %54 {offsets = [0, 0, 0], sizes = [8, 8, 1], strides = [1, 1, 1]} : vector<8x8x3xf32> to vector<8x8x1xf32>
    %c0_36 = arith.constant 0 : index
    %c2_37 = arith.constant 2 : index
    %c0_38 = arith.constant 0 : index
    %c0_39 = arith.constant 0 : index
    %56 = vector.load %arg2[%c0_36, %c2_37, %c0_38, %c0_39] : memref<3x3x3x128xf32, #tpu.memory_space<vmem>>, vector<1x1x1x128xf32>
    %57 = vector.shape_cast %56 : vector<1x1x1x128xf32> to vector<128xf32>
    %58 = vector.shape_cast %57 : vector<128xf32> to vector<1x1x128xf32>
    %59 = vector.broadcast %55 : vector<8x8x1xf32> to vector<8x8x128xf32>
    %60 = vector.broadcast %58 : vector<1x1x128xf32> to vector<8x8x128xf32>
    %61 = arith.mulf %59, %60 : vector<8x8x128xf32>
    %62 = arith.addf %52, %61 : vector<8x8x128xf32>
    %63 = vector.extract_strided_slice %54 {offsets = [0, 0, 1], sizes = [8, 8, 1], strides = [1, 1, 1]} : vector<8x8x3xf32> to vector<8x8x1xf32>
    %c0_40 = arith.constant 0 : index
    %c2_41 = arith.constant 2 : index
    %c1_42 = arith.constant 1 : index
    %c0_43 = arith.constant 0 : index
    %64 = vector.load %arg2[%c0_40, %c2_41, %c1_42, %c0_43] : memref<3x3x3x128xf32, #tpu.memory_space<vmem>>, vector<1x1x1x128xf32>
    %65 = vector.shape_cast %64 : vector<1x1x1x128xf32> to vector<128xf32>
    %66 = vector.shape_cast %65 : vector<128xf32> to vector<1x1x128xf32>
    %67 = vector.broadcast %63 : vector<8x8x1xf32> to vector<8x8x128xf32>
    %68 = vector.broadcast %66 : vector<1x1x128xf32> to vector<8x8x128xf32>
    %69 = arith.mulf %67, %68 : vector<8x8x128xf32>
    %70 = arith.addf %62, %69 : vector<8x8x128xf32>
    %71 = vector.extract_strided_slice %54 {offsets = [0, 0, 2], sizes = [8, 8, 1], strides = [1, 1, 1]} : vector<8x8x3xf32> to vector<8x8x1xf32>
    %c0_44 = arith.constant 0 : index
    %c2_45 = arith.constant 2 : index
    %c2_46 = arith.constant 2 : index
    %c0_47 = arith.constant 0 : index
    %72 = vector.load %arg2[%c0_44, %c2_45, %c2_46, %c0_47] : memref<3x3x3x128xf32, #tpu.memory_space<vmem>>, vector<1x1x1x128xf32>
    %73 = vector.shape_cast %72 : vector<1x1x1x128xf32> to vector<128xf32>
    %74 = vector.shape_cast %73 : vector<128xf32> to vector<1x1x128xf32>
    %75 = vector.broadcast %71 : vector<8x8x1xf32> to vector<8x8x128xf32>
    %76 = vector.broadcast %74 : vector<1x1x128xf32> to vector<8x8x128xf32>
    %77 = arith.mulf %75, %76 : vector<8x8x128xf32>
    %78 = arith.addf %70, %77 : vector<8x8x128xf32>
    %c2_48 = arith.constant 2 : index
    %c0_49 = arith.constant 0 : index
    %c0_50 = arith.constant 0 : index
    %c0_51 = arith.constant 0 : index
    %c0_52 = arith.constant 0 : index
    %79 = vector.load %arg1[%c2_48, %c0_49, %c0_50, %c0_51, %c0_52] : memref<4x1x9x9x3xf32, #tpu.memory_space<vmem>>, vector<1x1x8x8x3xf32>
    %80 = vector.shape_cast %79 : vector<1x1x8x8x3xf32> to vector<8x8x3xf32>
    %81 = vector.extract_strided_slice %80 {offsets = [0, 0, 0], sizes = [8, 8, 1], strides = [1, 1, 1]} : vector<8x8x3xf32> to vector<8x8x1xf32>
    %c1_53 = arith.constant 1 : index
    %c0_54 = arith.constant 0 : index
    %c0_55 = arith.constant 0 : index
    %c0_56 = arith.constant 0 : index
    %82 = vector.load %arg2[%c1_53, %c0_54, %c0_55, %c0_56] : memref<3x3x3x128xf32, #tpu.memory_space<vmem>>, vector<1x1x1x128xf32>
    %83 = vector.shape_cast %82 : vector<1x1x1x128xf32> to vector<128xf32>
    %84 = vector.shape_cast %83 : vector<128xf32> to vector<1x1x128xf32>
    %85 = vector.broadcast %81 : vector<8x8x1xf32> to vector<8x8x128xf32>
    %86 = vector.broadcast %84 : vector<1x1x128xf32> to vector<8x8x128xf32>
    %87 = arith.mulf %85, %86 : vector<8x8x128xf32>
    %88 = arith.addf %78, %87 : vector<8x8x128xf32>
    %89 = vector.extract_strided_slice %80 {offsets = [0, 0, 1], sizes = [8, 8, 1], strides = [1, 1, 1]} : vector<8x8x3xf32> to vector<8x8x1xf32>
    %c1_57 = arith.constant 1 : index
    %c0_58 = arith.constant 0 : index
    %c1_59 = arith.constant 1 : index
    %c0_60 = arith.constant 0 : index
    %90 = vector.load %arg2[%c1_57, %c0_58, %c1_59, %c0_60] : memref<3x3x3x128xf32, #tpu.memory_space<vmem>>, vector<1x1x1x128xf32>
    %91 = vector.shape_cast %90 : vector<1x1x1x128xf32> to vector<128xf32>
    %92 = vector.shape_cast %91 : vector<128xf32> to vector<1x1x128xf32>
    %93 = vector.broadcast %89 : vector<8x8x1xf32> to vector<8x8x128xf32>
    %94 = vector.broadcast %92 : vector<1x1x128xf32> to vector<8x8x128xf32>
    %95 = arith.mulf %93, %94 : vector<8x8x128xf32>
    %96 = arith.addf %88, %95 : vector<8x8x128xf32>
    %97 = vector.extract_strided_slice %80 {offsets = [0, 0, 2], sizes = [8, 8, 1], strides = [1, 1, 1]} : vector<8x8x3xf32> to vector<8x8x1xf32>
    %c1_61 = arith.constant 1 : index
    %c0_62 = arith.constant 0 : index
    %c2_63 = arith.constant 2 : index
    %c0_64 = arith.constant 0 : index
    %98 = vector.load %arg2[%c1_61, %c0_62, %c2_63, %c0_64] : memref<3x3x3x128xf32, #tpu.memory_space<vmem>>, vector<1x1x1x128xf32>
    %99 = vector.shape_cast %98 : vector<1x1x1x128xf32> to vector<128xf32>
    %100 = vector.shape_cast %99 : vector<128xf32> to vector<1x1x128xf32>
    %101 = vector.broadcast %97 : vector<8x8x1xf32> to vector<8x8x128xf32>
    %102 = vector.broadcast %100 : vector<1x1x128xf32> to vector<8x8x128xf32>
    %103 = arith.mulf %101, %102 : vector<8x8x128xf32>
    %104 = arith.addf %96, %103 : vector<8x8x128xf32>
    %c3 = arith.constant 3 : index
    %c0_65 = arith.constant 0 : index
    %c0_66 = arith.constant 0 : index
    %c0_67 = arith.constant 0 : index
    %c0_68 = arith.constant 0 : index
    %105 = vector.load %arg1[%c3, %c0_65, %c0_66, %c0_67, %c0_68] : memref<4x1x9x9x3xf32, #tpu.memory_space<vmem>>, vector<1x1x8x8x3xf32>
    %106 = vector.shape_cast %105 : vector<1x1x8x8x3xf32> to vector<8x8x3xf32>
    %107 = vector.extract_strided_slice %106 {offsets = [0, 0, 0], sizes = [8, 8, 1], strides = [1, 1, 1]} : vector<8x8x3xf32> to vector<8x8x1xf32>
    %c1_69 = arith.constant 1 : index
    %c1_70 = arith.constant 1 : index
    %c0_71 = arith.constant 0 : index
    %c0_72 = arith.constant 0 : index
    %108 = vector.load %arg2[%c1_69, %c1_70, %c0_71, %c0_72] : memref<3x3x3x128xf32, #tpu.memory_space<vmem>>, vector<1x1x1x128xf32>
    %109 = vector.shape_cast %108 : vector<1x1x1x128xf32> to vector<128xf32>
    %110 = vector.shape_cast %109 : vector<128xf32> to vector<1x1x128xf32>
    %111 = vector.broadcast %107 : vector<8x8x1xf32> to vector<8x8x128xf32>
    %112 = vector.broadcast %110 : vector<1x1x128xf32> to vector<8x8x128xf32>
    %113 = arith.mulf %111, %112 : vector<8x8x128xf32>
    %114 = arith.addf %104, %113 : vector<8x8x128xf32>
    %115 = vector.extract_strided_slice %106 {offsets = [0, 0, 1], sizes = [8, 8, 1], strides = [1, 1, 1]} : vector<8x8x3xf32> to vector<8x8x1xf32>
    %c1_73 = arith.constant 1 : index
    %c1_74 = arith.constant 1 : index
    %c1_75 = arith.constant 1 : index
    %c0_76 = arith.constant 0 : index
    %116 = vector.load %arg2[%c1_73, %c1_74, %c1_75, %c0_76] : memref<3x3x3x128xf32, #tpu.memory_space<vmem>>, vector<1x1x1x128xf32>
    %117 = vector.shape_cast %116 : vector<1x1x1x128xf32> to vector<128xf32>
    %118 = vector.shape_cast %117 : vector<128xf32> to vector<1x1x128xf32>
    %119 = vector.broadcast %115 : vector<8x8x1xf32> to vector<8x8x128xf32>
    %120 = vector.broadcast %118 : vector<1x1x128xf32> to vector<8x8x128xf32>
    %121 = arith.mulf %119, %120 : vector<8x8x128xf32>
    %122 = arith.addf %114, %121 : vector<8x8x128xf32>
    %123 = vector.extract_strided_slice %106 {offsets = [0, 0, 2], sizes = [8, 8, 1], strides = [1, 1, 1]} : vector<8x8x3xf32> to vector<8x8x1xf32>
    %c1_77 = arith.constant 1 : index
    %c1_78 = arith.constant 1 : index
    %c2_79 = arith.constant 2 : index
    %c0_80 = arith.constant 0 : index
    %124 = vector.load %arg2[%c1_77, %c1_78, %c2_79, %c0_80] : memref<3x3x3x128xf32, #tpu.memory_space<vmem>>, vector<1x1x1x128xf32>
    %125 = vector.shape_cast %124 : vector<1x1x1x128xf32> to vector<128xf32>
    %126 = vector.shape_cast %125 : vector<128xf32> to vector<1x1x128xf32>
    %127 = vector.broadcast %123 : vector<8x8x1xf32> to vector<8x8x128xf32>
    %128 = vector.broadcast %126 : vector<1x1x128xf32> to vector<8x8x128xf32>
    %129 = arith.mulf %127, %128 : vector<8x8x128xf32>
    %130 = arith.addf %122, %129 : vector<8x8x128xf32>
    %c2_81 = arith.constant 2 : index
    %c0_82 = arith.constant 0 : index
    %c0_83 = arith.constant 0 : index
    %c1_84 = arith.constant 1 : index
    %c0_85 = arith.constant 0 : index
    %131 = vector.load %arg1[%c2_81, %c0_82, %c0_83, %c1_84, %c0_85] : memref<4x1x9x9x3xf32, #tpu.memory_space<vmem>>, vector<1x1x8x8x3xf32>
    %132 = vector.shape_cast %131 : vector<1x1x8x8x3xf32> to vector<8x8x3xf32>
    %133 = vector.extract_strided_slice %132 {offsets = [0, 0, 0], sizes = [8, 8, 1], strides = [1, 1, 1]} : vector<8x8x3xf32> to vector<8x8x1xf32>
    %c1_86 = arith.constant 1 : index
    %c2_87 = arith.constant 2 : index
    %c0_88 = arith.constant 0 : index
    %c0_89 = arith.constant 0 : index
    %134 = vector.load %arg2[%c1_86, %c2_87, %c0_88, %c0_89] : memref<3x3x3x128xf32, #tpu.memory_space<vmem>>, vector<1x1x1x128xf32>
    %135 = vector.shape_cast %134 : vector<1x1x1x128xf32> to vector<128xf32>
    %136 = vector.shape_cast %135 : vector<128xf32> to vector<1x1x128xf32>
    %137 = vector.broadcast %133 : vector<8x8x1xf32> to vector<8x8x128xf32>
    %138 = vector.broadcast %136 : vector<1x1x128xf32> to vector<8x8x128xf32>
    %139 = arith.mulf %137, %138 : vector<8x8x128xf32>
    %140 = arith.addf %130, %139 : vector<8x8x128xf32>
    %141 = vector.extract_strided_slice %132 {offsets = [0, 0, 1], sizes = [8, 8, 1], strides = [1, 1, 1]} : vector<8x8x3xf32> to vector<8x8x1xf32>
    %c1_90 = arith.constant 1 : index
    %c2_91 = arith.constant 2 : index
    %c1_92 = arith.constant 1 : index
    %c0_93 = arith.constant 0 : index
    %142 = vector.load %arg2[%c1_90, %c2_91, %c1_92, %c0_93] : memref<3x3x3x128xf32, #tpu.memory_space<vmem>>, vector<1x1x1x128xf32>
    %143 = vector.shape_cast %142 : vector<1x1x1x128xf32> to vector<128xf32>
    %144 = vector.shape_cast %143 : vector<128xf32> to vector<1x1x128xf32>
    %145 = vector.broadcast %141 : vector<8x8x1xf32> to vector<8x8x128xf32>
    %146 = vector.broadcast %144 : vector<1x1x128xf32> to vector<8x8x128xf32>
    %147 = arith.mulf %145, %146 : vector<8x8x128xf32>
    %148 = arith.addf %140, %147 : vector<8x8x128xf32>
    %149 = vector.extract_strided_slice %132 {offsets = [0, 0, 2], sizes = [8, 8, 1], strides = [1, 1, 1]} : vector<8x8x3xf32> to vector<8x8x1xf32>
    %c1_94 = arith.constant 1 : index
    %c2_95 = arith.constant 2 : index
    %c2_96 = arith.constant 2 : index
    %c0_97 = arith.constant 0 : index
    %150 = vector.load %arg2[%c1_94, %c2_95, %c2_96, %c0_97] : memref<3x3x3x128xf32, #tpu.memory_space<vmem>>, vector<1x1x1x128xf32>
    %151 = vector.shape_cast %150 : vector<1x1x1x128xf32> to vector<128xf32>
    %152 = vector.shape_cast %151 : vector<128xf32> to vector<1x1x128xf32>
    %153 = vector.broadcast %149 : vector<8x8x1xf32> to vector<8x8x128xf32>
    %154 = vector.broadcast %152 : vector<1x1x128xf32> to vector<8x8x128xf32>
    %155 = arith.mulf %153, %154 : vector<8x8x128xf32>
    %156 = arith.addf %148, %155 : vector<8x8x128xf32>
    %c0_98 = arith.constant 0 : index
    %c0_99 = arith.constant 0 : index
    %c1_100 = arith.constant 1 : index
    %c0_101 = arith.constant 0 : index
    %c0_102 = arith.constant 0 : index
    %157 = vector.load %arg1[%c0_98, %c0_99, %c1_100, %c0_101, %c0_102] : memref<4x1x9x9x3xf32, #tpu.memory_space<vmem>>, vector<1x1x8x8x3xf32>
    %158 = vector.shape_cast %157 : vector<1x1x8x8x3xf32> to vector<8x8x3xf32>
    %159 = vector.extract_strided_slice %158 {offsets = [0, 0, 0], sizes = [8, 8, 1], strides = [1, 1, 1]} : vector<8x8x3xf32> to vector<8x8x1xf32>
    %c2_103 = arith.constant 2 : index
    %c0_104 = arith.constant 0 : index
    %c0_105 = arith.constant 0 : index
    %c0_106 = arith.constant 0 : index
    %160 = vector.load %arg2[%c2_103, %c0_104, %c0_105, %c0_106] : memref<3x3x3x128xf32, #tpu.memory_space<vmem>>, vector<1x1x1x128xf32>
    %161 = vector.shape_cast %160 : vector<1x1x1x128xf32> to vector<128xf32>
    %162 = vector.shape_cast %161 : vector<128xf32> to vector<1x1x128xf32>
    %163 = vector.broadcast %159 : vector<8x8x1xf32> to vector<8x8x128xf32>
    %164 = vector.broadcast %162 : vector<1x1x128xf32> to vector<8x8x128xf32>
    %165 = arith.mulf %163, %164 : vector<8x8x128xf32>
    %166 = arith.addf %156, %165 : vector<8x8x128xf32>
    %167 = vector.extract_strided_slice %158 {offsets = [0, 0, 1], sizes = [8, 8, 1], strides = [1, 1, 1]} : vector<8x8x3xf32> to vector<8x8x1xf32>
    %c2_107 = arith.constant 2 : index
    %c0_108 = arith.constant 0 : index
    %c1_109 = arith.constant 1 : index
    %c0_110 = arith.constant 0 : index
    %168 = vector.load %arg2[%c2_107, %c0_108, %c1_109, %c0_110] : memref<3x3x3x128xf32, #tpu.memory_space<vmem>>, vector<1x1x1x128xf32>
    %169 = vector.shape_cast %168 : vector<1x1x1x128xf32> to vector<128xf32>
    %170 = vector.shape_cast %169 : vector<128xf32> to vector<1x1x128xf32>
    %171 = vector.broadcast %167 : vector<8x8x1xf32> to vector<8x8x128xf32>
    %172 = vector.broadcast %170 : vector<1x1x128xf32> to vector<8x8x128xf32>
    %173 = arith.mulf %171, %172 : vector<8x8x128xf32>
    %174 = arith.addf %166, %173 : vector<8x8x128xf32>
    %175 = vector.extract_strided_slice %158 {offsets = [0, 0, 2], sizes = [8, 8, 1], strides = [1, 1, 1]} : vector<8x8x3xf32> to vector<8x8x1xf32>
    %c2_111 = arith.constant 2 : index
    %c0_112 = arith.constant 0 : index
    %c2_113 = arith.constant 2 : index
    %c0_114 = arith.constant 0 : index
    %176 = vector.load %arg2[%c2_111, %c0_112, %c2_113, %c0_114] : memref<3x3x3x128xf32, #tpu.memory_space<vmem>>, vector<1x1x1x128xf32>
    %177 = vector.shape_cast %176 : vector<1x1x1x128xf32> to vector<128xf32>
    %178 = vector.shape_cast %177 : vector<128xf32> to vector<1x1x128xf32>
    %179 = vector.broadcast %175 : vector<8x8x1xf32> to vector<8x8x128xf32>
    %180 = vector.broadcast %178 : vector<1x1x128xf32> to vector<8x8x128xf32>
    %181 = arith.mulf %179, %180 : vector<8x8x128xf32>
    %182 = arith.addf %174, %181 : vector<8x8x128xf32>
    %c1_115 = arith.constant 1 : index
    %c0_116 = arith.constant 0 : index
    %c1_117 = arith.constant 1 : index
    %c0_118 = arith.constant 0 : index
    %c0_119 = arith.constant 0 : index
    %183 = vector.load %arg1[%c1_115, %c0_116, %c1_117, %c0_118, %c0_119] : memref<4x1x9x9x3xf32, #tpu.memory_space<vmem>>, vector<1x1x8x8x3xf32>
    %184 = vector.shape_cast %183 : vector<1x1x8x8x3xf32> to vector<8x8x3xf32>
    %185 = vector.extract_strided_slice %184 {offsets = [0, 0, 0], sizes = [8, 8, 1], strides = [1, 1, 1]} : vector<8x8x3xf32> to vector<8x8x1xf32>
    %c2_120 = arith.constant 2 : index
    %c1_121 = arith.constant 1 : index
    %c0_122 = arith.constant 0 : index
    %c0_123 = arith.constant 0 : index
    %186 = vector.load %arg2[%c2_120, %c1_121, %c0_122, %c0_123] : memref<3x3x3x128xf32, #tpu.memory_space<vmem>>, vector<1x1x1x128xf32>
    %187 = vector.shape_cast %186 : vector<1x1x1x128xf32> to vector<128xf32>
    %188 = vector.shape_cast %187 : vector<128xf32> to vector<1x1x128xf32>
    %189 = vector.broadcast %185 : vector<8x8x1xf32> to vector<8x8x128xf32>
    %190 = vector.broadcast %188 : vector<1x1x128xf32> to vector<8x8x128xf32>
    %191 = arith.mulf %189, %190 : vector<8x8x128xf32>
    %192 = arith.addf %182, %191 : vector<8x8x128xf32>
    %193 = vector.extract_strided_slice %184 {offsets = [0, 0, 1], sizes = [8, 8, 1], strides = [1, 1, 1]} : vector<8x8x3xf32> to vector<8x8x1xf32>
    %c2_124 = arith.constant 2 : index
    %c1_125 = arith.constant 1 : index
    %c1_126 = arith.constant 1 : index
    %c0_127 = arith.constant 0 : index
    %194 = vector.load %arg2[%c2_124, %c1_125, %c1_126, %c0_127] : memref<3x3x3x128xf32, #tpu.memory_space<vmem>>, vector<1x1x1x128xf32>
    %195 = vector.shape_cast %194 : vector<1x1x1x128xf32> to vector<128xf32>
    %196 = vector.shape_cast %195 : vector<128xf32> to vector<1x1x128xf32>
    %197 = vector.broadcast %193 : vector<8x8x1xf32> to vector<8x8x128xf32>
    %198 = vector.broadcast %196 : vector<1x1x128xf32> to vector<8x8x128xf32>
    %199 = arith.mulf %197, %198 : vector<8x8x128xf32>
    %200 = arith.addf %192, %199 : vector<8x8x128xf32>
    %201 = vector.extract_strided_slice %184 {offsets = [0, 0, 2], sizes = [8, 8, 1], strides = [1, 1, 1]} : vector<8x8x3xf32> to vector<8x8x1xf32>
    %c2_128 = arith.constant 2 : index
    %c1_129 = arith.constant 1 : index
    %c2_130 = arith.constant 2 : index
    %c0_131 = arith.constant 0 : index
    %202 = vector.load %arg2[%c2_128, %c1_129, %c2_130, %c0_131] : memref<3x3x3x128xf32, #tpu.memory_space<vmem>>, vector<1x1x1x128xf32>
    %203 = vector.shape_cast %202 : vector<1x1x1x128xf32> to vector<128xf32>
    %204 = vector.shape_cast %203 : vector<128xf32> to vector<1x1x128xf32>
    %205 = vector.broadcast %201 : vector<8x8x1xf32> to vector<8x8x128xf32>
    %206 = vector.broadcast %204 : vector<1x1x128xf32> to vector<8x8x128xf32>
    %207 = arith.mulf %205, %206 : vector<8x8x128xf32>
    %208 = arith.addf %200, %207 : vector<8x8x128xf32>
    %c0_132 = arith.constant 0 : index
    %c0_133 = arith.constant 0 : index
    %c1_134 = arith.constant 1 : index
    %c1_135 = arith.constant 1 : index
    %c0_136 = arith.constant 0 : index
    %209 = vector.load %arg1[%c0_132, %c0_133, %c1_134, %c1_135, %c0_136] : memref<4x1x9x9x3xf32, #tpu.memory_space<vmem>>, vector<1x1x8x8x3xf32>
    %210 = vector.shape_cast %209 : vector<1x1x8x8x3xf32> to vector<8x8x3xf32>
    %211 = vector.extract_strided_slice %210 {offsets = [0, 0, 0], sizes = [8, 8, 1], strides = [1, 1, 1]} : vector<8x8x3xf32> to vector<8x8x1xf32>
    %c2_137 = arith.constant 2 : index
    %c2_138 = arith.constant 2 : index
    %c0_139 = arith.constant 0 : index
    %c0_140 = arith.constant 0 : index
    %212 = vector.load %arg2[%c2_137, %c2_138, %c0_139, %c0_140] : memref<3x3x3x128xf32, #tpu.memory_space<vmem>>, vector<1x1x1x128xf32>
    %213 = vector.shape_cast %212 : vector<1x1x1x128xf32> to vector<128xf32>
    %214 = vector.shape_cast %213 : vector<128xf32> to vector<1x1x128xf32>
    %215 = vector.broadcast %211 : vector<8x8x1xf32> to vector<8x8x128xf32>
    %216 = vector.broadcast %214 : vector<1x1x128xf32> to vector<8x8x128xf32>
    %217 = arith.mulf %215, %216 : vector<8x8x128xf32>
    %218 = arith.addf %208, %217 : vector<8x8x128xf32>
    %219 = vector.extract_strided_slice %210 {offsets = [0, 0, 1], sizes = [8, 8, 1], strides = [1, 1, 1]} : vector<8x8x3xf32> to vector<8x8x1xf32>
    %c2_141 = arith.constant 2 : index
    %c2_142 = arith.constant 2 : index
    %c1_143 = arith.constant 1 : index
    %c0_144 = arith.constant 0 : index
    %220 = vector.load %arg2[%c2_141, %c2_142, %c1_143, %c0_144] : memref<3x3x3x128xf32, #tpu.memory_space<vmem>>, vector<1x1x1x128xf32>
    %221 = vector.shape_cast %220 : vector<1x1x1x128xf32> to vector<128xf32>
    %222 = vector.shape_cast %221 : vector<128xf32> to vector<1x1x128xf32>
    %223 = vector.broadcast %219 : vector<8x8x1xf32> to vector<8x8x128xf32>
    %224 = vector.broadcast %222 : vector<1x1x128xf32> to vector<8x8x128xf32>
    %225 = arith.mulf %223, %224 : vector<8x8x128xf32>
    %226 = arith.addf %218, %225 : vector<8x8x128xf32>
    %227 = vector.extract_strided_slice %210 {offsets = [0, 0, 2], sizes = [8, 8, 1], strides = [1, 1, 1]} : vector<8x8x3xf32> to vector<8x8x1xf32>
    %c2_145 = arith.constant 2 : index
    %c2_146 = arith.constant 2 : index
    %c2_147 = arith.constant 2 : index
    %c0_148 = arith.constant 0 : index
    %228 = vector.load %arg2[%c2_145, %c2_146, %c2_147, %c0_148] : memref<3x3x3x128xf32, #tpu.memory_space<vmem>>, vector<1x1x1x128xf32>
    %229 = vector.shape_cast %228 : vector<1x1x1x128xf32> to vector<128xf32>
    %230 = vector.shape_cast %229 : vector<128xf32> to vector<1x1x128xf32>
    %231 = vector.broadcast %227 : vector<8x8x1xf32> to vector<8x8x128xf32>
    %232 = vector.broadcast %230 : vector<1x1x128xf32> to vector<8x8x128xf32>
    %233 = arith.mulf %231, %232 : vector<8x8x128xf32>
    %234 = arith.addf %226, %233 : vector<8x8x128xf32>
    %c0_149 = arith.constant 0 : index
    %c0_150 = arith.constant 0 : index
    %235 = vector.load %arg3[%c0_149, %c0_150] : memref<1x128xf32, #tpu.memory_space<vmem>>, vector<1x128xf32>
    %236 = vector.shape_cast %235 : vector<1x128xf32> to vector<128xf32>
    %237 = vector.shape_cast %236 : vector<128xf32> to vector<1x1x128xf32>
    %238 = vector.broadcast %237 : vector<1x1x128xf32> to vector<8x8x128xf32>
    %239 = arith.mulf %234, %238 : vector<8x8x128xf32>
    %c0_151 = arith.constant 0 : index
    %c0_152 = arith.constant 0 : index
    %240 = vector.load %arg4[%c0_151, %c0_152] : memref<1x128xf32, #tpu.memory_space<vmem>>, vector<1x128xf32>
    %241 = vector.shape_cast %240 : vector<1x128xf32> to vector<128xf32>
    %242 = vector.shape_cast %241 : vector<128xf32> to vector<1x1x128xf32>
    %243 = vector.broadcast %242 : vector<1x1x128xf32> to vector<8x8x128xf32>
    %244 = arith.addf %239, %243 : vector<8x8x128xf32>
    %cst_153 = arith.constant 0.000000e+00 : f32
    %245 = vector.broadcast %cst_153 : f32 to vector<8x8x128xf32>
    %246 = arith.subf %245, %244 : vector<8x8x128xf32>
    %247 = math.exp %246 : vector<8x8x128xf32>
    %cst_154 = arith.constant 1.000000e+00 : f32
    %248 = vector.broadcast %cst_154 : f32 to vector<8x8x128xf32>
    %249 = arith.addf %248, %247 : vector<8x8x128xf32>
    %250 = tpu.reciprocal %249 {approx = true} : vector<8x8x128xf32> -> vector<8x8x128xf32>
    %251 = arith.mulf %244, %250 : vector<8x8x128xf32>
    %252 = arith.truncf %251 : vector<8x8x128xf32> to vector<8x8x128xbf16>
    %c0_155 = arith.constant 0 : index
    %c0_156 = arith.constant 0 : index
    %c0_157 = arith.constant 0 : index
    %c0_158 = arith.constant 0 : index
    %253 = vector.load %arg5[%c0_155, %c0_156, %c0_157, %c0_158] : memref<1x8x8x128xbf16, #tpu.memory_space<vmem>>, vector<1x8x8x128xbf16>
    %254 = vector.shape_cast %253 : vector<1x8x8x128xbf16> to vector<8x8x128xbf16>
    %255 = vector.shape_cast %252 : vector<8x8x128xbf16> to vector<1x8x8x128xbf16>
    tpu.vector_store %arg5[%c0_155, %c0_156, %c0_157, %c0_158], %255 {strides = array<i32>} : memref<1x8x8x128xbf16, #tpu.memory_space<vmem>>, vector<1x8x8x128xbf16>,
    return
  }
  func.func @transform_0(%arg0: i32) -> (i32, i32, i32, i32, i32) {
    %c0_i32 = arith.constant 0 : i32
    %c0_i32_0 = arith.constant 0 : i32
    %c0_i32_1 = arith.constant 0 : i32
    %c0_i32_2 = arith.constant 0 : i32
    %c0_i32_3 = arith.constant 0 : i32
    return %c0_i32, %arg0, %c0_i32_0, %c0_i32_1, %c0_i32_2 : i32, i32, i32, i32, i32
  }
  func.func @transform_1(%arg0: i32) -> (i32, i32, i32, i32) {
    %c0_i32 = arith.constant 0 : i32
    %c0_i32_0 = arith.constant 0 : i32
    %c0_i32_1 = arith.constant 0 : i32
    %c0_i32_2 = arith.constant 0 : i32
    %c0_i32_3 = arith.constant 0 : i32
    return %c0_i32, %c0_i32_0, %c0_i32_1, %c0_i32_2 : i32, i32, i32, i32
  }
  func.func @transform_2(%arg0: i32) -> (i32, i32) {
    %c0_i32 = arith.constant 0 : i32
    %c0_i32_0 = arith.constant 0 : i32
    %c0_i32_1 = arith.constant 0 : i32
    return %c0_i32, %c0_i32_0 : i32, i32
  }
  func.func @transform_3(%arg0: i32) -> (i32, i32) {
    %c0_i32 = arith.constant 0 : i32
    %c0_i32_0 = arith.constant 0 : i32
    %c0_i32_1 = arith.constant 0 : i32
    return %c0_i32, %c0_i32_0 : i32, i32
  }
  func.func @transform_4(%arg0: i32) -> (i32, i32, i32, i32) {
    %c0_i32 = arith.constant 0 : i32
    %c0_i32_0 = arith.constant 0 : i32
    %c0_i32_1 = arith.constant 0 : i32
    %c0_i32_2 = arith.constant 0 : i32
    return %arg0, %c0_i32, %c0_i32_0, %c0_i32_1 : i32, i32, i32, i32
  }
}

module attributes {stable_mosaic.version = 11 : i64} {
  func.func @_mm_bn_act_kernel(%arg0: i32, %arg1: memref<64x128xbf16, #tpu.memory_space<vmem>>, %arg2: memref<128x256xbf16, #tpu.memory_space<vmem>>, %arg3: memref<1x256xf32, #tpu.memory_space<vmem>>, %arg4: memref<1x256xf32, #tpu.memory_space<vmem>>, %arg5: memref<64x256xbf16, #tpu.memory_space<vmem>>) attributes {dimension_semantics = [#tpu.dimension_semantics<parallel>], iteration_bounds = array<i64: 2>, scalar_prefetch = 0 : i64, scratch_operands = 0 : i64, tpu.core_type = #tpu.core_type<tc>, window_params = [{transform_indices = @transform_0, window_bounds = array<i64: 64, 128>}, {pipeline_mode = #tpu.pipeline_mode<synchronous>, transform_indices = @transform_1, window_bounds = array<i64: 128, 256>}, {pipeline_mode = #tpu.pipeline_mode<synchronous>, transform_indices = @transform_2, window_bounds = array<i64: 1, 256>}, {pipeline_mode = #tpu.pipeline_mode<synchronous>, transform_indices = @transform_3, window_bounds = array<i64: 1, 256>}, {transform_indices = @transform_4, window_bounds = array<i64: 64, 256>}]} {
    %c0 = arith.constant 0 : index
    %c0_0 = arith.constant 0 : index
    %0 = vector.load %arg1[%c0, %c0_0] : memref<64x128xbf16, #tpu.memory_space<vmem>>, vector<64x128xbf16>
    %c0_1 = arith.constant 0 : index
    %c0_2 = arith.constant 0 : index
    %1 = vector.load %arg2[%c0_1, %c0_2] : memref<128x256xbf16, #tpu.memory_space<vmem>>, vector<128x256xbf16>
    %cst = arith.constant dense<0.000000e+00> : vector<64x256xf32>
    %2 = tpu.matmul %0, %1, %cst {dimension_numbers = #tpu.dot_dimension_numbers<[1], [0], [0], [1], [0, 0, 1, 1], [], []>} : vector<64x128xbf16>, vector<128x256xbf16>, vector<64x256xf32> -> vector<64x256xf32>
    %c0_3 = arith.constant 0 : index
    %c0_4 = arith.constant 0 : index
    %3 = vector.load %arg3[%c0_3, %c0_4] : memref<1x256xf32, #tpu.memory_space<vmem>>, vector<1x256xf32>
    %4 = vector.broadcast %3 : vector<1x256xf32> to vector<64x256xf32>
    %5 = arith.mulf %2, %4 : vector<64x256xf32>
    %c0_5 = arith.constant 0 : index
    %c0_6 = arith.constant 0 : index
    %6 = vector.load %arg4[%c0_5, %c0_6] : memref<1x256xf32, #tpu.memory_space<vmem>>, vector<1x256xf32>
    %7 = vector.broadcast %6 : vector<1x256xf32> to vector<64x256xf32>
    %8 = arith.addf %5, %7 : vector<64x256xf32>
    %cst_7 = arith.constant 0.000000e+00 : f32
    %9 = vector.broadcast %cst_7 : f32 to vector<64x256xf32>
    %10 = arith.subf %9, %8 : vector<64x256xf32>
    %11 = math.exp %10 : vector<64x256xf32>
    %cst_8 = arith.constant 1.000000e+00 : f32
    %12 = vector.broadcast %cst_8 : f32 to vector<64x256xf32>
    %13 = arith.addf %12, %11 : vector<64x256xf32>
    %14 = tpu.reciprocal %13 {approx = true} : vector<64x256xf32> -> vector<64x256xf32>
    %15 = arith.mulf %8, %14 : vector<64x256xf32>
    %16 = arith.truncf %15 : vector<64x256xf32> to vector<64x256xbf16>
    %c0_9 = arith.constant 0 : index
    %c0_10 = arith.constant 0 : index
    %17 = vector.load %arg5[%c0_9, %c0_10] : memref<64x256xbf16, #tpu.memory_space<vmem>>, vector<64x256xbf16>
    tpu.vector_store %arg5[%c0_9, %c0_10], %16 {strides = array<i32>} : memref<64x256xbf16, #tpu.memory_space<vmem>>, vector<64x256xbf16>,
    return
  }
  func.func @transform_0(%arg0: i32) -> (i32, i32) {
    %c0_i32 = arith.constant 0 : i32
    %c0_i32_0 = arith.constant 0 : i32
    return %arg0, %c0_i32 : i32, i32
  }
  func.func @transform_1(%arg0: i32) -> (i32, i32) {
    %c0_i32 = arith.constant 0 : i32
    %c0_i32_0 = arith.constant 0 : i32
    %c0_i32_1 = arith.constant 0 : i32
    return %c0_i32, %c0_i32_0 : i32, i32
  }
  func.func @transform_2(%arg0: i32) -> (i32, i32) {
    %c0_i32 = arith.constant 0 : i32
    %c0_i32_0 = arith.constant 0 : i32
    %c0_i32_1 = arith.constant 0 : i32
    return %c0_i32, %c0_i32_0 : i32, i32
  }
  func.func @transform_3(%arg0: i32) -> (i32, i32) {
    %c0_i32 = arith.constant 0 : i32
    %c0_i32_0 = arith.constant 0 : i32
    %c0_i32_1 = arith.constant 0 : i32
    return %c0_i32, %c0_i32_0 : i32, i32
  }
  func.func @transform_4(%arg0: i32) -> (i32, i32) {
    %c0_i32 = arith.constant 0 : i32
    %c0_i32_0 = arith.constant 0 : i32
    return %arg0, %c0_i32 : i32, i32
  }
}

module attributes {stable_mosaic.version = 11 : i64} {
  func.func @_dw_bn_swish_pool_kernel(%arg0: i32, %arg1: memref<1x10x10x256xbf16, #tpu.memory_space<vmem>>, %arg2: memref<3x3x256xf32, #tpu.memory_space<vmem>>, %arg3: memref<1x256xf32, #tpu.memory_space<vmem>>, %arg4: memref<1x256xf32, #tpu.memory_space<vmem>>, %arg5: memref<1x8x8x256xbf16, #tpu.memory_space<vmem>>, %arg6: memref<1x1x256xf32, #tpu.memory_space<vmem>>) attributes {dimension_semantics = [#tpu.dimension_semantics<parallel>], iteration_bounds = array<i64: 2>, scalar_prefetch = 0 : i64, scratch_operands = 0 : i64, tpu.core_type = #tpu.core_type<tc>, window_params = [{transform_indices = @transform_0, window_bounds = array<i64: 1, 10, 10, 256>}, {pipeline_mode = #tpu.pipeline_mode<synchronous>, transform_indices = @transform_1, window_bounds = array<i64: 3, 3, 256>}, {pipeline_mode = #tpu.pipeline_mode<synchronous>, transform_indices = @transform_2, window_bounds = array<i64: 1, 256>}, {pipeline_mode = #tpu.pipeline_mode<synchronous>, transform_indices = @transform_3, window_bounds = array<i64: 1, 256>}, {transform_indices = @transform_4, window_bounds = array<i64: 1, 8, 8, 256>}, {transform_indices = @transform_5, window_bounds = array<i64: 1, 1, 256>}]} {
    %c0 = arith.constant 0 : index
    %c0_0 = arith.constant 0 : index
    %c0_1 = arith.constant 0 : index
    %c0_2 = arith.constant 0 : index
    %0 = vector.load %arg1[%c0, %c0_0, %c0_1, %c0_2] : memref<1x10x10x256xbf16, #tpu.memory_space<vmem>>, vector<1x10x10x256xbf16>
    %1 = vector.shape_cast %0 : vector<1x10x10x256xbf16> to vector<10x10x256xbf16>
    %2 = arith.extf %1 : vector<10x10x256xbf16> to vector<10x10x256xf32>
    %cst = arith.constant 0.000000e+00 : f32
    %3 = vector.broadcast %cst : f32 to vector<8x8x256xf32>
    %4 = vector.extract_strided_slice %2 {offsets = [0, 0, 0], sizes = [8, 8, 256], strides = [1, 1, 1]} : vector<10x10x256xf32> to vector<8x8x256xf32>
    %c0_3 = arith.constant 0 : index
    %c0_4 = arith.constant 0 : index
    %c0_5 = arith.constant 0 : index
    %5 = vector.load %arg2[%c0_3, %c0_4, %c0_5] : memref<3x3x256xf32, #tpu.memory_space<vmem>>, vector<1x1x256xf32>
    %6 = vector.shape_cast %5 : vector<1x1x256xf32> to vector<256xf32>
    %7 = vector.shape_cast %6 : vector<256xf32> to vector<1x1x256xf32>
    %8 = vector.broadcast %7 : vector<1x1x256xf32> to vector<8x8x256xf32>
    %9 = arith.mulf %4, %8 : vector<8x8x256xf32>
    %10 = arith.addf %3, %9 : vector<8x8x256xf32>
    %11 = vector.extract_strided_slice %2 {offsets = [0, 1, 0], sizes = [8, 8, 256], strides = [1, 1, 1]} : vector<10x10x256xf32> to vector<8x8x256xf32>
    %c0_6 = arith.constant 0 : index
    %c1 = arith.constant 1 : index
    %c0_7 = arith.constant 0 : index
    %12 = vector.load %arg2[%c0_6, %c1, %c0_7] : memref<3x3x256xf32, #tpu.memory_space<vmem>>, vector<1x1x256xf32>
    %13 = vector.shape_cast %12 : vector<1x1x256xf32> to vector<256xf32>
    %14 = vector.shape_cast %13 : vector<256xf32> to vector<1x1x256xf32>
    %15 = vector.broadcast %14 : vector<1x1x256xf32> to vector<8x8x256xf32>
    %16 = arith.mulf %11, %15 : vector<8x8x256xf32>
    %17 = arith.addf %10, %16 : vector<8x8x256xf32>
    %18 = vector.extract_strided_slice %2 {offsets = [0, 2, 0], sizes = [8, 8, 256], strides = [1, 1, 1]} : vector<10x10x256xf32> to vector<8x8x256xf32>
    %c0_8 = arith.constant 0 : index
    %c2 = arith.constant 2 : index
    %c0_9 = arith.constant 0 : index
    %19 = vector.load %arg2[%c0_8, %c2, %c0_9] : memref<3x3x256xf32, #tpu.memory_space<vmem>>, vector<1x1x256xf32>
    %20 = vector.shape_cast %19 : vector<1x1x256xf32> to vector<256xf32>
    %21 = vector.shape_cast %20 : vector<256xf32> to vector<1x1x256xf32>
    %22 = vector.broadcast %21 : vector<1x1x256xf32> to vector<8x8x256xf32>
    %23 = arith.mulf %18, %22 : vector<8x8x256xf32>
    %24 = arith.addf %17, %23 : vector<8x8x256xf32>
    %25 = vector.extract_strided_slice %2 {offsets = [1, 0, 0], sizes = [8, 8, 256], strides = [1, 1, 1]} : vector<10x10x256xf32> to vector<8x8x256xf32>
    %c1_10 = arith.constant 1 : index
    %c0_11 = arith.constant 0 : index
    %c0_12 = arith.constant 0 : index
    %26 = vector.load %arg2[%c1_10, %c0_11, %c0_12] : memref<3x3x256xf32, #tpu.memory_space<vmem>>, vector<1x1x256xf32>
    %27 = vector.shape_cast %26 : vector<1x1x256xf32> to vector<256xf32>
    %28 = vector.shape_cast %27 : vector<256xf32> to vector<1x1x256xf32>
    %29 = vector.broadcast %28 : vector<1x1x256xf32> to vector<8x8x256xf32>
    %30 = arith.mulf %25, %29 : vector<8x8x256xf32>
    %31 = arith.addf %24, %30 : vector<8x8x256xf32>
    %32 = vector.extract_strided_slice %2 {offsets = [1, 1, 0], sizes = [8, 8, 256], strides = [1, 1, 1]} : vector<10x10x256xf32> to vector<8x8x256xf32>
    %c1_13 = arith.constant 1 : index
    %c1_14 = arith.constant 1 : index
    %c0_15 = arith.constant 0 : index
    %33 = vector.load %arg2[%c1_13, %c1_14, %c0_15] : memref<3x3x256xf32, #tpu.memory_space<vmem>>, vector<1x1x256xf32>
    %34 = vector.shape_cast %33 : vector<1x1x256xf32> to vector<256xf32>
    %35 = vector.shape_cast %34 : vector<256xf32> to vector<1x1x256xf32>
    %36 = vector.broadcast %35 : vector<1x1x256xf32> to vector<8x8x256xf32>
    %37 = arith.mulf %32, %36 : vector<8x8x256xf32>
    %38 = arith.addf %31, %37 : vector<8x8x256xf32>
    %39 = vector.extract_strided_slice %2 {offsets = [1, 2, 0], sizes = [8, 8, 256], strides = [1, 1, 1]} : vector<10x10x256xf32> to vector<8x8x256xf32>
    %c1_16 = arith.constant 1 : index
    %c2_17 = arith.constant 2 : index
    %c0_18 = arith.constant 0 : index
    %40 = vector.load %arg2[%c1_16, %c2_17, %c0_18] : memref<3x3x256xf32, #tpu.memory_space<vmem>>, vector<1x1x256xf32>
    %41 = vector.shape_cast %40 : vector<1x1x256xf32> to vector<256xf32>
    %42 = vector.shape_cast %41 : vector<256xf32> to vector<1x1x256xf32>
    %43 = vector.broadcast %42 : vector<1x1x256xf32> to vector<8x8x256xf32>
    %44 = arith.mulf %39, %43 : vector<8x8x256xf32>
    %45 = arith.addf %38, %44 : vector<8x8x256xf32>
    %46 = vector.extract_strided_slice %2 {offsets = [2, 0, 0], sizes = [8, 8, 256], strides = [1, 1, 1]} : vector<10x10x256xf32> to vector<8x8x256xf32>
    %c2_19 = arith.constant 2 : index
    %c0_20 = arith.constant 0 : index
    %c0_21 = arith.constant 0 : index
    %47 = vector.load %arg2[%c2_19, %c0_20, %c0_21] : memref<3x3x256xf32, #tpu.memory_space<vmem>>, vector<1x1x256xf32>
    %48 = vector.shape_cast %47 : vector<1x1x256xf32> to vector<256xf32>
    %49 = vector.shape_cast %48 : vector<256xf32> to vector<1x1x256xf32>
    %50 = vector.broadcast %49 : vector<1x1x256xf32> to vector<8x8x256xf32>
    %51 = arith.mulf %46, %50 : vector<8x8x256xf32>
    %52 = arith.addf %45, %51 : vector<8x8x256xf32>
    %53 = vector.extract_strided_slice %2 {offsets = [2, 1, 0], sizes = [8, 8, 256], strides = [1, 1, 1]} : vector<10x10x256xf32> to vector<8x8x256xf32>
    %c2_22 = arith.constant 2 : index
    %c1_23 = arith.constant 1 : index
    %c0_24 = arith.constant 0 : index
    %54 = vector.load %arg2[%c2_22, %c1_23, %c0_24] : memref<3x3x256xf32, #tpu.memory_space<vmem>>, vector<1x1x256xf32>
    %55 = vector.shape_cast %54 : vector<1x1x256xf32> to vector<256xf32>
    %56 = vector.shape_cast %55 : vector<256xf32> to vector<1x1x256xf32>
    %57 = vector.broadcast %56 : vector<1x1x256xf32> to vector<8x8x256xf32>
    %58 = arith.mulf %53, %57 : vector<8x8x256xf32>
    %59 = arith.addf %52, %58 : vector<8x8x256xf32>
    %60 = vector.extract_strided_slice %2 {offsets = [2, 2, 0], sizes = [8, 8, 256], strides = [1, 1, 1]} : vector<10x10x256xf32> to vector<8x8x256xf32>
    %c2_25 = arith.constant 2 : index
    %c2_26 = arith.constant 2 : index
    %c0_27 = arith.constant 0 : index
    %61 = vector.load %arg2[%c2_25, %c2_26, %c0_27] : memref<3x3x256xf32, #tpu.memory_space<vmem>>, vector<1x1x256xf32>
    %62 = vector.shape_cast %61 : vector<1x1x256xf32> to vector<256xf32>
    %63 = vector.shape_cast %62 : vector<256xf32> to vector<1x1x256xf32>
    %64 = vector.broadcast %63 : vector<1x1x256xf32> to vector<8x8x256xf32>
    %65 = arith.mulf %60, %64 : vector<8x8x256xf32>
    %66 = arith.addf %59, %65 : vector<8x8x256xf32>
    %c0_28 = arith.constant 0 : index
    %c0_29 = arith.constant 0 : index
    %67 = vector.load %arg3[%c0_28, %c0_29] : memref<1x256xf32, #tpu.memory_space<vmem>>, vector<1x256xf32>
    %68 = vector.shape_cast %67 : vector<1x256xf32> to vector<256xf32>
    %69 = vector.shape_cast %68 : vector<256xf32> to vector<1x1x256xf32>
    %70 = vector.broadcast %69 : vector<1x1x256xf32> to vector<8x8x256xf32>
    %71 = arith.mulf %66, %70 : vector<8x8x256xf32>
    %c0_30 = arith.constant 0 : index
    %c0_31 = arith.constant 0 : index
    %72 = vector.load %arg4[%c0_30, %c0_31] : memref<1x256xf32, #tpu.memory_space<vmem>>, vector<1x256xf32>
    %73 = vector.shape_cast %72 : vector<1x256xf32> to vector<256xf32>
    %74 = vector.shape_cast %73 : vector<256xf32> to vector<1x1x256xf32>
    %75 = vector.broadcast %74 : vector<1x1x256xf32> to vector<8x8x256xf32>
    %76 = arith.addf %71, %75 : vector<8x8x256xf32>
    %cst_32 = arith.constant 0.000000e+00 : f32
    %77 = vector.broadcast %cst_32 : f32 to vector<8x8x256xf32>
    %78 = arith.subf %77, %76 : vector<8x8x256xf32>
    %79 = math.exp %78 : vector<8x8x256xf32>
    %cst_33 = arith.constant 1.000000e+00 : f32
    %80 = vector.broadcast %cst_33 : f32 to vector<8x8x256xf32>
    %81 = arith.addf %80, %79 : vector<8x8x256xf32>
    %82 = tpu.reciprocal %81 {approx = true} : vector<8x8x256xf32> -> vector<8x8x256xf32>
    %83 = arith.mulf %76, %82 : vector<8x8x256xf32>
    %84 = arith.truncf %83 : vector<8x8x256xf32> to vector<8x8x256xbf16>
    %c0_34 = arith.constant 0 : index
    %c0_35 = arith.constant 0 : index
    %c0_36 = arith.constant 0 : index
    %c0_37 = arith.constant 0 : index
    %85 = vector.load %arg5[%c0_34, %c0_35, %c0_36, %c0_37] : memref<1x8x8x256xbf16, #tpu.memory_space<vmem>>, vector<1x8x8x256xbf16>
    %86 = vector.shape_cast %85 : vector<1x8x8x256xbf16> to vector<8x8x256xbf16>
    %87 = vector.shape_cast %84 : vector<8x8x256xbf16> to vector<1x8x8x256xbf16>
    tpu.vector_store %arg5[%c0_34, %c0_35, %c0_36, %c0_37], %87 {strides = array<i32>} : memref<1x8x8x256xbf16, #tpu.memory_space<vmem>>, vector<1x8x8x256xbf16>,
    %cst_38 = arith.constant dense<0.000000e+00> : vector<256xf32>
    %88 = vector.multi_reduction <add>, %83, %cst_38 [0, 1] : vector<8x8x256xf32> to vector<256xf32>
    %89 = vector.shape_cast %88 : vector<256xf32> to vector<1x1x256xf32>
    %c0_39 = arith.constant 0 : index
    %c0_40 = arith.constant 0 : index
    %c0_41 = arith.constant 0 : index
    %90 = vector.load %arg6[%c0_39, %c0_40, %c0_41] : memref<1x1x256xf32, #tpu.memory_space<vmem>>, vector<1x1x256xf32>
    tpu.vector_store %arg6[%c0_39, %c0_40, %c0_41], %89 {strides = array<i32>} : memref<1x1x256xf32, #tpu.memory_space<vmem>>, vector<1x1x256xf32>,
    return
  }
  func.func @transform_0(%arg0: i32) -> (i32, i32, i32, i32) {
    %c0_i32 = arith.constant 0 : i32
    %c0_i32_0 = arith.constant 0 : i32
    %c0_i32_1 = arith.constant 0 : i32
    %c0_i32_2 = arith.constant 0 : i32
    return %arg0, %c0_i32, %c0_i32_0, %c0_i32_1 : i32, i32, i32, i32
  }
  func.func @transform_1(%arg0: i32) -> (i32, i32, i32) {
    %c0_i32 = arith.constant 0 : i32
    %c0_i32_0 = arith.constant 0 : i32
    %c0_i32_1 = arith.constant 0 : i32
    %c0_i32_2 = arith.constant 0 : i32
    return %c0_i32, %c0_i32_0, %c0_i32_1 : i32, i32, i32
  }
  func.func @transform_2(%arg0: i32) -> (i32, i32) {
    %c0_i32 = arith.constant 0 : i32
    %c0_i32_0 = arith.constant 0 : i32
    %c0_i32_1 = arith.constant 0 : i32
    return %c0_i32, %c0_i32_0 : i32, i32
  }
  func.func @transform_3(%arg0: i32) -> (i32, i32) {
    %c0_i32 = arith.constant 0 : i32
    %c0_i32_0 = arith.constant 0 : i32
    %c0_i32_1 = arith.constant 0 : i32
    return %c0_i32, %c0_i32_0 : i32, i32
  }
  func.func @transform_4(%arg0: i32) -> (i32, i32, i32, i32) {
    %c0_i32 = arith.constant 0 : i32
    %c0_i32_0 = arith.constant 0 : i32
    %c0_i32_1 = arith.constant 0 : i32
    %c0_i32_2 = arith.constant 0 : i32
    return %arg0, %c0_i32, %c0_i32_0, %c0_i32_1 : i32, i32, i32, i32
  }
  func.func @transform_5(%arg0: i32) -> (i32, i32, i32) {
    %c0_i32 = arith.constant 0 : i32
    %c0_i32_0 = arith.constant 0 : i32
    %c0_i32_1 = arith.constant 0 : i32
    return %arg0, %c0_i32, %c0_i32_0 : i32, i32, i32
  }
}

module attributes {stable_mosaic.version = 11 : i64} {
  func.func @_gated_mm_bn_kernel(%arg0: i32, %arg1: i32, %arg2: memref<1x64x256xbf16, #tpu.memory_space<vmem>>, %arg3: memref<1x1x256xf32, #tpu.memory_space<vmem>>, %arg4: memref<256x128xbf16, #tpu.memory_space<vmem>>, %arg5: memref<1x128xf32, #tpu.memory_space<vmem>>, %arg6: memref<1x128xf32, #tpu.memory_space<vmem>>, %arg7: memref<1x64x128xbf16, #tpu.memory_space<vmem>>) attributes {dimension_semantics = [#tpu.dimension_semantics<parallel>, #tpu.dimension_semantics<parallel>], iteration_bounds = array<i64: 2, 1>, scalar_prefetch = 0 : i64, scratch_operands = 0 : i64, tpu.core_type = #tpu.core_type<tc>, window_params = [{transform_indices = @transform_0, window_bounds = array<i64: 1, 64, 256>}, {transform_indices = @transform_1, window_bounds = array<i64: 1, 1, 256>}, {pipeline_mode = #tpu.pipeline_mode<synchronous>, transform_indices = @transform_2, window_bounds = array<i64: 256, 128>}, {pipeline_mode = #tpu.pipeline_mode<synchronous>, transform_indices = @transform_3, window_bounds = array<i64: 1, 128>}, {pipeline_mode = #tpu.pipeline_mode<synchronous>, transform_indices = @transform_4, window_bounds = array<i64: 1, 128>}, {transform_indices = @transform_5, window_bounds = array<i64: 1, 64, 128>}]} {
    %c0 = arith.constant 0 : index
    %c0_0 = arith.constant 0 : index
    %c0_1 = arith.constant 0 : index
    %0 = vector.load %arg2[%c0, %c0_0, %c0_1] : memref<1x64x256xbf16, #tpu.memory_space<vmem>>, vector<1x64x256xbf16>
    %1 = vector.shape_cast %0 : vector<1x64x256xbf16> to vector<64x256xbf16>
    %2 = arith.extf %1 : vector<64x256xbf16> to vector<64x256xf32>
    %c0_2 = arith.constant 0 : index
    %c0_3 = arith.constant 0 : index
    %c0_4 = arith.constant 0 : index
    %3 = vector.load %arg3[%c0_2, %c0_3, %c0_4] : memref<1x1x256xf32, #tpu.memory_space<vmem>>, vector<1x1x256xf32>
    %4 = vector.shape_cast %3 : vector<1x1x256xf32> to vector<1x256xf32>
    %5 = vector.broadcast %4 : vector<1x256xf32> to vector<64x256xf32>
    %6 = arith.mulf %2, %5 : vector<64x256xf32>
    %7 = arith.truncf %6 : vector<64x256xf32> to vector<64x256xbf16>
    %c0_5 = arith.constant 0 : index
    %c0_6 = arith.constant 0 : index
    %8 = vector.load %arg4[%c0_5, %c0_6] : memref<256x128xbf16, #tpu.memory_space<vmem>>, vector<256x128xbf16>
    %cst = arith.constant dense<0.000000e+00> : vector<64x128xf32>
    %9 = tpu.matmul %7, %8, %cst {dimension_numbers = #tpu.dot_dimension_numbers<[1], [0], [0], [1], [0, 0, 1, 1], [], []>} : vector<64x256xbf16>, vector<256x128xbf16>, vector<64x128xf32> -> vector<64x128xf32>
    %c0_7 = arith.constant 0 : index
    %c0_8 = arith.constant 0 : index
    %10 = vector.load %arg5[%c0_7, %c0_8] : memref<1x128xf32, #tpu.memory_space<vmem>>, vector<1x128xf32>
    %11 = vector.broadcast %10 : vector<1x128xf32> to vector<64x128xf32>
    %12 = arith.mulf %9, %11 : vector<64x128xf32>
    %c0_9 = arith.constant 0 : index
    %c0_10 = arith.constant 0 : index
    %13 = vector.load %arg6[%c0_9, %c0_10] : memref<1x128xf32, #tpu.memory_space<vmem>>, vector<1x128xf32>
    %14 = vector.broadcast %13 : vector<1x128xf32> to vector<64x128xf32>
    %15 = arith.addf %12, %14 : vector<64x128xf32>
    %16 = arith.truncf %15 : vector<64x128xf32> to vector<64x128xbf16>
    %c0_11 = arith.constant 0 : index
    %c0_12 = arith.constant 0 : index
    %c0_13 = arith.constant 0 : index
    %17 = vector.load %arg7[%c0_11, %c0_12, %c0_13] : memref<1x64x128xbf16, #tpu.memory_space<vmem>>, vector<1x64x128xbf16>
    %18 = vector.shape_cast %17 : vector<1x64x128xbf16> to vector<64x128xbf16>
    %19 = vector.shape_cast %16 : vector<64x128xbf16> to vector<1x64x128xbf16>
    tpu.vector_store %arg7[%c0_11, %c0_12, %c0_13], %19 {strides = array<i32>} : memref<1x64x128xbf16, #tpu.memory_space<vmem>>, vector<1x64x128xbf16>,
    return
  }
  func.func @transform_0(%arg0: i32, %arg1: i32) -> (i32, i32, i32) {
    %c0_i32 = arith.constant 0 : i32
    %c0_i32_0 = arith.constant 0 : i32
    return %arg0, %arg1, %c0_i32 : i32, i32, i32
  }
  func.func @transform_1(%arg0: i32, %arg1: i32) -> (i32, i32, i32) {
    %c0_i32 = arith.constant 0 : i32
    %c0_i32_0 = arith.constant 0 : i32
    %c0_i32_1 = arith.constant 0 : i32
    return %arg0, %c0_i32, %c0_i32_0 : i32, i32, i32
  }
  func.func @transform_2(%arg0: i32, %arg1: i32) -> (i32, i32) {
    %c0_i32 = arith.constant 0 : i32
    %c0_i32_0 = arith.constant 0 : i32
    %c0_i32_1 = arith.constant 0 : i32
    return %c0_i32, %c0_i32_0 : i32, i32
  }
  func.func @transform_3(%arg0: i32, %arg1: i32) -> (i32, i32) {
    %c0_i32 = arith.constant 0 : i32
    %c0_i32_0 = arith.constant 0 : i32
    %c0_i32_1 = arith.constant 0 : i32
    return %c0_i32, %c0_i32_0 : i32, i32
  }
  func.func @transform_4(%arg0: i32, %arg1: i32) -> (i32, i32) {
    %c0_i32 = arith.constant 0 : i32
    %c0_i32_0 = arith.constant 0 : i32
    %c0_i32_1 = arith.constant 0 : i32
    return %c0_i32, %c0_i32_0 : i32, i32
  }
  func.func @transform_5(%arg0: i32, %arg1: i32) -> (i32, i32, i32) {
    %c0_i32 = arith.constant 0 : i32
    %c0_i32_0 = arith.constant 0 : i32
    return %arg0, %arg1, %c0_i32 : i32, i32, i32
  }
}

module attributes {stable_mosaic.version = 11 : i64} {
  func.func @_se_gate_kernel(%arg0: memref<2x256xf32, #tpu.memory_space<vmem>>, %arg1: memref<256x32xbf16, #tpu.memory_space<vmem>>, %arg2: memref<1x32xf32, #tpu.memory_space<vmem>>, %arg3: memref<32x256xbf16, #tpu.memory_space<vmem>>, %arg4: memref<1x256xf32, #tpu.memory_space<vmem>>, %arg5: memref<2x256xf32, #tpu.memory_space<vmem>>) attributes {dimension_semantics = [], scalar_prefetch = 0 : i64, scratch_operands = 0 : i64, tpu.core_type = #tpu.core_type<tc>} {
    %c0 = arith.constant 0 : index
    %c0_0 = arith.constant 0 : index
    %0 = vector.load %arg0[%c0, %c0_0] : memref<2x256xf32, #tpu.memory_space<vmem>>, vector<2x256xf32>
    %cst = arith.constant 1.562500e-02 : f32
    %1 = vector.broadcast %cst : f32 to vector<2x256xf32>
    %2 = arith.mulf %0, %1 : vector<2x256xf32>
    %3 = arith.truncf %2 : vector<2x256xf32> to vector<2x256xbf16>
    %c0_1 = arith.constant 0 : index
    %c0_2 = arith.constant 0 : index
    %4 = vector.load %arg1[%c0_1, %c0_2] : memref<256x32xbf16, #tpu.memory_space<vmem>>, vector<256x32xbf16>
    %cst_3 = arith.constant dense<0.000000e+00> : vector<2x32xf32>
    %5 = tpu.matmul %3, %4, %cst_3 {dimension_numbers = #tpu.dot_dimension_numbers<[1], [0], [0], [1], [0, 0, 1, 1], [], []>} : vector<2x256xbf16>, vector<256x32xbf16>, vector<2x32xf32> -> vector<2x32xf32>
    %c0_4 = arith.constant 0 : index
    %c0_5 = arith.constant 0 : index
    %6 = vector.load %arg2[%c0_4, %c0_5] : memref<1x32xf32, #tpu.memory_space<vmem>>, vector<1x32xf32>
    %7 = vector.broadcast %6 : vector<1x32xf32> to vector<2x32xf32>
    %8 = arith.addf %5, %7 : vector<2x32xf32>
    %cst_6 = arith.constant 0.000000e+00 : f32
    %9 = vector.broadcast %cst_6 : f32 to vector<2x32xf32>
    %10 = arith.subf %9, %8 : vector<2x32xf32>
    %11 = math.exp %10 : vector<2x32xf32>
    %cst_7 = arith.constant 1.000000e+00 : f32
    %12 = vector.broadcast %cst_7 : f32 to vector<2x32xf32>
    %13 = arith.addf %12, %11 : vector<2x32xf32>
    %14 = tpu.reciprocal %13 {approx = true} : vector<2x32xf32> -> vector<2x32xf32>
    %15 = arith.mulf %8, %14 : vector<2x32xf32>
    %16 = arith.truncf %15 : vector<2x32xf32> to vector<2x32xbf16>
    %c0_8 = arith.constant 0 : index
    %c0_9 = arith.constant 0 : index
    %17 = vector.load %arg3[%c0_8, %c0_9] : memref<32x256xbf16, #tpu.memory_space<vmem>>, vector<32x256xbf16>
    %cst_10 = arith.constant dense<0.000000e+00> : vector<2x256xf32>
    %18 = tpu.matmul %16, %17, %cst_10 {dimension_numbers = #tpu.dot_dimension_numbers<[1], [0], [0], [1], [0, 0, 1, 1], [], []>} : vector<2x32xbf16>, vector<32x256xbf16>, vector<2x256xf32> -> vector<2x256xf32>
    %c0_11 = arith.constant 0 : index
    %c0_12 = arith.constant 0 : index
    %19 = vector.load %arg4[%c0_11, %c0_12] : memref<1x256xf32, #tpu.memory_space<vmem>>, vector<1x256xf32>
    %20 = vector.broadcast %19 : vector<1x256xf32> to vector<2x256xf32>
    %21 = arith.addf %18, %20 : vector<2x256xf32>
    %cst_13 = arith.constant 0.000000e+00 : f32
    %22 = vector.broadcast %cst_13 : f32 to vector<2x256xf32>
    %23 = arith.subf %22, %21 : vector<2x256xf32>
    %24 = math.exp %23 : vector<2x256xf32>
    %cst_14 = arith.constant 1.000000e+00 : f32
    %25 = vector.broadcast %cst_14 : f32 to vector<2x256xf32>
    %26 = arith.addf %25, %24 : vector<2x256xf32>
    %27 = tpu.reciprocal %26 {approx = true} : vector<2x256xf32> -> vector<2x256xf32>
    %c0_15 = arith.constant 0 : index
    %c0_16 = arith.constant 0 : index
    %28 = vector.load %arg5[%c0_15, %c0_16] : memref<2x256xf32, #tpu.memory_space<vmem>>, vector<2x256xf32>
    tpu.vector_store %arg5[%c0_15, %c0_16], %27 {strides = array<i32>} : memref<2x256xf32, #tpu.memory_space<vmem>>, vector<2x256xf32>,
    return
  }
}

module attributes {stable_mosaic.version = 11 : i64} {
  func.func @_mm_bn_act_kernel(%arg0: i32, %arg1: memref<64x128xbf16, #tpu.memory_space<vmem>>, %arg2: memref<128x128xbf16, #tpu.memory_space<vmem>>, %arg3: memref<1x128xf32, #tpu.memory_space<vmem>>, %arg4: memref<1x128xf32, #tpu.memory_space<vmem>>, %arg5: memref<64x128xf32, #tpu.memory_space<vmem>>) attributes {dimension_semantics = [#tpu.dimension_semantics<parallel>], iteration_bounds = array<i64: 2>, scalar_prefetch = 0 : i64, scratch_operands = 0 : i64, tpu.core_type = #tpu.core_type<tc>, window_params = [{transform_indices = @transform_0, window_bounds = array<i64: 64, 128>}, {pipeline_mode = #tpu.pipeline_mode<synchronous>, transform_indices = @transform_1, window_bounds = array<i64: 128, 128>}, {pipeline_mode = #tpu.pipeline_mode<synchronous>, transform_indices = @transform_2, window_bounds = array<i64: 1, 128>}, {pipeline_mode = #tpu.pipeline_mode<synchronous>, transform_indices = @transform_3, window_bounds = array<i64: 1, 128>}, {transform_indices = @transform_4, window_bounds = array<i64: 64, 128>}]} {
    %c0 = arith.constant 0 : index
    %c0_0 = arith.constant 0 : index
    %0 = vector.load %arg1[%c0, %c0_0] : memref<64x128xbf16, #tpu.memory_space<vmem>>, vector<64x128xbf16>
    %c0_1 = arith.constant 0 : index
    %c0_2 = arith.constant 0 : index
    %1 = vector.load %arg2[%c0_1, %c0_2] : memref<128x128xbf16, #tpu.memory_space<vmem>>, vector<128x128xbf16>
    %cst = arith.constant dense<0.000000e+00> : vector<64x128xf32>
    %2 = tpu.matmul %0, %1, %cst {dimension_numbers = #tpu.dot_dimension_numbers<[1], [0], [0], [1], [0, 0, 1, 1], [], []>} : vector<64x128xbf16>, vector<128x128xbf16>, vector<64x128xf32> -> vector<64x128xf32>
    %c0_3 = arith.constant 0 : index
    %c0_4 = arith.constant 0 : index
    %3 = vector.load %arg3[%c0_3, %c0_4] : memref<1x128xf32, #tpu.memory_space<vmem>>, vector<1x128xf32>
    %4 = vector.broadcast %3 : vector<1x128xf32> to vector<64x128xf32>
    %5 = arith.mulf %2, %4 : vector<64x128xf32>
    %c0_5 = arith.constant 0 : index
    %c0_6 = arith.constant 0 : index
    %6 = vector.load %arg4[%c0_5, %c0_6] : memref<1x128xf32, #tpu.memory_space<vmem>>, vector<1x128xf32>
    %7 = vector.broadcast %6 : vector<1x128xf32> to vector<64x128xf32>
    %8 = arith.addf %5, %7 : vector<64x128xf32>
    %cst_7 = arith.constant 0.000000e+00 : f32
    %9 = vector.broadcast %cst_7 : f32 to vector<64x128xf32>
    %10 = arith.subf %9, %8 : vector<64x128xf32>
    %11 = math.exp %10 : vector<64x128xf32>
    %cst_8 = arith.constant 1.000000e+00 : f32
    %12 = vector.broadcast %cst_8 : f32 to vector<64x128xf32>
    %13 = arith.addf %12, %11 : vector<64x128xf32>
    %14 = tpu.reciprocal %13 {approx = true} : vector<64x128xf32> -> vector<64x128xf32>
    %15 = arith.mulf %8, %14 : vector<64x128xf32>
    %c0_9 = arith.constant 0 : index
    %c0_10 = arith.constant 0 : index
    %16 = vector.load %arg5[%c0_9, %c0_10] : memref<64x128xf32, #tpu.memory_space<vmem>>, vector<64x128xf32>
    tpu.vector_store %arg5[%c0_9, %c0_10], %15 {strides = array<i32>} : memref<64x128xf32, #tpu.memory_space<vmem>>, vector<64x128xf32>,
    return
  }
  func.func @transform_0(%arg0: i32) -> (i32, i32) {
    %c0_i32 = arith.constant 0 : i32
    %c0_i32_0 = arith.constant 0 : i32
    return %arg0, %c0_i32 : i32, i32
  }
  func.func @transform_1(%arg0: i32) -> (i32, i32) {
    %c0_i32 = arith.constant 0 : i32
    %c0_i32_0 = arith.constant 0 : i32
    %c0_i32_1 = arith.constant 0 : i32
    return %c0_i32, %c0_i32_0 : i32, i32
  }
  func.func @transform_2(%arg0: i32) -> (i32, i32) {
    %c0_i32 = arith.constant 0 : i32
    %c0_i32_0 = arith.constant 0 : i32
    %c0_i32_1 = arith.constant 0 : i32
    return %c0_i32, %c0_i32_0 : i32, i32
  }
  func.func @transform_3(%arg0: i32) -> (i32, i32) {
    %c0_i32 = arith.constant 0 : i32
    %c0_i32_0 = arith.constant 0 : i32
    %c0_i32_1 = arith.constant 0 : i32
    return %c0_i32, %c0_i32_0 : i32, i32
  }
  func.func @transform_4(%arg0: i32) -> (i32, i32) {
    %c0_i32 = arith.constant 0 : i32
    %c0_i32_0 = arith.constant 0 : i32
    return %arg0, %c0_i32 : i32, i32
  }
}

</mosaic_0001>

<llo_original>
// kernel: sen_forward.7
$region0: #{sen_forward.7}
  #allocation0 [shape = 'u32[]', space=smem, size = 0x4, offset = 0x4, fixed_abs, tag = 'smem constant byte address 0x4 - core index']
  #allocation1 [shape = 'u32[72,128]{1,0:T(1,128)}', space=vmem, size = 0x9000, scoped, tag = 'internal scratch']
  %s0 = inlined_call_operand.vmem [shape: bf16[128,128], index: 0, kind: input, shape index: {}]
  %s1 = inlined_call_operand.vmem [shape: bf16[128,256], index: 1, kind: input, shape index: {}]
  %s2 = inlined_call_operand.vmem [shape: f32[1,256], index: 2, kind: input, shape index: {}]
  %s3 = inlined_call_operand.vmem [shape: f32[1,256], index: 3, kind: input, shape index: {}]
  %s4 = inlined_call_operand.vmem [shape: bf16[128,256], index: 4, kind: output, shape index: {}]
  %s5 = sld [smem:[#allocation0]]
  $region49: #{sen_forward.7} parent=0
    _
  %s7 = ssub.s32 1, %s5
  %s8 = scalar_select 0, %s7, %s5
  loop: start=0, step=1, limit=4
  $region2: #{sen_forward.7} parent=0 // loop_pre_header
    _
  $region3: #{sen_forward.7} parent=0 // loop_header
    %s10 = sphi 0, %s14
    %p11 = scmp.ge.s32.totalorder %s10, 4
    %s20 = sphi 0, %s22
    %s23 = sphi 0, %s20
    %s24 = sphi 0, %s23
    %s40 = sphi 0, %s24
    %s44 = sphi 0, %s44
    %s46 = sphi 0, %s44
    %s47 = sphi 0, %s46
    %s61 = sphi 0, %s47
    %s65 = sphi 0, %s65
    %s67 = sphi 0, %s65
    %s68 = sphi 0, %s67
    %s82 = sphi 0, %s68
    %s86 = sphi 0, %s86
    %s88 = sphi 0, %s86
    %s89 = sphi 0, %s88
    %s103 = sphi 0, %s89
    %s109 = sphi 0, %s111
    %s112 = sphi 0, %s109
    %s113 = sphi 0, %s112
    %s129 = sphi 0, %s113
  $region4: #{sen_forward.7} parent=0 // loop_header_branch
    %13 = sbr.rel (%p11) target = $region8
  $region5: #{sen_forward.7} parent=0 // loop_body
    %s15 = ssub.s32 %s10, 1
    %s16 = ssub.s32 %s10, 2
    %s17 = sadd.s32 %s10, 1
    %s18 = ssub.s32 %s10, %s17
    %p19 = scmp.eq.s32.totalorder %s18, 0
    %s21 = sadd.s32 %s20, 1
    %s22 = scalar_select %p19, %s20, %s21
    %p25 = pneg %p19
    %p26 = scmp.eq.s32.totalorder %s10, 1
    %p27 = por %p25, %p26
    %p28 = scmp.ne.s32.totalorder %s20, %s23
    %p29 = scmp.eq.s32.totalorder %s10, 0
    %p30 = por %p28, %p29
    %p31 = scmp.ne.s32.totalorder %s20, %s23
    %p32 = scmp.eq.s32.totalorder %s15, 1
    %p33 = por %p31, %p32
    %p34 = scmp.ne.s32.totalorder %s23, %s24
    %p35 = scmp.eq.s32.totalorder %s15, 0
    %p36 = por %p34, %p35
    %p37 = scmp.ne.s32.totalorder %s23, %s24
    %p38 = scmp.eq.s32.totalorder %s16, 1
    %p39 = por %p37, %p38
    %p41 = scmp.ne.s32.totalorder %s24, %s40
    %p42 = scmp.eq.s32.totalorder %s16, 0
    %p43 = por %p41, %p42
    %s45 = sadd.s32 %s44, 1
    %p48 = scmp.eq.s32.totalorder %s10, 1
    %p49 = scmp.ne.s32.totalorder %s44, %s46
    %p50 = scmp.eq.s32.totalorder %s10, 0
    %p51 = por %p49, %p50
    %p52 = scmp.ne.s32.totalorder %s44, %s46
    %p53 = scmp.eq.s32.totalorder %s15, 1
    %p54 = por %p52, %p53
    %p55 = scmp.ne.s32.totalorder %s46, %s47
    %p56 = scmp.eq.s32.totalorder %s15, 0
    %p57 = por %p55, %p56
    %p58 = scmp.ne.s32.totalorder %s46, %s47
    %p59 = scmp.eq.s32.totalorder %s16, 1
    %p60 = por %p58, %p59
    %p62 = scmp.ne.s32.totalorder %s47, %s61
    %p63 = scmp.eq.s32.totalorder %s16, 0
    %p64 = por %p62, %p63
    %s66 = sadd.s32 %s65, 1
    %p69 = scmp.eq.s32.totalorder %s10, 1
    %p70 = scmp.ne.s32.totalorder %s65, %s67
    %p71 = scmp.eq.s32.totalorder %s10, 0
    %p72 = por %p70, %p71
    %p73 = scmp.ne.s32.totalorder %s65, %s67
    %p74 = scmp.eq.s32.totalorder %s15, 1
    %p75 = por %p73, %p74
    %p76 = scmp.ne.s32.totalorder %s67, %s68
    %p77 = scmp.eq.s32.totalorder %s15, 0
    %p78 = por %p76, %p77
    %p79 = scmp.ne.s32.totalorder %s67, %s68
    %p80 = scmp.eq.s32.totalorder %s16, 1
    %p81 = por %p79, %p80
    %p83 = scmp.ne.s32.totalorder %s68, %s82
    %p84 = scmp.eq.s32.totalorder %s16, 0
    %p85 = por %p83, %p84
    %s87 = sadd.s32 %s86, 1
    %p90 = scmp.eq.s32.totalorder %s10, 1
    %p91 = scmp.ne.s32.totalorder %s86, %s88
    %p92 = scmp.eq.s32.totalorder %s10, 0
    %p93 = por %p91, %p92
    %p94 = scmp.ne.s32.totalorder %s86, %s88
    %p95 = scmp.eq.s32.totalorder %s15, 1
    %p96 = por %p94, %p95
    %p97 = scmp.ne.s32.totalorder %s88, %s89
    %p98 = scmp.eq.s32.totalorder %s15, 0
    %p99 = por %p97, %p98
    %p100 = scmp.ne.s32.totalorder %s88, %s89
    %p101 = scmp.eq.s32.totalorder %s16, 1
    %p102 = por %p100, %p101
    %p104 = scmp.ne.s32.totalorder %s89, %s103
    %p105 = scmp.eq.s32.totalorder %s16, 0
    %p106 = por %p104, %p105
    %s107 = ssub.s32 %s10, %s17
    %p108 = scmp.eq.s32.totalorder %s107, 0
    %s110 = sadd.s32 %s109, 1
    %s111 = scalar_select %p108, %s109, %s110
    %p114 = pneg %p108
    %p115 = scmp.eq.s32.totalorder %s10, 1
    %p116 = por %p114, %p115
    %p117 = scmp.ne.s32.totalorder %s109, %s112
    %p118 = scmp.eq.s32.totalorder %s10, 0
    %p119 = por %p117, %p118
    %p120 = scmp.ne.s32.totalorder %s109, %s112
    %p121 = scmp.eq.s32.totalorder %s15, 1
    %p122 = por %p120, %p121
    %p123 = scmp.ne.s32.totalorder %s112, %s113
    %p124 = scmp.eq.s32.totalorder %s15, 0
    %p125 = por %p123, %p124
    %p126 = scmp.ne.s32.totalorder %s112, %s113
    %p127 = scmp.eq.s32.totalorder %s16, 1
    %p128 = por %p126, %p127
    %p130 = scmp.ne.s32.totalorder %s113, %s129
    %p131 = scmp.eq.s32.totalorder %s16, 0
    %p132 = por %p130, %p131
    %p133 = scmp.le.s32.totalorder 1, %s10
    %p134 = scmp.lt.s32.totalorder %s10, 3
    %p135 = pnand %p133, %p134
    %p136 = pneg %p135
    // Predicated region
    $region9: #{sen_forward.7} parent=5 // pred_check
      _
    $region10: #{sen_forward.7} parent=5 // pred_check_branch
      %138 = sbr.rel (%p135) target = $region12
    $region11: #{sen_forward.7} parent=5 // pred_region
      %s139 = ssub.s32 %s10, 1
      // Predicated region
      $region13: #{sen_forward.7} parent=11 // pred_check
        %p140 = pneg %p57
      $region14: #{sen_forward.7} parent=11 // pred_check_branch
        %142 = sbr.rel (%p140) target = $region16
      $region15: #{sen_forward.7} parent=11 // pred_region
        _
      $region16: #{sen_forward.7} parent=11 // pred_fallthru
        _
      // Predicated region
      $region17: #{sen_forward.7} parent=11 // pred_check
        %p143 = pneg %p78
      $region18: #{sen_forward.7} parent=11 // pred_check_branch
        %145 = sbr.rel (%p143) target = $region20
      $region19: #{sen_forward.7} parent=11 // pred_region
        _
      $region20: #{sen_forward.7} parent=11 // pred_fallthru
        _
      // Predicated region
      $region21: #{sen_forward.7} parent=11 // pred_check
        %p146 = pneg %p99
      $region22: #{sen_forward.7} parent=11 // pred_check_branch
        %148 = sbr.rel (%p146) target = $region24
      $region23: #{sen_forward.7} parent=11 // pred_region
        _
      $region24: #{sen_forward.7} parent=11 // pred_fallthru
        _
    $region12: #{sen_forward.7} parent=5 // pred_fallthru
      _
    %p149 = scmp.lt.s32.totalorder %s10, 2
    // Predicated region
    $region25: #{sen_forward.7} parent=5 // pred_check
      %p150 = pneg %p149
    $region26: #{sen_forward.7} parent=5 // pred_check_branch
      %152 = sbr.rel (%p150) target = $region28
    $region27: #{sen_forward.7} parent=5 // pred_region
      // Predicated region
      $region29: #{sen_forward.7} parent=27 // pred_check
        %p153 = pneg %p30
      $region30: #{sen_forward.7} parent=27 // pred_check_branch
        %155 = sbr.rel (%p153) target = $region32
      $region31: #{sen_forward.7} parent=27 // pred_region
        %s156 = smul.u32 8, %s10
        %p157 = scmp.lt.s32.totalorder %s156, 15
        %s158 = scalar_select %p157, %s156, 15
        %s159 = smul.addr %s158, 4
        %s160 = scalar_lea.vmem %s0, %s159
        %s161 = smul.u32 8, %s10
      $region32: #{sen_forward.7} parent=27 // pred_fallthru
        _
    $region28: #{sen_forward.7} parent=5 // pred_fallthru
      _
    %p162 = scmp.le.s32.totalorder 1, %s10
    %p163 = scmp.lt.s32.totalorder %s10, 3
    %p164 = pnand %p162, %p163
    %p165 = pneg %p164
    // Predicated region
    $region33: #{sen_forward.7} parent=5 // pred_check
      _
    $region34: #{sen_forward.7} parent=5 // pred_check_branch
      %167 = sbr.rel (%p164) target = $region36
    $region35: #{sen_forward.7} parent=5 // pred_region
      %s168 = ssub.s32 %s10, 1
      %s169 = smul.u32 8, %s15
      %p170 = scmp.lt.s32.totalorder %s169, 15
      %s171 = scalar_select %p170, %s169, 15
      %s172 = smul.addr %s171, 4
      %s173 = scalar_lea.vmem %s0, %s172
      %p174 = pneg %p36
      %p175 = pneg %p33
      %p176 = pneg %p57
      %p177 = pneg %p54
      %p178 = pneg %p78
      %p179 = pneg %p75
      %p180 = pneg %p99
      %p181 = pneg %p96
      %p182 = pneg %p125
      %p183 = pneg %p122
      %s184 = smul.u32 8, %s15
      %p185 = scmp.lt.s32.totalorder %s184, 15
      %s186 = scalar_select %p185, %s184, 15
      %s187 = smul.addr %s186, 2
      %s188 = smul.addr %s187, 4
      %s189 = scalar_lea.vmem %s4, %s188
      %s190 = smul.u32 8, %s15
      %p191 = scmp.lt.s32.totalorder %s190, 15
      %s192 = scalar_select %p191, %s190, 15
      %s193 = smul.addr %s192, 4
      %s194 = scalar_lea.vmem %s0, %s193
      %s195 = smul.u32 8, %s15
      %s196 = smul.u32 8, %s15
      %p197 = scmp.lt.s32.totalorder %s196, 15
      %s198 = scalar_select %p197, %s196, 15
      %s199 = smul.addr %s198, 2
      %s200 = smul.addr %s199, 4
      %s201 = scalar_lea.vmem %s4, %s200
      %s202 = smul.u32 8, %s15
      %v203 = vld [vmem:[%s194] sm:$0xf]
      %v204 = vld [vmem:[%s194 + $0x4] sm:$0xf]
      %v205 = vld [vmem:[%s194 + $0x8] sm:$0xf]
      %v206 = vld [vmem:[%s194 + $0xc] sm:$0xf]
      %v207 = vld [vmem:[%s194 + $0x10] sm:$0xf]
      %v208 = vld [vmem:[%s194 + $0x14] sm:$0xf]
      %v209 = vld [vmem:[%s194 + $0x18] sm:$0xf]
      %v210 = vld [vmem:[%s194 + $0x1c] sm:$0xf]
      %v211 = vld [vmem:[%s1] sm:$0xff]
      %v212 = vld [vmem:[%s1 + $0x8] sm:$0xff]
      %v213 = vld [vmem:[%s1 + $0x10] sm:$0xff]
      %v214 = vld [vmem:[%s1 + $0x18] sm:$0xff]
      %v215 = vld [vmem:[%s1 + $0x20] sm:$0xff]
      %v216 = vld [vmem:[%s1 + $0x28] sm:$0xff]
      %v217 = vld [vmem:[%s1 + $0x30] sm:$0xff]
      %v218 = vld [vmem:[%s1 + $0x38] sm:$0xff]
      %v219 = vld [vmem:[%s1 + $0x40] sm:$0xff]
      %v220 = vld [vmem:[%s1 + $0x48] sm:$0xff]
      %v221 = vld [vmem:[%s1 + $0x50] sm:$0xff]
      %v222 = vld [vmem:[%s1 + $0x58] sm:$0xff]
      %v223 = vld [vmem:[%s1 + $0x60] sm:$0xff]
      %v224 = vld [vmem:[%s1 + $0x68] sm:$0xff]
      %v225 = vld [vmem:[%s1 + $0x70] sm:$0xff]
      %v226 = vld [vmem:[%s1 + $0x78] sm:$0xff]
      %v235 = vunpack.c.l.b16 %v203
      %v236 = vunpack.c.l.b16 %v204
      %v237 = vunpack.c.l.b16 %v205
      %v238 = vunpack.c.l.b16 %v206
      %v239 = vunpack.c.l.b16 %v207
      %v240 = vunpack.c.l.b16 %v208
      %v241 = vunpack.c.l.b16 %v209
      %v242 = vunpack.c.l.b16 %v210
      %v243 = vpack.c.b16 %v236, %v235
      %v244 = vpack.c.b16 %v238, %v237
      %v245 = vpack.c.b16 %v240, %v239
      %v246 = vpack.c.b16 %v242, %v241
      %v267 = vunpack.c.l.b16 %v211
      %v268 = vunpack.c.h.b16 %v211
      %v269 = vunpack.c.l.b16 %v212
      %v270 = vunpack.c.h.b16 %v212
      %v271 = vunpack.c.l.b16 %v213
      %v272 = vunpack.c.h.b16 %v213
      %v273 = vunpack.c.l.b16 %v214
      %v274 = vunpack.c.h.b16 %v214
      %v275 = vunpack.c.l.b16 %v215
      %v276 = vunpack.c.h.b16 %v215
      %v277 = vunpack.c.l.b16 %v216
      %v278 = vunpack.c.h.b16 %v216
      %v279 = vunpack.c.l.b16 %v217
      %v280 = vunpack.c.h.b16 %v217
      %v281 = vunpack.c.l.b16 %v218
      %v282 = vunpack.c.h.b16 %v218
      %v283 = vunpack.c.l.b16 %v219
      %v284 = vunpack.c.h.b16 %v219
      %v285 = vunpack.c.l.b16 %v220
      %v286 = vunpack.c.h.b16 %v220
      %v287 = vunpack.c.l.b16 %v221
      %v288 = vunpack.c.h.b16 %v221
      %v289 = vunpack.c.l.b16 %v222
      %v290 = vunpack.c.h.b16 %v222
      %v291 = vunpack.c.l.b16 %v223
      %v292 = vunpack.c.h.b16 %v223
      %v293 = vunpack.c.l.b16 %v224
      %v294 = vunpack.c.h.b16 %v224
      %v295 = vunpack.c.l.b16 %v225
      %v296 = vunpack.c.h.b16 %v225
      %v297 = vunpack.c.l.b16 %v226
      %v298 = vunpack.c.h.b16 %v226
      %v299 = vpack.c.b16 %v269, %v267
      %v300 = vpack.c.b16 %v270, %v268
      %v301 = vpack.c.b16 %v273, %v271
      %v302 = vpack.c.b16 %v274, %v272
      %v303 = vpack.c.b16 %v277, %v275
      %v304 = vpack.c.b16 %v278, %v276
      %v305 = vpack.c.b16 %v281, %v279
      %v306 = vpack.c.b16 %v282, %v280
      %v307 = vpack.c.b16 %v285, %v283
      %v308 = vpack.c.b16 %v286, %v284
      %v309 = vpack.c.b16 %v289, %v287
      %v310 = vpack.c.b16 %v290, %v288
      %v311 = vpack.c.b16 %v293, %v291
      %v312 = vpack.c.b16 %v294, %v292
      %v313 = vpack.c.b16 %v297, %v295
      %v314 = vpack.c.b16 %v298, %v296
      %331 = vmatpush.bf16.msra.mxu0 %v313
      %332 = vmatpush.bf16.msra.mxu0 %v311
      %333 = vmatpush.bf16.msra.mxu0 %v309
      %334 = vmatpush.bf16.msra.mxu0 %v307
      %335 = vmatpush.bf16.msra.mxu0 %v305
      %336 = vmatpush.bf16.msra.mxu0 %v303
      %337 = vmatpush.bf16.msra.mxu0 %v301
      %338 = vmatpush.bf16.msra.mxu0 %v299
      %339 = vmatmul.bf16.gmra.mxu0 %v243
      %v340 = vpop.f32.mrf.mxu0
      %v341 = vadd.f32 0.0, %v340
      %v342 = vpop.f32.mrf.mxu0
      %v343 = vadd.f32 0.0, %v342
      %344 = vmatmul.bf16.gmra.mxu0 %v244
      %v345 = vpop.f32.mrf.mxu0
      %v346 = vadd.f32 0.0, %v345
      %v347 = vpop.f32.mrf.mxu0
      %v348 = vadd.f32 0.0, %v347
      %349 = vmatmul.bf16.gmra.mxu0 %v245
      %v350 = vpop.f32.mrf.mxu0
      %v351 = vadd.f32 0.0, %v350
      %v352 = vpop.f32.mrf.mxu0
      %v353 = vadd.f32 0.0, %v352
      %354 = vmatmul.bf16.gmra.mxu0 %v246
      %v355 = vpop.f32.mrf.mxu0
      %v356 = vadd.f32 0.0, %v355
      %v357 = vpop.f32.mrf.mxu0
      %v358 = vadd.f32 0.0, %v357
      %359 = vdwg.mxu0
      %360 = vmatpush.bf16.msra.mxu0 %v314
      %361 = vmatpush.bf16.msra.mxu0 %v312
      %362 = vmatpush.bf16.msra.mxu0 %v310
      %363 = vmatpush.bf16.msra.mxu0 %v308
      %364 = vmatpush.bf16.msra.mxu0 %v306
      %365 = vmatpush.bf16.msra.mxu0 %v304
      %366 = vmatpush.bf16.msra.mxu0 %v302
      %367 = vmatpush.bf16.msra.mxu0 %v300
      %368 = vmatmul.bf16.gmra.mxu0 %v243
      %v369 = vpop.f32.mrf.mxu0
      %v370 = vadd.f32 0.0, %v369
      %v371 = vpop.f32.mrf.mxu0
      %v372 = vadd.f32 0.0, %v371
      %373 = vmatmul.bf16.gmra.mxu0 %v244
      %v374 = vpop.f32.mrf.mxu0
      %v375 = vadd.f32 0.0, %v374
      %v376 = vpop.f32.mrf.mxu0
      %v377 = vadd.f32 0.0, %v376
      %378 = vmatmul.bf16.gmra.mxu0 %v245
      %v379 = vpop.f32.mrf.mxu0
      %v380 = vadd.f32 0.0, %v379
      %v381 = vpop.f32.mrf.mxu0
      %v382 = vadd.f32 0.0, %v381
      %383 = vmatmul.bf16.gmra.mxu0 %v246
      %v384 = vpop.f32.mrf.mxu0
      %v385 = vadd.f32 0.0, %v384
      %v386 = vpop.f32.mrf.mxu0
      %v387 = vadd.f32 0.0, %v386
      %388 = vdwg.mxu0
      %v389 = vld [vmem:[%s2] sm:$0x3]
      %v391 = vperm.slane %v389, 0
      %v392 = vperm.slane %v389, 1
      %v395 = vmul.f32 %v341, %v391
      %v396 = vmul.f32 %v370, %v392
      %v397 = vmul.f32 %v343, %v391
      %v398 = vmul.f32 %v372, %v392
      %v399 = vmul.f32 %v346, %v391
      %v400 = vmul.f32 %v375, %v392
      %v401 = vmul.f32 %v348, %v391
      %v402 = vmul.f32 %v377, %v392
      %v403 = vmul.f32 %v351, %v391
      %v404 = vmul.f32 %v380, %v392
      %v405 = vmul.f32 %v353, %v391
      %v406 = vmul.f32 %v382, %v392
      %v407 = vmul.f32 %v356, %v391
      %v408 = vmul.f32 %v385, %v392
      %v409 = vmul.f32 %v358, %v391
      %v410 = vmul.f32 %v387, %v392
      %v411 = vld [vmem:[%s3] sm:$0x3]
      %v413 = vperm.slane %v411, 0
      %v414 = vperm.slane %v411, 1
      %v417 = vadd.f32 %v395, %v413
      %v418 = vadd.f32 %v396, %v414
      %v419 = vadd.f32 %v397, %v413
      %v420 = vadd.f32 %v398, %v414
      %v421 = vadd.f32 %v399, %v413
      %v422 = vadd.f32 %v400, %v414
      %v423 = vadd.f32 %v401, %v413
      %v424 = vadd.f32 %v402, %v414
      %v425 = vadd.f32 %v403, %v413
      %v426 = vadd.f32 %v404, %v414
      %v427 = vadd.f32 %v405, %v413
      %v428 = vadd.f32 %v406, %v414
      %v429 = vadd.f32 %v407, %v413
      %v430 = vadd.f32 %v408, %v414
      %v431 = vadd.f32 %v409, %v413
      %v432 = vadd.f32 %v410, %v414
      %v433 = vsub.f32 0.0, %v417
      %v434 = vsub.f32 0.0, %v418
      %v435 = vsub.f32 0.0, %v419
      %v436 = vsub.f32 0.0, %v420
      %v437 = vsub.f32 0.0, %v421
      %v438 = vsub.f32 0.0, %v422
      %v439 = vsub.f32 0.0, %v423
      %v440 = vsub.f32 0.0, %v424
      %v441 = vsub.f32 0.0, %v425
      %v442 = vsub.f32 0.0, %v426
      %v443 = vsub.f32 0.0, %v427
      %v444 = vsub.f32 0.0, %v428
      %v445 = vsub.f32 0.0, %v429
      %v446 = vsub.f32 0.0, %v430
      %v447 = vsub.f32 0.0, %v431
      %v448 = vsub.f32 0.0, %v432
      %v449 = vmul.f32 %v433, 1.442695
      %v450 = vpow.pop %v449
      %v451 = vmul.f32 %v434, 1.442695
      %v452 = vpow.pop %v451
      %v453 = vmul.f32 %v435, 1.442695
      %v454 = vpow.pop %v453
      %v455 = vmul.f32 %v436, 1.442695
      %v456 = vpow.pop %v455
      %v457 = vmul.f32 %v437, 1.442695
      %v458 = vpow.pop %v457
      %v459 = vmul.f32 %v438, 1.442695
      %v460 = vpow.pop %v459
      %v461 = vmul.f32 %v439, 1.442695
      %v462 = vpow.pop %v461
      %v463 = vmul.f32 %v440, 1.442695
      %v464 = vpow.pop %v463
      %v465 = vmul.f32 %v441, 1.442695
      %v466 = vpow.pop %v465
      %v467 = vmul.f32 %v442, 1.442695
      %v468 = vpow.pop %v467
      %v469 = vmul.f32 %v443, 1.442695
      %v470 = vpow.pop %v469
      %v471 = vmul.f32 %v444, 1.442695
      %v472 = vpow.pop %v471
      %v473 = vmul.f32 %v445, 1.442695
      %v474 = vpow.pop %v473
      %v475 = vmul.f32 %v446, 1.442695
      %v476 = vpow.pop %v475
      %v477 = vmul.f32 %v447, 1.442695
      %v478 = vpow.pop %v477
      %v479 = vmul.f32 %v448, 1.442695
      %v480 = vpow.pop %v479
      %v481 = vadd.f32 %v450, 1.0
      %v482 = vadd.f32 %v452, 1.0
      %v483 = vadd.f32 %v454, 1.0
      %v484 = vadd.f32 %v456, 1.0
      %v485 = vadd.f32 %v458, 1.0
      %v486 = vadd.f32 %v460, 1.0
      %v487 = vadd.f32 %v462, 1.0
      %v488 = vadd.f32 %v464, 1.0
      %v489 = vadd.f32 %v466, 1.0
      %v490 = vadd.f32 %v468, 1.0
      %v491 = vadd.f32 %v470, 1.0
      %v492 = vadd.f32 %v472, 1.0
      %v493 = vadd.f32 %v474, 1.0
      %v494 = vadd.f32 %v476, 1.0
      %v495 = vadd.f32 %v478, 1.0
      %v496 = vadd.f32 %v480, 1.0
      %v497 = vrcp.pop %v481
      %v498 = vrcp.pop %v482
      %v499 = vrcp.pop %v483
      %v500 = vrcp.pop %v484
      %v501 = vrcp.pop %v485
      %v502 = vrcp.pop %v486
      %v503 = vrcp.pop %v487
      %v504 = vrcp.pop %v488
      %v505 = vrcp.pop %v489
      %v506 = vrcp.pop %v490
      %v507 = vrcp.pop %v491
      %v508 = vrcp.pop %v492
      %v509 = vrcp.pop %v493
      %v510 = vrcp.pop %v494
      %v511 = vrcp.pop %v495
      %v512 = vrcp.pop %v496
      %v513 = vmul.f32 %v417, %v497
      %v514 = vmul.f32 %v418, %v498
      %v515 = vmul.f32 %v419, %v499
      %v516 = vmul.f32 %v420, %v500
      %v517 = vmul.f32 %v421, %v501
      %v518 = vmul.f32 %v422, %v502
      %v519 = vmul.f32 %v423, %v503
      %v520 = vmul.f32 %v424, %v504
      %v521 = vmul.f32 %v425, %v505
      %v522 = vmul.f32 %v426, %v506
      %v523 = vmul.f32 %v427, %v507
      %v524 = vmul.f32 %v428, %v508
      %v525 = vmul.f32 %v429, %v509
      %v526 = vmul.f32 %v430, %v510
      %v527 = vmul.f32 %v431, %v511
      %v528 = vmul.f32 %v432, %v512
      %v529 = vpack.c.bf16 %v514, %v513
      %v530 = vpack.c.bf16 %v516, %v515
      %v531 = vpack.c.bf16 %v518, %v517
      %v532 = vpack.c.bf16 %v520, %v519
      %v533 = vpack.c.bf16 %v522, %v521
      %v534 = vpack.c.bf16 %v524, %v523
      %v535 = vpack.c.bf16 %v526, %v525
      %v536 = vpack.c.bf16 %v528, %v527
      %537 = vst [vmem:[%s201] sm:$0xff] %v529
      %538 = vst [vmem:[%s201 + $0x8] sm:$0xff] %v530
      %539 = vst [vmem:[%s201 + $0x10] sm:$0xff] %v531
      %540 = vst [vmem:[%s201 + $0x18] sm:$0xff] %v532
      %541 = vst [vmem:[%s201 + $0x20] sm:$0xff] %v533
      %542 = vst [vmem:[%s201 + $0x28] sm:$0xff] %v534
      %543 = vst [vmem:[%s201 + $0x30] sm:$0xff] %v535
      %544 = vst [vmem:[%s201 + $0x38] sm:$0xff] %v536
      %s545 = smul.u32 8, %s15
      %p546 = scmp.lt.s32.totalorder %s545, 15
      %s547 = scalar_select %p546, %s545, 15
      %s548 = smul.addr %s547, 2
      %s549 = smul.addr %s548, 4
      %s550 = scalar_lea.vmem %s4, %s549
      // Predicated region
      $region37: #{sen_forward.7} parent=35 // pred_check
        %p551 = pneg %p122
      $region38: #{sen_forward.7} parent=35 // pred_check_branch
        %553 = sbr.rel (%p551) target = $region40
      $region39: #{sen_forward.7} parent=35 // pred_region
        %s554 = smul.u32 8, %s15
      $region40: #{sen_forward.7} parent=35 // pred_fallthru
        _
    $region36: #{sen_forward.7} parent=5 // pred_fallthru
      _
    %p555 = scmp.le.s32.totalorder 2, %s10
    // Predicated region
    $region41: #{sen_forward.7} parent=5 // pred_check
      %p556 = pneg %p555
    $region42: #{sen_forward.7} parent=5 // pred_check_branch
      %558 = sbr.rel (%p556) target = $region44
    $region43: #{sen_forward.7} parent=5 // pred_region
      %s559 = ssub.s32 %s10, 2
      // Predicated region
      $region45: #{sen_forward.7} parent=43 // pred_check
        %p560 = pneg %p128
      $region46: #{sen_forward.7} parent=43 // pred_check_branch
        %562 = sbr.rel (%p560) target = $region48
      $region47: #{sen_forward.7} parent=43 // pred_region
        %s563 = smul.u32 8, %s16
        %p564 = scmp.lt.s32.totalorder %s563, 15
        %s565 = scalar_select %p564, %s563, 15
        %s566 = smul.addr %s565, 2
        %s567 = smul.addr %s566, 4
        %s568 = scalar_lea.vmem %s4, %s567
      $region48: #{sen_forward.7} parent=43 // pred_fallthru
        _
    $region44: #{sen_forward.7} parent=5 // pred_fallthru
      _
  $region6: #{sen_forward.7} parent=0 // loop_footer
    %s14 = sadd.s32 1, %s10
  $region7: #{sen_forward.7} parent=0 // loop_footer_branch
    %9 = sbr.rel target = $region3
  $region8: #{sen_forward.7} parent=0 // loop_exit
    _

// kernel: sen_forward.6
$region0: #{sen_forward.6}
  #allocation0 [shape = 'u32[]', space=smem, size = 0x4, offset = 0x4, fixed_abs, tag = 'smem constant byte address 0x4 - core index']
  #allocation1 [shape = 'u32[72,128]{1,0:T(1,128)}', space=vmem, size = 0x9000, scoped, tag = 'internal scratch']
  %s0 = inlined_call_operand.vmem [shape: f32[4,2,9,9,3], index: 0, kind: input, shape index: {}]
  %s1 = inlined_call_operand.vmem [shape: f32[3,3,3,128], index: 1, kind: input, shape index: {}]
  %s2 = inlined_call_operand.vmem [shape: f32[1,128], index: 2, kind: input, shape index: {}]
  %s3 = inlined_call_operand.vmem [shape: f32[1,128], index: 3, kind: input, shape index: {}]
  %s4 = inlined_call_operand.vmem [shape: bf16[2,8,8,128], index: 4, kind: output, shape index: {}]
  %s5 = sld [smem:[#allocation0]]
  $region87: #{sen_forward.6} parent=0
    _
  %s7 = ssub.s32 1, %s5
  %s8 = scalar_select 0, %s7, %s5
  $region1: #{sen_forward.6} parent=0
    #allocation2 [shape = 'u8[589824]{0}', space=vmem, size = 0x90000, scoped, tag = 'input window, operand 0']
    loop: start=0, step=1, limit=4
    $region2: #{sen_forward.6} parent=1 // loop_pre_header
      _
    $region3: #{sen_forward.6} parent=1 // loop_header
      %s10 = sphi 0, %s14
      %p11 = scmp.ge.s32.totalorder %s10, 4
      %s20 = sphi 0, %s22
      %s23 = sphi 0, %s20
      %s24 = sphi 0, %s23
      %s40 = sphi 0, %s24
      %s44 = sphi 0, %s44
      %s46 = sphi 0, %s44
      %s47 = sphi 0, %s46
      %s61 = sphi 0, %s47
      %s65 = sphi 0, %s65
      %s67 = sphi 0, %s65
      %s68 = sphi 0, %s67
      %s82 = sphi 0, %s68
      %s86 = sphi 0, %s86
      %s88 = sphi 0, %s86
      %s89 = sphi 0, %s88
      %s103 = sphi 0, %s89
      %s109 = sphi 0, %s111
      %s112 = sphi 0, %s109
      %s113 = sphi 0, %s112
      %s129 = sphi 0, %s113
    $region4: #{sen_forward.6} parent=1 // loop_header_branch
      %13 = sbr.rel (%p11) target = $region8
    $region5: #{sen_forward.6} parent=1 // loop_body
      %s15 = ssub.s32 %s10, 1
      %s16 = ssub.s32 %s10, 2
      %s17 = sadd.s32 %s10, 1
      %s18 = ssub.s32 %s10, %s17
      %p19 = scmp.eq.s32.totalorder %s18, 0
      %s21 = sadd.s32 %s20, 1
      %s22 = scalar_select %p19, %s20, %s21
      %p25 = pneg %p19
      %p26 = scmp.eq.s32.totalorder %s10, 1
      %p27 = por %p25, %p26
      %p28 = scmp.ne.s32.totalorder %s20, %s23
      %p29 = scmp.eq.s32.totalorder %s10, 0
      %p30 = por %p28, %p29
      %p31 = scmp.ne.s32.totalorder %s20, %s23
      %p32 = scmp.eq.s32.totalorder %s15, 1
      %p33 = por %p31, %p32
      %p34 = scmp.ne.s32.totalorder %s23, %s24
      %p35 = scmp.eq.s32.totalorder %s15, 0
      %p36 = por %p34, %p35
      %p37 = scmp.ne.s32.totalorder %s23, %s24
      %p38 = scmp.eq.s32.totalorder %s16, 1
      %p39 = por %p37, %p38
      %p41 = scmp.ne.s32.totalorder %s24, %s40
      %p42 = scmp.eq.s32.totalorder %s16, 0
      %p43 = por %p41, %p42
      %s45 = sadd.s32 %s44, 1
      %p48 = scmp.eq.s32.totalorder %s10, 1
      %p49 = scmp.ne.s32.totalorder %s44, %s46
      %p50 = scmp.eq.s32.totalorder %s10, 0
      %p51 = por %p49, %p50
      %p52 = scmp.ne.s32.totalorder %s44, %s46
      %p53 = scmp.eq.s32.totalorder %s15, 1
      %p54 = por %p52, %p53
      %p55 = scmp.ne.s32.totalorder %s46, %s47
      %p56 = scmp.eq.s32.totalorder %s15, 0
      %p57 = por %p55, %p56
      %p58 = scmp.ne.s32.totalorder %s46, %s47
      %p59 = scmp.eq.s32.totalorder %s16, 1
      %p60 = por %p58, %p59
      %p62 = scmp.ne.s32.totalorder %s47, %s61
      %p63 = scmp.eq.s32.totalorder %s16, 0
      %p64 = por %p62, %p63
      %s66 = sadd.s32 %s65, 1
      %p69 = scmp.eq.s32.totalorder %s10, 1
      %p70 = scmp.ne.s32.totalorder %s65, %s67
      %p71 = scmp.eq.s32.totalorder %s10, 0
      %p72 = por %p70, %p71
      %p73 = scmp.ne.s32.totalorder %s65, %s67
      %p74 = scmp.eq.s32.totalorder %s15, 1
      %p75 = por %p73, %p74
      %p76 = scmp.ne.s32.totalorder %s67, %s68
      %p77 = scmp.eq.s32.totalorder %s15, 0
      %p78 = por %p76, %p77
      %p79 = scmp.ne.s32.totalorder %s67, %s68
      %p80 = scmp.eq.s32.totalorder %s16, 1
      %p81 = por %p79, %p80
      %p83 = scmp.ne.s32.totalorder %s68, %s82
      %p84 = scmp.eq.s32.totalorder %s16, 0
      %p85 = por %p83, %p84
      %s87 = sadd.s32 %s86, 1
      %p90 = scmp.eq.s32.totalorder %s10, 1
      %p91 = scmp.ne.s32.totalorder %s86, %s88
      %p92 = scmp.eq.s32.totalorder %s10, 0
      %p93 = por %p91, %p92
      %p94 = scmp.ne.s32.totalorder %s86, %s88
      %p95 = scmp.eq.s32.totalorder %s15, 1
      %p96 = por %p94, %p95
      %p97 = scmp.ne.s32.totalorder %s88, %s89
      %p98 = scmp.eq.s32.totalorder %s15, 0
      %p99 = por %p97, %p98
      %p100 = scmp.ne.s32.totalorder %s88, %s89
      %p101 = scmp.eq.s32.totalorder %s16, 1
      %p102 = por %p100, %p101
      %p104 = scmp.ne.s32.totalorder %s89, %s103
      %p105 = scmp.eq.s32.totalorder %s16, 0
      %p106 = por %p104, %p105
      %s107 = ssub.s32 %s10, %s17
      %p108 = scmp.eq.s32.totalorder %s107, 0
      %s110 = sadd.s32 %s109, 1
      %s111 = scalar_select %p108, %s109, %s110
      %p114 = pneg %p108
      %p115 = scmp.eq.s32.totalorder %s10, 1
      %p116 = por %p114, %p115
      %p117 = scmp.ne.s32.totalorder %s109, %s112
      %p118 = scmp.eq.s32.totalorder %s10, 0
      %p119 = por %p117, %p118
      %p120 = scmp.ne.s32.totalorder %s109, %s112
      %p121 = scmp.eq.s32.totalorder %s15, 1
      %p122 = por %p120, %p121
      %p123 = scmp.ne.s32.totalorder %s112, %s113
      %p124 = scmp.eq.s32.totalorder %s15, 0
      %p125 = por %p123, %p124
      %p126 = scmp.ne.s32.totalorder %s112, %s113
      %p127 = scmp.eq.s32.totalorder %s16, 1
      %p128 = por %p126, %p127
      %p130 = scmp.ne.s32.totalorder %s113, %s129
      %p131 = scmp.eq.s32.totalorder %s16, 0
      %p132 = por %p130, %p131
      %p133 = scmp.le.s32.totalorder 1, %s10
      %p134 = scmp.lt.s32.totalorder %s10, 3
      %p135 = pnand %p133, %p134
      %p136 = pneg %p135
      // Predicated region
      $region9: #{sen_forward.6} parent=5 // pred_check
        _
      $region10: #{sen_forward.6} parent=5 // pred_check_branch
        %138 = sbr.rel (%p135) target = $region12
      $region11: #{sen_forward.6} parent=5 // pred_region
        %s139 = ssub.s32 %s10, 1
        // Predicated region
        $region13: #{sen_forward.6} parent=11 // pred_check
          %p140 = pneg %p57
        $region14: #{sen_forward.6} parent=11 // pred_check_branch
          %142 = sbr.rel (%p140) target = $region16
        $region15: #{sen_forward.6} parent=11 // pred_region
          _
        $region16: #{sen_forward.6} parent=11 // pred_fallthru
          _
        // Predicated region
        $region17: #{sen_forward.6} parent=11 // pred_check
          %p143 = pneg %p78
        $region18: #{sen_forward.6} parent=11 // pred_check_branch
          %145 = sbr.rel (%p143) target = $region20
        $region19: #{sen_forward.6} parent=11 // pred_region
          _
        $region20: #{sen_forward.6} parent=11 // pred_fallthru
          _
        // Predicated region
        $region21: #{sen_forward.6} parent=11 // pred_check
          %p146 = pneg %p99
        $region22: #{sen_forward.6} parent=11 // pred_check_branch
          %148 = sbr.rel (%p146) target = $region24
        $region23: #{sen_forward.6} parent=11 // pred_region
          _
        $region24: #{sen_forward.6} parent=11 // pred_fallthru
          _
      $region12: #{sen_forward.6} parent=5 // pred_fallthru
        _
      %p149 = scmp.lt.s32.totalorder %s10, 2
      // Predicated region
      $region25: #{sen_forward.6} parent=5 // pred_check
        %p150 = pneg %p149
      $region26: #{sen_forward.6} parent=5 // pred_check_branch
        %152 = sbr.rel (%p150) target = $region28
      $region27: #{sen_forward.6} parent=5 // pred_region
        // Predicated region
        $region29: #{sen_forward.6} parent=27 // pred_check
          %p153 = pneg %p30
        $region30: #{sen_forward.6} parent=27 // pred_check_branch
          %155 = sbr.rel (%p153) target = $region32
        $region31: #{sen_forward.6} parent=27 // pred_region
          %s156 = sand.u32 %s20, 1
          %s157 = sand.u32 %s20, 1
          %s158 = smul.addr %s157, 576
          %s159 = scalar_lea.vmem [#allocation2], %s158
          %s160 = smul.addr %s10, 18
          %s161 = smul.addr %s160, 8
          %s162 = scalar_lea.vmem %s0, %s161
          // Predicated region
          $region33: #{sen_forward.6} parent=31 // pred_check
            _
          $region34: #{sen_forward.6} parent=31 // pred_check_branch
            %164 = sbr.rel (0) target = $region36
          $region35: #{sen_forward.6} parent=31 // pred_region
            // Predicated region
            $region37: #{sen_forward.6} parent=35 // pred_check
              _
            $region38: #{sen_forward.6} parent=35 // pred_check_branch
              %166 = sbr.rel (0) target = $region40
            $region39: #{sen_forward.6} parent=35 // pred_region
              // Predicated region
              $region52: #{sen_forward.6} parent=39 // pred_check
                _
              $region53: #{sen_forward.6} parent=39 // pred_check_branch
                %324 = sbr.rel (0) target = $region55
              $region54: #{sen_forward.6} parent=39 // pred_region
                loop: start=0, step=1, limit=1
                $region56: #{sen_forward.6} parent=54 // loop_pre_header
                  _
                $region57: #{sen_forward.6} parent=54 // loop_header
                  %s326 = sphi 0, %s330
                  %p327 = scmp.ge.s32.totalorder %s326, 1
                  %s331 = sphi %s162, %s162
                  %s332 = sphi %s159, %s159
                $region58: #{sen_forward.6} parent=54 // loop_header_branch
                  %329 = sbr.rel (%p327) target = $region62
                $region59: #{sen_forward.6} parent=54 // loop_body
                  %v333 = vld [vmem:[%s331] sm:$0xff]
                  %334 = vst [vmem:[%s332] sm:$0xff] %v333
                  %v335 = vld [vmem:[%s331 + $0x8] sm:$0xff]
                  %336 = vst [vmem:[%s332 + $0x8] sm:$0xff] %v335
                  %v337 = vld [vmem:[%s331 + $0x10] sm:$0xff]
                  %338 = vst [vmem:[%s332 + $0x10] sm:$0xff] %v337
                  %v339 = vld [vmem:[%s331 + $0x18] sm:$0xff]
                  %340 = vst [vmem:[%s332 + $0x18] sm:$0xff] %v339
                  %v341 = vld [vmem:[%s331 + $0x20] sm:$0xff]
                  %342 = vst [vmem:[%s332 + $0x20] sm:$0xff] %v341
                  %v343 = vld [vmem:[%s331 + $0x28] sm:$0xff]
                  %344 = vst [vmem:[%s332 + $0x28] sm:$0xff] %v343
                  %v345 = vld [vmem:[%s331 + $0x30] sm:$0xff]
                  %346 = vst [vmem:[%s332 + $0x30] sm:$0xff] %v345
                  %v347 = vld [vmem:[%s331 + $0x38] sm:$0xff]
                  %348 = vst [vmem:[%s332 + $0x38] sm:$0xff] %v347
                  %v349 = vld [vmem:[%s331 + $0x40] sm:$0xff]
                  %350 = vst [vmem:[%s332 + $0x40] sm:$0xff] %v349
                  %v351 = vld [vmem:[%s331 + $0x48] sm:$0xff]
                  %352 = vst [vmem:[%s332 + $0x48] sm:$0xff] %v351
                  %v353 = vld [vmem:[%s331 + $0x50] sm:$0xff]
                  %354 = vst [vmem:[%s332 + $0x50] sm:$0xff] %v353
                  %v355 = vld [vmem:[%s331 + $0x58] sm:$0xff]
                  %356 = vst [vmem:[%s332 + $0x58] sm:$0xff] %v355
                  %v357 = vld [vmem:[%s331 + $0x60] sm:$0xff]
                  %358 = vst [vmem:[%s332 + $0x60] sm:$0xff] %v357
                  %v359 = vld [vmem:[%s331 + $0x68] sm:$0xff]
                  %360 = vst [vmem:[%s332 + $0x68] sm:$0xff] %v359
                  %v361 = vld [vmem:[%s331 + $0x70] sm:$0xff]
                  %362 = vst [vmem:[%s332 + $0x70] sm:$0xff] %v361
                  %v363 = vld [vmem:[%s331 + $0x78] sm:$0xff]
                  %364 = vst [vmem:[%s332 + $0x78] sm:$0xff] %v363
                  %v365 = vld [vmem:[%s331 + $0x80] sm:$0xff]
                  %366 = vst [vmem:[%s332 + $0x80] sm:$0xff] %v365
                  %v367 = vld [vmem:[%s331 + $0x88] sm:$0xff]
                  %368 = vst [vmem:[%s332 + $0x88] sm:$0xff] %v367
                  %v369 = vld [vmem:[%s331 + $0x120] sm:$0xff]
                  %370 = vst [vmem:[%s332 + $0x90] sm:$0xff] %v369
                  %v371 = vld [vmem:[%s331 + $0x128] sm:$0xff]
                  %372 = vst [vmem:[%s332 + $0x98] sm:$0xff] %v371
                  %v373 = vld [vmem:[%s331 + $0x130] sm:$0xff]
                  %374 = vst [vmem:[%s332 + $0xa0] sm:$0xff] %v373
                  %v375 = vld [vmem:[%s331 + $0x138] sm:$0xff]
                  %376 = vst [vmem:[%s332 + $0xa8] sm:$0xff] %v375
                  %v377 = vld [vmem:[%s331 + $0x140] sm:$0xff]
                  %378 = vst [vmem:[%s332 + $0xb0] sm:$0xff] %v377
                  %v379 = vld [vmem:[%s331 + $0x148] sm:$0xff]
                  %380 = vst [vmem:[%s332 + $0xb8] sm:$0xff] %v379
                  %v381 = vld [vmem:[%s331 + $0x150] sm:$0xff]
                  %382 = vst [vmem:[%s332 + $0xc0] sm:$0xff] %v381
                  %v383 = vld [vmem:[%s331 + $0x158] sm:$0xff]
                  %384 = vst [vmem:[%s332 + $0xc8] sm:$0xff] %v383
                  %v385 = vld [vmem:[%s331 + $0x160] sm:$0xff]
                  %386 = vst [vmem:[%s332 + $0xd0] sm:$0xff] %v385
                  %v387 = vld [vmem:[%s331 + $0x168] sm:$0xff]
                  %388 = vst [vmem:[%s332 + $0xd8] sm:$0xff] %v387
                  %v389 = vld [vmem:[%s331 + $0x170] sm:$0xff]
                  %390 = vst [vmem:[%s332 + $0xe0] sm:$0xff] %v389
                  %v391 = vld [vmem:[%s331 + $0x178] sm:$0xff]
                  %392 = vst [vmem:[%s332 + $0xe8] sm:$0xff] %v391
                  %v393 = vld [vmem:[%s331 + $0x180] sm:$0xff]
                  %394 = vst [vmem:[%s332 + $0xf0] sm:$0xff] %v393
                  %v395 = vld [vmem:[%s331 + $0x188] sm:$0xff]
                  %396 = vst [vmem:[%s332 + $0xf8] sm:$0xff] %v395
                  %v397 = vld [vmem:[%s331 + $0x190] sm:$0xff]
                  %398 = vst [vmem:[%s332 + $0x100] sm:$0xff] %v397
                  %v399 = vld [vmem:[%s331 + $0x198] sm:$0xff]
                  %400 = vst [vmem:[%s332 + $0x108] sm:$0xff] %v399
                  %v401 = vld [vmem:[%s331 + $0x1a0] sm:$0xff]
                  %402 = vst [vmem:[%s332 + $0x110] sm:$0xff] %v401
                  %v403 = vld [vmem:[%s331 + $0x1a8] sm:$0xff]
                  %404 = vst [vmem:[%s332 + $0x118] sm:$0xff] %v403
                  %v405 = vld [vmem:[%s331 + $0x240] sm:$0xff]
                  %406 = vst [vmem:[%s332 + $0x120] sm:$0xff] %v405
                  %v407 = vld [vmem:[%s331 + $0x248] sm:$0xff]
                  %408 = vst [vmem:[%s332 + $0x128] sm:$0xff] %v407
                  %v409 = vld [vmem:[%s331 + $0x250] sm:$0xff]
                  %410 = vst [vmem:[%s332 + $0x130] sm:$0xff] %v409
                  %v411 = vld [vmem:[%s331 + $0x258] sm:$0xff]
                  %412 = vst [vmem:[%s332 + $0x138] sm:$0xff] %v411
                  %v413 = vld [vmem:[%s331 + $0x260] sm:$0xff]
                  %414 = vst [vmem:[%s332 + $0x140] sm:$0xff] %v413
                  %v415 = vld [vmem:[%s331 + $0x268] sm:$0xff]
                  %416 = vst [vmem:[%s332 + $0x148] sm:$0xff] %v415
                  %v417 = vld [vmem:[%s331 + $0x270] sm:$0xff]
                  %418 = vst [vmem:[%s332 + $0x150] sm:$0xff] %v417
                  %v419 = vld [vmem:[%s331 + $0x278] sm:$0xff]
                  %420 = vst [vmem:[%s332 + $0x158] sm:$0xff] %v419
                  %v421 = vld [vmem:[%s331 + $0x280] sm:$0xff]
                  %422 = vst [vmem:[%s332 + $0x160] sm:$0xff] %v421
                  %v423 = vld [vmem:[%s331 + $0x288] sm:$0xff]
                  %424 = vst [vmem:[%s332 + $0x168] sm:$0xff] %v423
                  %v425 = vld [vmem:[%s331 + $0x290] sm:$0xff]
                  %426 = vst [vmem:[%s332 + $0x170] sm:$0xff] %v425
                  %v427 = vld [vmem:[%s331 + $0x298] sm:$0xff]
                  %428 = vst [vmem:[%s332 + $0x178] sm:$0xff] %v427
                  %v429 = vld [vmem:[%s331 + $0x2a0] sm:$0xff]
                  %430 = vst [vmem:[%s332 + $0x180] sm:$0xff] %v429
                  %v431 = vld [vmem:[%s331 + $0x2a8] sm:$0xff]
                  %432 = vst [vmem:[%s332 + $0x188] sm:$0xff] %v431
                  %v433 = vld [vmem:[%s331 + $0x2b0] sm:$0xff]
                  %434 = vst [vmem:[%s332 + $0x190] sm:$0xff] %v433
                  %v435 = vld [vmem:[%s331 + $0x2b8] sm:$0xff]
                  %436 = vst [vmem:[%s332 + $0x198] sm:$0xff] %v435
                  %v437 = vld [vmem:[%s331 + $0x2c0] sm:$0xff]
                  %438 = vst [vmem:[%s332 + $0x1a0] sm:$0xff] %v437
                  %v439 = vld [vmem:[%s331 + $0x2c8] sm:$0xff]
                  %440 = vst [vmem:[%s332 + $0x1a8] sm:$0xff] %v439
                  %v441 = vld [vmem:[%s331 + $0x360] sm:$0xff]
                  %442 = vst [vmem:[%s332 + $0x1b0] sm:$0xff] %v441
                  %v443 = vld [vmem:[%s331 + $0x368] sm:$0xff]
                  %444 = vst [vmem:[%s332 + $0x1b8] sm:$0xff] %v443
                  %v445 = vld [vmem:[%s331 + $0x370] sm:$0xff]
                  %446 = vst [vmem:[%s332 + $0x1c0] sm:$0xff] %v445
                  %v447 = vld [vmem:[%s331 + $0x378] sm:$0xff]
                  %448 = vst [vmem:[%s332 + $0x1c8] sm:$0xff] %v447
                  %v449 = vld [vmem:[%s331 + $0x380] sm:$0xff]
                  %450 = vst [vmem:[%s332 + $0x1d0] sm:$0xff] %v449
                  %v451 = vld [vmem:[%s331 + $0x388] sm:$0xff]
                  %452 = vst [vmem:[%s332 + $0x1d8] sm:$0xff] %v451
                  %v453 = vld [vmem:[%s331 + $0x390] sm:$0xff]
                  %454 = vst [vmem:[%s332 + $0x1e0] sm:$0xff] %v453
                  %v455 = vld [vmem:[%s331 + $0x398] sm:$0xff]
                  %456 = vst [vmem:[%s332 + $0x1e8] sm:$0xff] %v455
                  %v457 = vld [vmem:[%s331 + $0x3a0] sm:$0xff]
                  %458 = vst [vmem:[%s332 + $0x1f0] sm:$0xff] %v457
                  %v459 = vld [vmem:[%s331 + $0x3a8] sm:$0xff]
                  %460 = vst [vmem:[%s332 + $0x1f8] sm:$0xff] %v459
                  %v461 = vld [vmem:[%s331 + $0x3b0] sm:$0xff]
                  %462 = vst [vmem:[%s332 + $0x200] sm:$0xff] %v461
                  %v463 = vld [vmem:[%s331 + $0x3b8] sm:$0xff]
                  %464 = vst [vmem:[%s332 + $0x208] sm:$0xff] %v463
                  %v465 = vld [vmem:[%s331 + $0x3c0] sm:$0xff]
                  %466 = vst [vmem:[%s332 + $0x210] sm:$0xff] %v465
                  %v467 = vld [vmem:[%s331 + $0x3c8] sm:$0xff]
                  %468 = vst [vmem:[%s332 + $0x218] sm:$0xff] %v467
                  %v469 = vld [vmem:[%s331 + $0x3d0] sm:$0xff]
                  %470 = vst [vmem:[%s332 + $0x220] sm:$0xff] %v469
                  %v471 = vld [vmem:[%s331 + $0x3d8] sm:$0xff]
                  %472 = vst [vmem:[%s332 + $0x228] sm:$0xff] %v471
                  %v473 = vld [vmem:[%s331 + $0x3e0] sm:$0xff]
                  %474 = vst [vmem:[%s332 + $0x230] sm:$0xff] %v473
                  %v475 = vld [vmem:[%s331 + $0x3e8] sm:$0xff]
                  %476 = vst [vmem:[%s332 + $0x238] sm:$0xff] %v475
                $region60: #{sen_forward.6} parent=54 // loop_footer
                  %s330 = sadd.s32 1, %s326
                $region61: #{sen_forward.6} parent=54 // loop_footer_branch
                  %325 = sbr.rel target = $region57
                $region62: #{sen_forward.6} parent=54 // loop_exit
                  _
              $region55: #{sen_forward.6} parent=39 // pred_fallthru
                _
              // Predicated region
              $region63: #{sen_forward.6} parent=39 // pred_check
                _
              $region64: #{sen_forward.6} parent=39 // pred_check_branch
                %478 = sbr.rel target = $region66
              $region65: #{sen_forward.6} parent=39 // pred_region
                _
              $region66: #{sen_forward.6} parent=39 // pred_fallthru
                _
            $region40: #{sen_forward.6} parent=35 // pred_fallthru
              _
            // Predicated region
            $region41: #{sen_forward.6} parent=35 // pred_check
              _
            $region42: #{sen_forward.6} parent=35 // pred_check_branch
              %168 = sbr.rel target = $region44
            $region43: #{sen_forward.6} parent=35 // pred_region
              %s170 = ssub.s32 256, 1
              loop: start=0, step=1, limit=1
              $region45: #{sen_forward.6} parent=43 // loop_pre_header
                _
              $region46: #{sen_forward.6} parent=43 // loop_header
                %s172 = sphi 0, %s176
                %p173 = scmp.ge.s32.totalorder %s172, 1
                %s177 = sphi %s162, %s162
                %s178 = sphi %s159, %s159
              $region47: #{sen_forward.6} parent=43 // loop_header_branch
                %175 = sbr.rel (%p173) target = $region51
              $region48: #{sen_forward.6} parent=43 // loop_body
                %v179 = vld [vmem:[%s177] sm:%s170]
                %180 = vst [vmem:[%s178] sm:%s170] %v179
                %v181 = vld [vmem:[%s177 + $0x8] sm:%s170]
                %182 = vst [vmem:[%s178 + $0x8] sm:%s170] %v181
                %v183 = vld [vmem:[%s177 + $0x10] sm:%s170]
                %184 = vst [vmem:[%s178 + $0x10] sm:%s170] %v183
                %v185 = vld [vmem:[%s177 + $0x18] sm:%s170]
                %186 = vst [vmem:[%s178 + $0x18] sm:%s170] %v185
                %v187 = vld [vmem:[%s177 + $0x20] sm:%s170]
                %188 = vst [vmem:[%s178 + $0x20] sm:%s170] %v187
                %v189 = vld [vmem:[%s177 + $0x28] sm:%s170]
                %190 = vst [vmem:[%s178 + $0x28] sm:%s170] %v189
                %v191 = vld [vmem:[%s177 + $0x30] sm:%s170]
                %192 = vst [vmem:[%s178 + $0x30] sm:%s170] %v191
                %v193 = vld [vmem:[%s177 + $0x38] sm:%s170]
                %194 = vst [vmem:[%s178 + $0x38] sm:%s170] %v193
                %v195 = vld [vmem:[%s177 + $0x40] sm:%s170]
                %196 = vst [vmem:[%s178 + $0x40] sm:%s170] %v195
                %v197 = vld [vmem:[%s177 + $0x48] sm:%s170]
                %198 = vst [vmem:[%s178 + $0x48] sm:%s170] %v197
                %v199 = vld [vmem:[%s177 + $0x50] sm:%s170]
                %200 = vst [vmem:[%s178 + $0x50] sm:%s170] %v199
                %v201 = vld [vmem:[%s177 + $0x58] sm:%s170]
                %202 = vst [vmem:[%s178 + $0x58] sm:%s170] %v201
                %v203 = vld [vmem:[%s177 + $0x60] sm:%s170]
                %204 = vst [vmem:[%s178 + $0x60] sm:%s170] %v203
                %v205 = vld [vmem:[%s177 + $0x68] sm:%s170]
                %206 = vst [vmem:[%s178 + $0x68] sm:%s170] %v205
                %v207 = vld [vmem:[%s177 + $0x70] sm:%s170]
                %208 = vst [vmem:[%s178 + $0x70] sm:%s170] %v207
                %v209 = vld [vmem:[%s177 + $0x78] sm:%s170]
                %210 = vst [vmem:[%s178 + $0x78] sm:%s170] %v209
                %v211 = vld [vmem:[%s177 + $0x80] sm:%s170]
                %212 = vst [vmem:[%s178 + $0x80] sm:%s170] %v211
                %v213 = vld [vmem:[%s177 + $0x88] sm:%s170]
                %214 = vst [vmem:[%s178 + $0x88] sm:%s170] %v213
                %v215 = vld [vmem:[%s177 + $0x120] sm:%s170]
                %216 = vst [vmem:[%s178 + $0x90] sm:%s170] %v215
                %v217 = vld [vmem:[%s177 + $0x128] sm:%s170]
                %218 = vst [vmem:[%s178 + $0x98] sm:%s170] %v217
                %v219 = vld [vmem:[%s177 + $0x130] sm:%s170]
                %220 = vst [vmem:[%s178 + $0xa0] sm:%s170] %v219
                %v221 = vld [vmem:[%s177 + $0x138] sm:%s170]
                %222 = vst [vmem:[%s178 + $0xa8] sm:%s170] %v221
                %v223 = vld [vmem:[%s177 + $0x140] sm:%s170]
                %224 = vst [vmem:[%s178 + $0xb0] sm:%s170] %v223
                %v225 = vld [vmem:[%s177 + $0x148] sm:%s170]
                %226 = vst [vmem:[%s178 + $0xb8] sm:%s170] %v225
                %v227 = vld [vmem:[%s177 + $0x150] sm:%s170]
                %228 = vst [vmem:[%s178 + $0xc0] sm:%s170] %v227
                %v229 = vld [vmem:[%s177 + $0x158] sm:%s170]
                %230 = vst [vmem:[%s178 + $0xc8] sm:%s170] %v229
                %v231 = vld [vmem:[%s177 + $0x160] sm:%s170]
                %232 = vst [vmem:[%s178 + $0xd0] sm:%s170] %v231
                %v233 = vld [vmem:[%s177 + $0x168] sm:%s170]
                %234 = vst [vmem:[%s178 + $0xd8] sm:%s170] %v233
                %v235 = vld [vmem:[%s177 + $0x170] sm:%s170]
                %236 = vst [vmem:[%s178 + $0xe0] sm:%s170] %v235
                %v237 = vld [vmem:[%s177 + $0x178] sm:%s170]
                %238 = vst [vmem:[%s178 + $0xe8] sm:%s170] %v237
                %v239 = vld [vmem:[%s177 + $0x180] sm:%s170]
                %240 = vst [vmem:[%s178 + $0xf0] sm:%s170] %v239
                %v241 = vld [vmem:[%s177 + $0x188] sm:%s170]
                %242 = vst [vmem:[%s178 + $0xf8] sm:%s170] %v241
                %v243 = vld [vmem:[%s177 + $0x190] sm:%s170]
                %244 = vst [vmem:[%s178 + $0x100] sm:%s170] %v243
                %v245 = vld [vmem:[%s177 + $0x198] sm:%s170]
                %246 = vst [vmem:[%s178 + $0x108] sm:%s170] %v245
                %v247 = vld [vmem:[%s177 + $0x1a0] sm:%s170]
                %248 = vst [vmem:[%s178 + $0x110] sm:%s170] %v247
                %v249 = vld [vmem:[%s177 + $0x1a8] sm:%s170]
                %250 = vst [vmem:[%s178 + $0x118] sm:%s170] %v249
                %v251 = vld [vmem:[%s177 + $0x240] sm:%s170]
                %252 = vst [vmem:[%s178 + $0x120] sm:%s170] %v251
                %v253 = vld [vmem:[%s177 + $0x248] sm:%s170]
                %254 = vst [vmem:[%s178 + $0x128] sm:%s170] %v253
                %v255 = vld [vmem:[%s177 + $0x250] sm:%s170]
                %256 = vst [vmem:[%s178 + $0x130] sm:%s170] %v255
                %v257 = vld [vmem:[%s177 + $0x258] sm:%s170]
                %258 = vst [vmem:[%s178 + $0x138] sm:%s170] %v257
                %v259 = vld [vmem:[%s177 + $0x260] sm:%s170]
                %260 = vst [vmem:[%s178 + $0x140] sm:%s170] %v259
                %v261 = vld [vmem:[%s177 + $0x268] sm:%s170]
                %262 = vst [vmem:[%s178 + $0x148] sm:%s170] %v261
                %v263 = vld [vmem:[%s177 + $0x270] sm:%s170]
                %264 = vst [vmem:[%s178 + $0x150] sm:%s170] %v263
                %v265 = vld [vmem:[%s177 + $0x278] sm:%s170]
                %266 = vst [vmem:[%s178 + $0x158] sm:%s170] %v265
                %v267 = vld [vmem:[%s177 + $0x280] sm:%s170]
                %268 = vst [vmem:[%s178 + $0x160] sm:%s170] %v267
                %v269 = vld [vmem:[%s177 + $0x288] sm:%s170]
                %270 = vst [vmem:[%s178 + $0x168] sm:%s170] %v269
                %v271 = vld [vmem:[%s177 + $0x290] sm:%s170]
                %272 = vst [vmem:[%s178 + $0x170] sm:%s170] %v271
                %v273 = vld [vmem:[%s177 + $0x298] sm:%s170]
                %274 = vst [vmem:[%s178 + $0x178] sm:%s170] %v273
                %v275 = vld [vmem:[%s177 + $0x2a0] sm:%s170]
                %276 = vst [vmem:[%s178 + $0x180] sm:%s170] %v275
                %v277 = vld [vmem:[%s177 + $0x2a8] sm:%s170]
                %278 = vst [vmem:[%s178 + $0x188] sm:%s170] %v277
                %v279 = vld [vmem:[%s177 + $0x2b0] sm:%s170]
                %280 = vst [vmem:[%s178 + $0x190] sm:%s170] %v279
                %v281 = vld [vmem:[%s177 + $0x2b8] sm:%s170]
                %282 = vst [vmem:[%s178 + $0x198] sm:%s170] %v281
                %v283 = vld [vmem:[%s177 + $0x2c0] sm:%s170]
                %284 = vst [vmem:[%s178 + $0x1a0] sm:%s170] %v283
                %v285 = vld [vmem:[%s177 + $0x2c8] sm:%s170]
                %286 = vst [vmem:[%s178 + $0x1a8] sm:%s170] %v285
                %v287 = vld [vmem:[%s177 + $0x360] sm:%s170]
                %288 = vst [vmem:[%s178 + $0x1b0] sm:%s170] %v287
                %v289 = vld [vmem:[%s177 + $0x368] sm:%s170]
                %290 = vst [vmem:[%s178 + $0x1b8] sm:%s170] %v289
                %v291 = vld [vmem:[%s177 + $0x370] sm:%s170]
                %292 = vst [vmem:[%s178 + $0x1c0] sm:%s170] %v291
                %v293 = vld [vmem:[%s177 + $0x378] sm:%s170]
                %294 = vst [vmem:[%s178 + $0x1c8] sm:%s170] %v293
                %v295 = vld [vmem:[%s177 + $0x380] sm:%s170]
                %296 = vst [vmem:[%s178 + $0x1d0] sm:%s170] %v295
                %v297 = vld [vmem:[%s177 + $0x388] sm:%s170]
                %298 = vst [vmem:[%s178 + $0x1d8] sm:%s170] %v297
                %v299 = vld [vmem:[%s177 + $0x390] sm:%s170]
                %300 = vst [vmem:[%s178 + $0x1e0] sm:%s170] %v299
                %v301 = vld [vmem:[%s177 + $0x398] sm:%s170]
                %302 = vst [vmem:[%s178 + $0x1e8] sm:%s170] %v301
                %v303 = vld [vmem:[%s177 + $0x3a0] sm:%s170]
                %304 = vst [vmem:[%s178 + $0x1f0] sm:%s170] %v303
                %v305 = vld [vmem:[%s177 + $0x3a8] sm:%s170]
                %306 = vst [vmem:[%s178 + $0x1f8] sm:%s170] %v305
                %v307 = vld [vmem:[%s177 + $0x3b0] sm:%s170]
                %308 = vst [vmem:[%s178 + $0x200] sm:%s170] %v307
                %v309 = vld [vmem:[%s177 + $0x3b8] sm:%s170]
                %310 = vst [vmem:[%s178 + $0x208] sm:%s170] %v309
                %v311 = vld [vmem:[%s177 + $0x3c0] sm:%s170]
                %312 = vst [vmem:[%s178 + $0x210] sm:%s170] %v311
                %v313 = vld [vmem:[%s177 + $0x3c8] sm:%s170]
                %314 = vst [vmem:[%s178 + $0x218] sm:%s170] %v313
                %v315 = vld [vmem:[%s177 + $0x3d0] sm:%s170]
                %316 = vst [vmem:[%s178 + $0x220] sm:%s170] %v315
                %v317 = vld [vmem:[%s177 + $0x3d8] sm:%s170]
                %318 = vst [vmem:[%s178 + $0x228] sm:%s170] %v317
                %v319 = vld [vmem:[%s177 + $0x3e0] sm:%s170]
                %320 = vst [vmem:[%s178 + $0x230] sm:%s170] %v319
                %v321 = vld [vmem:[%s177 + $0x3e8] sm:%s170]
                %322 = vst [vmem:[%s178 + $0x238] sm:%s170] %v321
              $region49: #{sen_forward.6} parent=43 // loop_footer
                %s176 = sadd.s32 1, %s172
              $region50: #{sen_forward.6} parent=43 // loop_footer_branch
                %171 = sbr.rel target = $region46
              $region51: #{sen_forward.6} parent=43 // loop_exit
                _
            $region44: #{sen_forward.6} parent=35 // pred_fallthru
              _
          $region36: #{sen_forward.6} parent=31 // pred_fallthru
            _
          %479 = vnop
        $region32: #{sen_forward.6} parent=27 // pred_fallthru
          _
      $region28: #{sen_forward.6} parent=5 // pred_fallthru
        _
      %p480 = scmp.le.s32.totalorder 1, %s10
      %p481 = scmp.lt.s32.totalorder %s10, 3
      %p482 = pnand %p480, %p481
      %p483 = pneg %p482
      // Predicated region
      $region67: #{sen_forward.6} parent=5 // pred_check
        _
      $region68: #{sen_forward.6} parent=5 // pred_check_branch
        %485 = sbr.rel (%p482) target = $region70
      $region69: #{sen_forward.6} parent=5 // pred_region
        %s486 = ssub.s32 %s10, 1
        %s487 = sand.u32 %s23, 1
        %s488 = sand.u32 %s23, 1
        %s489 = smul.addr %s488, 576
        %s490 = scalar_lea.vmem [#allocation2], %s489
        // Predicated region
        $region71: #{sen_forward.6} parent=69 // pred_check
          %p491 = pneg %p36
        $region72: #{sen_forward.6} parent=69 // pred_check_branch
          %493 = sbr.rel (%p491) target = $region74
        $region73: #{sen_forward.6} parent=69 // pred_region
          _
        $region74: #{sen_forward.6} parent=69 // pred_fallthru
          _
        %s494 = sand.u32 %s23, 1
        %s495 = sand.u32 %s23, 1
        %s496 = smul.addr %s495, 576
        %s497 = scalar_lea.vmem [#allocation2], %s496
        %p498 = pneg %p36
        %p499 = pneg %p33
        %p500 = pneg %p57
        %p501 = pneg %p54
        %p502 = pneg %p78
        %p503 = pneg %p75
        %p504 = pneg %p99
        %p505 = pneg %p96
        %p506 = pneg %p125
        %p507 = pneg %p122
        %p508 = scmp.lt.s32.totalorder %s15, 1
        %s509 = scalar_select %p508, %s15, 1
        %s510 = smul.addr %s509, 8
        %s511 = smul.addr %s510, 4
        %s512 = scalar_lea.vmem %s4, %s511
        %p513 = scmp.lt.s32.totalorder %s15, 1
        %s514 = scalar_select %p513, %s15, 1
        %s515 = smul.addr %s514, 8
        %s516 = smul.addr %s515, 4
        %s517 = scalar_lea.vmem %s4, %s516
        %v518 = vld [vmem:[%s490] sm:$0xff]
        %v519 = vld [vmem:[%s490 + $0x10] sm:$0xff]
        %v520 = vld [vmem:[%s490 + $0x20] sm:$0xff]
        %v521 = vld [vmem:[%s490 + $0x30] sm:$0xff]
        %v522 = vld [vmem:[%s490 + $0x40] sm:$0xff]
        %v523 = vld [vmem:[%s490 + $0x50] sm:$0xff]
        %v524 = vld [vmem:[%s490 + $0x60] sm:$0xff]
        %v525 = vld [vmem:[%s490 + $0x70] sm:$0xff]
        %v526 = vld [vmem:[%s1] sm:$0x1]
        %528 = vset.pattern.permute.xlu0 0
        %529 = vperm.xlu0 %528, %v518
        %v530 = vpop.permute.xlu0 %529
        %533 = vset.pattern.permute.xlu0 0
        %534 = vperm.xlu0 %533, %v519
        %v535 = vpop.permute.xlu0 %534
        %538 = vset.pattern.permute.xlu0 0
        %539 = vperm.xlu0 %538, %v520
        %v540 = vpop.permute.xlu0 %539
        %543 = vset.pattern.permute.xlu0 0
        %544 = vperm.xlu0 %543, %v521
        %v545 = vpop.permute.xlu0 %544
        %548 = vset.pattern.permute.xlu0 0
        %549 = vperm.xlu0 %548, %v522
        %v550 = vpop.permute.xlu0 %549
        %553 = vset.pattern.permute.xlu0 0
        %554 = vperm.xlu0 %553, %v523
        %v555 = vpop.permute.xlu0 %554
        %558 = vset.pattern.permute.xlu0 0
        %559 = vperm.xlu0 %558, %v524
        %v560 = vpop.permute.xlu0 %559
        %563 = vset.pattern.permute.xlu0 0
        %564 = vperm.xlu0 %563, %v525
        %v565 = vpop.permute.xlu0 %564
        %v567 = vperm.slane %v526, 0
        %v568 = vmul.f32 %v530, %v567
        %v569 = vmul.f32 %v535, %v567
        %v570 = vmul.f32 %v540, %v567
        %v571 = vmul.f32 %v545, %v567
        %v572 = vmul.f32 %v550, %v567
        %v573 = vmul.f32 %v555, %v567
        %v574 = vmul.f32 %v560, %v567
        %v575 = vmul.f32 %v565, %v567
        %v576 = vadd.f32 %v568, 0.0
        %v577 = vadd.f32 %v569, 0.0
        %v578 = vadd.f32 %v570, 0.0
        %v579 = vadd.f32 %v571, 0.0
        %v580 = vadd.f32 %v572, 0.0
        %v581 = vadd.f32 %v573, 0.0
        %v582 = vadd.f32 %v574, 0.0
        %v583 = vadd.f32 %v575, 0.0
        %v584 = vld [vmem:[%s1 + $0x1] sm:$0x1]
        %585 = vset.pattern.permute.xlu0 1
        %586 = vperm.xlu0 %585, %v518
        %v587 = vpop.permute.xlu0 %586
        %589 = vset.pattern.permute.xlu0 1
        %590 = vperm.xlu0 %589, %v519
        %v591 = vpop.permute.xlu0 %590
        %593 = vset.pattern.permute.xlu0 1
        %594 = vperm.xlu0 %593, %v520
        %v595 = vpop.permute.xlu0 %594
        %597 = vset.pattern.permute.xlu0 1
        %598 = vperm.xlu0 %597, %v521
        %v599 = vpop.permute.xlu0 %598
        %601 = vset.pattern.permute.xlu0 1
        %602 = vperm.xlu0 %601, %v522
        %v603 = vpop.permute.xlu0 %602
        %605 = vset.pattern.permute.xlu0 1
        %606 = vperm.xlu0 %605, %v523
        %v607 = vpop.permute.xlu0 %606
        %609 = vset.pattern.permute.xlu0 1
        %610 = vperm.xlu0 %609, %v524
        %v611 = vpop.permute.xlu0 %610
        %613 = vset.pattern.permute.xlu0 1
        %614 = vperm.xlu0 %613, %v525
        %v615 = vpop.permute.xlu0 %614
        %v617 = vperm.slane %v584, 0
        %v618 = vmul.f32 %v587, %v617
        %v619 = vmul.f32 %v591, %v617
        %v620 = vmul.f32 %v595, %v617
        %v621 = vmul.f32 %v599, %v617
        %v622 = vmul.f32 %v603, %v617
        %v623 = vmul.f32 %v607, %v617
        %v624 = vmul.f32 %v611, %v617
        %v625 = vmul.f32 %v615, %v617
        %v626 = vadd.f32 %v576, %v618
        %v627 = vadd.f32 %v577, %v619
        %v628 = vadd.f32 %v578, %v620
        %v629 = vadd.f32 %v579, %v621
        %v630 = vadd.f32 %v580, %v622
        %v631 = vadd.f32 %v581, %v623
        %v632 = vadd.f32 %v582, %v624
        %v633 = vadd.f32 %v583, %v625
        %v634 = vld [vmem:[%s1 + $0x2] sm:$0x1]
        %635 = vset.pattern.permute.xlu0 2
        %636 = vperm.xlu0 %635, %v518
        %v637 = vpop.permute.xlu0 %636
        %639 = vset.pattern.permute.xlu0 2
        %640 = vperm.xlu0 %639, %v519
        %v641 = vpop.permute.xlu0 %640
        %643 = vset.pattern.permute.xlu0 2
        %644 = vperm.xlu0 %643, %v520
        %v645 = vpop.permute.xlu0 %644
        %647 = vset.pattern.permute.xlu0 2
        %648 = vperm.xlu0 %647, %v521
        %v649 = vpop.permute.xlu0 %648
        %651 = vset.pattern.permute.xlu0 2
        %652 = vperm.xlu0 %651, %v522
        %v653 = vpop.permute.xlu0 %652
        %655 = vset.pattern.permute.xlu0 2
        %656 = vperm.xlu0 %655, %v523
        %v657 = vpop.permute.xlu0 %656
        %659 = vset.pattern.permute.xlu0 2
        %660 = vperm.xlu0 %659, %v524
        %v661 = vpop.permute.xlu0 %660
        %663 = vset.pattern.permute.xlu0 2
        %664 = vperm.xlu0 %663, %v525
        %v665 = vpop.permute.xlu0 %664
        %v667 = vperm.slane %v634, 0
        %v668 = vmul.f32 %v637, %v667
        %v669 = vmul.f32 %v641, %v667
        %v670 = vmul.f32 %v645, %v667
        %v671 = vmul.f32 %v649, %v667
        %v672 = vmul.f32 %v653, %v667
        %v673 = vmul.f32 %v657, %v667
        %v674 = vmul.f32 %v661, %v667
        %v675 = vmul.f32 %v665, %v667
        %v676 = vadd.f32 %v626, %v668
        %v677 = vadd.f32 %v627, %v669
        %v678 = vadd.f32 %v628, %v670
        %v679 = vadd.f32 %v629, %v671
        %v680 = vadd.f32 %v630, %v672
        %v681 = vadd.f32 %v631, %v673
        %v682 = vadd.f32 %v632, %v674
        %v683 = vadd.f32 %v633, %v675
        %s684 = scalar_lea.vmem %s490, 144 [#allocation2]
        %v685 = vld [vmem:[%s684] sm:$0xff]
        %v686 = vld [vmem:[%s684 + $0x10] sm:$0xff]
        %v687 = vld [vmem:[%s684 + $0x20] sm:$0xff]
        %v688 = vld [vmem:[%s684 + $0x30] sm:$0xff]
        %v689 = vld [vmem:[%s684 + $0x40] sm:$0xff]
        %v690 = vld [vmem:[%s684 + $0x50] sm:$0xff]
        %v691 = vld [vmem:[%s684 + $0x60] sm:$0xff]
        %v692 = vld [vmem:[%s684 + $0x70] sm:$0xff]
        %s693 = scalar_lea.vmem %s1, 4
        %v694 = vld [vmem:[%s693] sm:$0x1]
        %696 = vset.pattern.permute.xlu0 0
        %697 = vperm.xlu0 %696, %v685
        %v698 = vpop.permute.xlu0 %697
        %701 = vset.pattern.permute.xlu0 0
        %702 = vperm.xlu0 %701, %v686
        %v703 = vpop.permute.xlu0 %702
        %706 = vset.pattern.permute.xlu0 0
        %707 = vperm.xlu0 %706, %v687
        %v708 = vpop.permute.xlu0 %707
        %711 = vset.pattern.permute.xlu0 0
        %712 = vperm.xlu0 %711, %v688
        %v713 = vpop.permute.xlu0 %712
        %716 = vset.pattern.permute.xlu0 0
        %717 = vperm.xlu0 %716, %v689
        %v718 = vpop.permute.xlu0 %717
        %721 = vset.pattern.permute.xlu0 0
        %722 = vperm.xlu0 %721, %v690
        %v723 = vpop.permute.xlu0 %722
        %726 = vset.pattern.permute.xlu0 0
        %727 = vperm.xlu0 %726, %v691
        %v728 = vpop.permute.xlu0 %727
        %731 = vset.pattern.permute.xlu0 0
        %732 = vperm.xlu0 %731, %v692
        %v733 = vpop.permute.xlu0 %732
        %v735 = vperm.slane %v694, 0
        %v736 = vmul.f32 %v698, %v735
        %v737 = vmul.f32 %v703, %v735
        %v738 = vmul.f32 %v708, %v735
        %v739 = vmul.f32 %v713, %v735
        %v740 = vmul.f32 %v718, %v735
        %v741 = vmul.f32 %v723, %v735
        %v742 = vmul.f32 %v728, %v735
        %v743 = vmul.f32 %v733, %v735
        %v744 = vadd.f32 %v676, %v736
        %v745 = vadd.f32 %v677, %v737
        %v746 = vadd.f32 %v678, %v738
        %v747 = vadd.f32 %v679, %v739
        %v748 = vadd.f32 %v680, %v740
        %v749 = vadd.f32 %v681, %v741
        %v750 = vadd.f32 %v682, %v742
        %v751 = vadd.f32 %v683, %v743
        %v752 = vld [vmem:[%s693 + $0x1] sm:$0x1]
        %753 = vset.pattern.permute.xlu0 1
        %754 = vperm.xlu0 %753, %v685
        %v755 = vpop.permute.xlu0 %754
        %757 = vset.pattern.permute.xlu0 1
        %758 = vperm.xlu0 %757, %v686
        %v759 = vpop.permute.xlu0 %758
        %761 = vset.pattern.permute.xlu0 1
        %762 = vperm.xlu0 %761, %v687
        %v763 = vpop.permute.xlu0 %762
        %765 = vset.pattern.permute.xlu0 1
        %766 = vperm.xlu0 %765, %v688
        %v767 = vpop.permute.xlu0 %766
        %769 = vset.pattern.permute.xlu0 1
        %770 = vperm.xlu0 %769, %v689
        %v771 = vpop.permute.xlu0 %770
        %773 = vset.pattern.permute.xlu0 1
        %774 = vperm.xlu0 %773, %v690
        %v775 = vpop.permute.xlu0 %774
        %777 = vset.pattern.permute.xlu0 1
        %778 = vperm.xlu0 %777, %v691
        %v779 = vpop.permute.xlu0 %778
        %781 = vset.pattern.permute.xlu0 1
        %782 = vperm.xlu0 %781, %v692
        %v783 = vpop.permute.xlu0 %782
        %v785 = vperm.slane %v752, 0
        %v786 = vmul.f32 %v755, %v785
        %v787 = vmul.f32 %v759, %v785
        %v788 = vmul.f32 %v763, %v785
        %v789 = vmul.f32 %v767, %v785
        %v790 = vmul.f32 %v771, %v785
        %v791 = vmul.f32 %v775, %v785
        %v792 = vmul.f32 %v779, %v785
        %v793 = vmul.f32 %v783, %v785
        %v794 = vadd.f32 %v744, %v786
        %v795 = vadd.f32 %v745, %v787
        %v796 = vadd.f32 %v746, %v788
        %v797 = vadd.f32 %v747, %v789
        %v798 = vadd.f32 %v748, %v790
        %v799 = vadd.f32 %v749, %v791
        %v800 = vadd.f32 %v750, %v792
        %v801 = vadd.f32 %v751, %v793
        %v802 = vld [vmem:[%s693 + $0x2] sm:$0x1]
        %803 = vset.pattern.permute.xlu0 2
        %804 = vperm.xlu0 %803, %v685
        %v805 = vpop.permute.xlu0 %804
        %807 = vset.pattern.permute.xlu0 2
        %808 = vperm.xlu0 %807, %v686
        %v809 = vpop.permute.xlu0 %808
        %811 = vset.pattern.permute.xlu0 2
        %812 = vperm.xlu0 %811, %v687
        %v813 = vpop.permute.xlu0 %812
        %815 = vset.pattern.permute.xlu0 2
        %816 = vperm.xlu0 %815, %v688
        %v817 = vpop.permute.xlu0 %816
        %819 = vset.pattern.permute.xlu0 2
        %820 = vperm.xlu0 %819, %v689
        %v821 = vpop.permute.xlu0 %820
        %823 = vset.pattern.permute.xlu0 2
        %824 = vperm.xlu0 %823, %v690
        %v825 = vpop.permute.xlu0 %824
        %827 = vset.pattern.permute.xlu0 2
        %828 = vperm.xlu0 %827, %v691
        %v829 = vpop.permute.xlu0 %828
        %831 = vset.pattern.permute.xlu0 2
        %832 = vperm.xlu0 %831, %v692
        %v833 = vpop.permute.xlu0 %832
        %v835 = vperm.slane %v802, 0
        %v836 = vmul.f32 %v805, %v835
        %v837 = vmul.f32 %v809, %v835
        %v838 = vmul.f32 %v813, %v835
        %v839 = vmul.f32 %v817, %v835
        %v840 = vmul.f32 %v821, %v835
        %v841 = vmul.f32 %v825, %v835
        %v842 = vmul.f32 %v829, %v835
        %v843 = vmul.f32 %v833, %v835
        %v844 = vadd.f32 %v794, %v836
        %v845 = vadd.f32 %v795, %v837
        %v846 = vadd.f32 %v796, %v838
        %v847 = vadd.f32 %v797, %v839
        %v848 = vadd.f32 %v798, %v840
        %v849 = vadd.f32 %v799, %v841
        %v850 = vadd.f32 %v800, %v842
        %v851 = vadd.f32 %v801, %v843
        %v852 = vld [vmem:[%s490 + $0x1] sm:$0xff]
        %v853 = vld [vmem:[%s490 + $0x11] sm:$0xff]
        %v854 = vld [vmem:[%s490 + $0x21] sm:$0xff]
        %v855 = vld [vmem:[%s490 + $0x31] sm:$0xff]
        %v856 = vld [vmem:[%s490 + $0x41] sm:$0xff]
        %v857 = vld [vmem:[%s490 + $0x51] sm:$0xff]
        %v858 = vld [vmem:[%s490 + $0x61] sm:$0xff]
        %v859 = vld [vmem:[%s490 + $0x71] sm:$0xff]
        %s860 = scalar_lea.vmem %s1, 8
        %v861 = vld [vmem:[%s860] sm:$0x1]
        %863 = vset.pattern.permute.xlu0 0
        %864 = vperm.xlu0 %863, %v852
        %v865 = vpop.permute.xlu0 %864
        %868 = vset.pattern.permute.xlu0 0
        %869 = vperm.xlu0 %868, %v853
        %v870 = vpop.permute.xlu0 %869
        %873 = vset.pattern.permute.xlu0 0
        %874 = vperm.xlu0 %873, %v854
        %v875 = vpop.permute.xlu0 %874
        %878 = vset.pattern.permute.xlu0 0
        %879 = vperm.xlu0 %878, %v855
        %v880 = vpop.permute.xlu0 %879
        %883 = vset.pattern.permute.xlu0 0
        %884 = vperm.xlu0 %883, %v856
        %v885 = vpop.permute.xlu0 %884
        %888 = vset.pattern.permute.xlu0 0
        %889 = vperm.xlu0 %888, %v857
        %v890 = vpop.permute.xlu0 %889
        %893 = vset.pattern.permute.xlu0 0
        %894 = vperm.xlu0 %893, %v858
        %v895 = vpop.permute.xlu0 %894
        %898 = vset.pattern.permute.xlu0 0
        %899 = vperm.xlu0 %898, %v859
        %v900 = vpop.permute.xlu0 %899
        %v902 = vperm.slane %v861, 0
        %v903 = vmul.f32 %v865, %v902
        %v904 = vmul.f32 %v870, %v902
        %v905 = vmul.f32 %v875, %v902
        %v906 = vmul.f32 %v880, %v902
        %v907 = vmul.f32 %v885, %v902
        %v908 = vmul.f32 %v890, %v902
        %v909 = vmul.f32 %v895, %v902
        %v910 = vmul.f32 %v900, %v902
        %v911 = vadd.f32 %v844, %v903
        %v912 = vadd.f32 %v845, %v904
        %v913 = vadd.f32 %v846, %v905
        %v914 = vadd.f32 %v847, %v906
        %v915 = vadd.f32 %v848, %v907
        %v916 = vadd.f32 %v849, %v908
        %v917 = vadd.f32 %v850, %v909
        %v918 = vadd.f32 %v851, %v910
        %v919 = vld [vmem:[%s860 + $0x1] sm:$0x1]
        %920 = vset.pattern.permute.xlu0 1
        %921 = vperm.xlu0 %920, %v852
        %v922 = vpop.permute.xlu0 %921
        %924 = vset.pattern.permute.xlu0 1
        %925 = vperm.xlu0 %924, %v853
        %v926 = vpop.permute.xlu0 %925
        %928 = vset.pattern.permute.xlu0 1
        %929 = vperm.xlu0 %928, %v854
        %v930 = vpop.permute.xlu0 %929
        %932 = vset.pattern.permute.xlu0 1
        %933 = vperm.xlu0 %932, %v855
        %v934 = vpop.permute.xlu0 %933
        %936 = vset.pattern.permute.xlu0 1
        %937 = vperm.xlu0 %936, %v856
        %v938 = vpop.permute.xlu0 %937
        %940 = vset.pattern.permute.xlu0 1
        %941 = vperm.xlu0 %940, %v857
        %v942 = vpop.permute.xlu0 %941
        %944 = vset.pattern.permute.xlu0 1
        %945 = vperm.xlu0 %944, %v858
        %v946 = vpop.permute.xlu0 %945
        %948 = vset.pattern.permute.xlu0 1
        %949 = vperm.xlu0 %948, %v859
        %v950 = vpop.permute.xlu0 %949
        %v952 = vperm.slane %v919, 0
        %v953 = vmul.f32 %v922, %v952
        %v954 = vmul.f32 %v926, %v952
        %v955 = vmul.f32 %v930, %v952
        %v956 = vmul.f32 %v934, %v952
        %v957 = vmul.f32 %v938, %v952
        %v958 = vmul.f32 %v942, %v952
        %v959 = vmul.f32 %v946, %v952
        %v960 = vmul.f32 %v950, %v952
        %v961 = vadd.f32 %v911, %v953
        %v962 = vadd.f32 %v912, %v954
        %v963 = vadd.f32 %v913, %v955
        %v964 = vadd.f32 %v914, %v956
        %v965 = vadd.f32 %v915, %v957
        %v966 = vadd.f32 %v916, %v958
        %v967 = vadd.f32 %v917, %v959
        %v968 = vadd.f32 %v918, %v960
        %v969 = vld [vmem:[%s860 + $0x2] sm:$0x1]
        %970 = vset.pattern.permute.xlu0 2
        %971 = vperm.xlu0 %970, %v852
        %v972 = vpop.permute.xlu0 %971
        %974 = vset.pattern.permute.xlu0 2
        %975 = vperm.xlu0 %974, %v853
        %v976 = vpop.permute.xlu0 %975
        %978 = vset.pattern.permute.xlu0 2
        %979 = vperm.xlu0 %978, %v854
        %v980 = vpop.permute.xlu0 %979
        %982 = vset.pattern.permute.xlu0 2
        %983 = vperm.xlu0 %982, %v855
        %v984 = vpop.permute.xlu0 %983
        %986 = vset.pattern.permute.xlu0 2
        %987 = vperm.xlu0 %986, %v856
        %v988 = vpop.permute.xlu0 %987
        %990 = vset.pattern.permute.xlu0 2
        %991 = vperm.xlu0 %990, %v857
        %v992 = vpop.permute.xlu0 %991
        %994 = vset.pattern.permute.xlu0 2
        %995 = vperm.xlu0 %994, %v858
        %v996 = vpop.permute.xlu0 %995
        %998 = vset.pattern.permute.xlu0 2
        %999 = vperm.xlu0 %998, %v859
        %v1000 = vpop.permute.xlu0 %999
        %v1002 = vperm.slane %v969, 0
        %v1003 = vmul.f32 %v972, %v1002
        %v1004 = vmul.f32 %v976, %v1002
        %v1005 = vmul.f32 %v980, %v1002
        %v1006 = vmul.f32 %v984, %v1002
        %v1007 = vmul.f32 %v988, %v1002
        %v1008 = vmul.f32 %v992, %v1002
        %v1009 = vmul.f32 %v996, %v1002
        %v1010 = vmul.f32 %v1000, %v1002
        %v1011 = vadd.f32 %v961, %v1003
        %v1012 = vadd.f32 %v962, %v1004
        %v1013 = vadd.f32 %v963, %v1005
        %v1014 = vadd.f32 %v964, %v1006
        %v1015 = vadd.f32 %v965, %v1007
        %v1016 = vadd.f32 %v966, %v1008
        %v1017 = vadd.f32 %v967, %v1009
        %v1018 = vadd.f32 %v968, %v1010
        %s1019 = scalar_lea.vmem %s490, 288 [#allocation2]
        %v1020 = vld [vmem:[%s1019] sm:$0xff]
        %v1021 = vld [vmem:[%s1019 + $0x10] sm:$0xff]
        %v1022 = vld [vmem:[%s1019 + $0x20] sm:$0xff]
        %v1023 = vld [vmem:[%s1019 + $0x30] sm:$0xff]
        %v1024 = vld [vmem:[%s1019 + $0x40] sm:$0xff]
        %v1025 = vld [vmem:[%s1019 + $0x50] sm:$0xff]
        %v1026 = vld [vmem:[%s1019 + $0x60] sm:$0xff]
        %v1027 = vld [vmem:[%s1019 + $0x70] sm:$0xff]
        %s1028 = scalar_lea.vmem %s1, 12
        %v1029 = vld [vmem:[%s1028] sm:$0x1]
        %1031 = vset.pattern.permute.xlu0 0
        %1032 = vperm.xlu0 %1031, %v1020
        %v1033 = vpop.permute.xlu0 %1032
        %1036 = vset.pattern.permute.xlu0 0
        %1037 = vperm.xlu0 %1036, %v1021
        %v1038 = vpop.permute.xlu0 %1037
        %1041 = vset.pattern.permute.xlu0 0
        %1042 = vperm.xlu0 %1041, %v1022
        %v1043 = vpop.permute.xlu0 %1042
        %1046 = vset.pattern.permute.xlu0 0
        %1047 = vperm.xlu0 %1046, %v1023
        %v1048 = vpop.permute.xlu0 %1047
        %1051 = vset.pattern.permute.xlu0 0
        %1052 = vperm.xlu0 %1051, %v1024
        %v1053 = vpop.permute.xlu0 %1052
        %1056 = vset.pattern.permute.xlu0 0
        %1057 = vperm.xlu0 %1056, %v1025
        %v1058 = vpop.permute.xlu0 %1057
        %1061 = vset.pattern.permute.xlu0 0
        %1062 = vperm.xlu0 %1061, %v1026
        %v1063 = vpop.permute.xlu0 %1062
        %1066 = vset.pattern.permute.xlu0 0
        %1067 = vperm.xlu0 %1066, %v1027
        %v1068 = vpop.permute.xlu0 %1067
        %v1070 = vperm.slane %v1029, 0
        %v1071 = vmul.f32 %v1033, %v1070
        %v1072 = vmul.f32 %v1038, %v1070
        %v1073 = vmul.f32 %v1043, %v1070
        %v1074 = vmul.f32 %v1048, %v1070
        %v1075 = vmul.f32 %v1053, %v1070
        %v1076 = vmul.f32 %v1058, %v1070
        %v1077 = vmul.f32 %v1063, %v1070
        %v1078 = vmul.f32 %v1068, %v1070
        %v1079 = vadd.f32 %v1011, %v1071
        %v1080 = vadd.f32 %v1012, %v1072
        %v1081 = vadd.f32 %v1013, %v1073
        %v1082 = vadd.f32 %v1014, %v1074
        %v1083 = vadd.f32 %v1015, %v1075
        %v1084 = vadd.f32 %v1016, %v1076
        %v1085 = vadd.f32 %v1017, %v1077
        %v1086 = vadd.f32 %v1018, %v1078
        %v1087 = vld [vmem:[%s1028 + $0x1] sm:$0x1]
        %1088 = vset.pattern.permute.xlu0 1
        %1089 = vperm.xlu0 %1088, %v1020
        %v1090 = vpop.permute.xlu0 %1089
        %1092 = vset.pattern.permute.xlu0 1
        %1093 = vperm.xlu0 %1092, %v1021
        %v1094 = vpop.permute.xlu0 %1093
        %1096 = vset.pattern.permute.xlu0 1
        %1097 = vperm.xlu0 %1096, %v1022
        %v1098 = vpop.permute.xlu0 %1097
        %1100 = vset.pattern.permute.xlu0 1
        %1101 = vperm.xlu0 %1100, %v1023
        %v1102 = vpop.permute.xlu0 %1101
        %1104 = vset.pattern.permute.xlu0 1
        %1105 = vperm.xlu0 %1104, %v1024
        %v1106 = vpop.permute.xlu0 %1105
        %1108 = vset.pattern.permute.xlu0 1
        %1109 = vperm.xlu0 %1108, %v1025
        %v1110 = vpop.permute.xlu0 %1109
        %1112 = vset.pattern.permute.xlu0 1
        %1113 = vperm.xlu0 %1112, %v1026
        %v1114 = vpop.permute.xlu0 %1113
        %1116 = vset.pattern.permute.xlu0 1
        %1117 = vperm.xlu0 %1116, %v1027
        %v1118 = vpop.permute.xlu0 %1117
        %v1120 = vperm.slane %v1087, 0
        %v1121 = vmul.f32 %v1090, %v1120
        %v1122 = vmul.f32 %v1094, %v1120
        %v1123 = vmul.f32 %v1098, %v1120
        %v1124 = vmul.f32 %v1102, %v1120
        %v1125 = vmul.f32 %v1106, %v1120
        %v1126 = vmul.f32 %v1110, %v1120
        %v1127 = vmul.f32 %v1114, %v1120
        %v1128 = vmul.f32 %v1118, %v1120
        %v1129 = vadd.f32 %v1079, %v1121
        %v1130 = vadd.f32 %v1080, %v1122
        %v1131 = vadd.f32 %v1081, %v1123
        %v1132 = vadd.f32 %v1082, %v1124
        %v1133 = vadd.f32 %v1083, %v1125
        %v1134 = vadd.f32 %v1084, %v1126
        %v1135 = vadd.f32 %v1085, %v1127
        %v1136 = vadd.f32 %v1086, %v1128
        %v1137 = vld [vmem:[%s1028 + $0x2] sm:$0x1]
        %1138 = vset.pattern.permute.xlu0 2
        %1139 = vperm.xlu0 %1138, %v1020
        %v1140 = vpop.permute.xlu0 %1139
        %1142 = vset.pattern.permute.xlu0 2
        %1143 = vperm.xlu0 %1142, %v1021
        %v1144 = vpop.permute.xlu0 %1143
        %1146 = vset.pattern.permute.xlu0 2
        %1147 = vperm.xlu0 %1146, %v1022
        %v1148 = vpop.permute.xlu0 %1147
        %1150 = vset.pattern.permute.xlu0 2
        %1151 = vperm.xlu0 %1150, %v1023
        %v1152 = vpop.permute.xlu0 %1151
        %1154 = vset.pattern.permute.xlu0 2
        %1155 = vperm.xlu0 %1154, %v1024
        %v1156 = vpop.permute.xlu0 %1155
        %1158 = vset.pattern.permute.xlu0 2
        %1159 = vperm.xlu0 %1158, %v1025
        %v1160 = vpop.permute.xlu0 %1159
        %1162 = vset.pattern.permute.xlu0 2
        %1163 = vperm.xlu0 %1162, %v1026
        %v1164 = vpop.permute.xlu0 %1163
        %1166 = vset.pattern.permute.xlu0 2
        %1167 = vperm.xlu0 %1166, %v1027
        %v1168 = vpop.permute.xlu0 %1167
        %v1170 = vperm.slane %v1137, 0
        %v1171 = vmul.f32 %v1140, %v1170
        %v1172 = vmul.f32 %v1144, %v1170
        %v1173 = vmul.f32 %v1148, %v1170
        %v1174 = vmul.f32 %v1152, %v1170
        %v1175 = vmul.f32 %v1156, %v1170
        %v1176 = vmul.f32 %v1160, %v1170
        %v1177 = vmul.f32 %v1164, %v1170
        %v1178 = vmul.f32 %v1168, %v1170
        %v1179 = vadd.f32 %v1129, %v1171
        %v1180 = vadd.f32 %v1130, %v1172
        %v1181 = vadd.f32 %v1131, %v1173
        %v1182 = vadd.f32 %v1132, %v1174
        %v1183 = vadd.f32 %v1133, %v1175
        %v1184 = vadd.f32 %v1134, %v1176
        %v1185 = vadd.f32 %v1135, %v1177
        %v1186 = vadd.f32 %v1136, %v1178
        %s1187 = scalar_lea.vmem %s490, 432 [#allocation2]
        %v1188 = vld [vmem:[%s1187] sm:$0xff]
        %v1189 = vld [vmem:[%s1187 + $0x10] sm:$0xff]
        %v1190 = vld [vmem:[%s1187 + $0x20] sm:$0xff]
        %v1191 = vld [vmem:[%s1187 + $0x30] sm:$0xff]
        %v1192 = vld [vmem:[%s1187 + $0x40] sm:$0xff]
        %v1193 = vld [vmem:[%s1187 + $0x50] sm:$0xff]
        %v1194 = vld [vmem:[%s1187 + $0x60] sm:$0xff]
        %v1195 = vld [vmem:[%s1187 + $0x70] sm:$0xff]
        %s1196 = scalar_lea.vmem %s1, 16
        %v1197 = vld [vmem:[%s1196] sm:$0x1]
        %1199 = vset.pattern.permute.xlu0 0
        %1200 = vperm.xlu0 %1199, %v1188
        %v1201 = vpop.permute.xlu0 %1200
        %1204 = vset.pattern.permute.xlu0 0
        %1205 = vperm.xlu0 %1204, %v1189
        %v1206 = vpop.permute.xlu0 %1205
        %1209 = vset.pattern.permute.xlu0 0
        %1210 = vperm.xlu0 %1209, %v1190
        %v1211 = vpop.permute.xlu0 %1210
        %1214 = vset.pattern.permute.xlu0 0
        %1215 = vperm.xlu0 %1214, %v1191
        %v1216 = vpop.permute.xlu0 %1215
        %1219 = vset.pattern.permute.xlu0 0
        %1220 = vperm.xlu0 %1219, %v1192
        %v1221 = vpop.permute.xlu0 %1220
        %1224 = vset.pattern.permute.xlu0 0
        %1225 = vperm.xlu0 %1224, %v1193
        %v1226 = vpop.permute.xlu0 %1225
        %1229 = vset.pattern.permute.xlu0 0
        %1230 = vperm.xlu0 %1229, %v1194
        %v1231 = vpop.permute.xlu0 %1230
        %1234 = vset.pattern.permute.xlu0 0
        %1235 = vperm.xlu0 %1234, %v1195
        %v1236 = vpop.permute.xlu0 %1235
        %v1238 = vperm.slane %v1197, 0
        %v1239 = vmul.f32 %v1201, %v1238
        %v1240 = vmul.f32 %v1206, %v1238
        %v1241 = vmul.f32 %v1211, %v1238
        %v1242 = vmul.f32 %v1216, %v1238
        %v1243 = vmul.f32 %v1221, %v1238
        %v1244 = vmul.f32 %v1226, %v1238
        %v1245 = vmul.f32 %v1231, %v1238
        %v1246 = vmul.f32 %v1236, %v1238
        %v1247 = vadd.f32 %v1179, %v1239
        %v1248 = vadd.f32 %v1180, %v1240
        %v1249 = vadd.f32 %v1181, %v1241
        %v1250 = vadd.f32 %v1182, %v1242
        %v1251 = vadd.f32 %v1183, %v1243
        %v1252 = vadd.f32 %v1184, %v1244
        %v1253 = vadd.f32 %v1185, %v1245
        %v1254 = vadd.f32 %v1186, %v1246
        %v1255 = vld [vmem:[%s1196 + $0x1] sm:$0x1]
        %1256 = vset.pattern.permute.xlu0 1
        %1257 = vperm.xlu0 %1256, %v1188
        %v1258 = vpop.permute.xlu0 %1257
        %1260 = vset.pattern.permute.xlu0 1
        %1261 = vperm.xlu0 %1260, %v1189
        %v1262 = vpop.permute.xlu0 %1261
        %1264 = vset.pattern.permute.xlu0 1
        %1265 = vperm.xlu0 %1264, %v1190
        %v1266 = vpop.permute.xlu0 %1265
        %1268 = vset.pattern.permute.xlu0 1
        %1269 = vperm.xlu0 %1268, %v1191
        %v1270 = vpop.permute.xlu0 %1269
        %1272 = vset.pattern.permute.xlu0 1
        %1273 = vperm.xlu0 %1272, %v1192
        %v1274 = vpop.permute.xlu0 %1273
        %1276 = vset.pattern.permute.xlu0 1
        %1277 = vperm.xlu0 %1276, %v1193
        %v1278 = vpop.permute.xlu0 %1277
        %1280 = vset.pattern.permute.xlu0 1
        %1281 = vperm.xlu0 %1280, %v1194
        %v1282 = vpop.permute.xlu0 %1281
        %1284 = vset.pattern.permute.xlu0 1
        %1285 = vperm.xlu0 %1284, %v1195
        %v1286 = vpop.permute.xlu0 %1285
        %v1288 = vperm.slane %v1255, 0
        %v1289 = vmul.f32 %v1258, %v1288
        %v1290 = vmul.f32 %v1262, %v1288
        %v1291 = vmul.f32 %v1266, %v1288
        %v1292 = vmul.f32 %v1270, %v1288
        %v1293 = vmul.f32 %v1274, %v1288
        %v1294 = vmul.f32 %v1278, %v1288
        %v1295 = vmul.f32 %v1282, %v1288
        %v1296 = vmul.f32 %v1286, %v1288
        %v1297 = vadd.f32 %v1247, %v1289
        %v1298 = vadd.f32 %v1248, %v1290
        %v1299 = vadd.f32 %v1249, %v1291
        %v1300 = vadd.f32 %v1250, %v1292
        %v1301 = vadd.f32 %v1251, %v1293
        %v1302 = vadd.f32 %v1252, %v1294
        %v1303 = vadd.f32 %v1253, %v1295
        %v1304 = vadd.f32 %v1254, %v1296
        %v1305 = vld [vmem:[%s1196 + $0x2] sm:$0x1]
        %1306 = vset.pattern.permute.xlu0 2
        %1307 = vperm.xlu0 %1306, %v1188
        %v1308 = vpop.permute.xlu0 %1307
        %1310 = vset.pattern.permute.xlu0 2
        %1311 = vperm.xlu0 %1310, %v1189
        %v1312 = vpop.permute.xlu0 %1311
        %1314 = vset.pattern.permute.xlu0 2
        %1315 = vperm.xlu0 %1314, %v1190
        %v1316 = vpop.permute.xlu0 %1315
        %1318 = vset.pattern.permute.xlu0 2
        %1319 = vperm.xlu0 %1318, %v1191
        %v1320 = vpop.permute.xlu0 %1319
        %1322 = vset.pattern.permute.xlu0 2
        %1323 = vperm.xlu0 %1322, %v1192
        %v1324 = vpop.permute.xlu0 %1323
        %1326 = vset.pattern.permute.xlu0 2
        %1327 = vperm.xlu0 %1326, %v1193
        %v1328 = vpop.permute.xlu0 %1327
        %1330 = vset.pattern.permute.xlu0 2
        %1331 = vperm.xlu0 %1330, %v1194
        %v1332 = vpop.permute.xlu0 %1331
        %1334 = vset.pattern.permute.xlu0 2
        %1335 = vperm.xlu0 %1334, %v1195
        %v1336 = vpop.permute.xlu0 %1335
        %v1338 = vperm.slane %v1305, 0
        %v1339 = vmul.f32 %v1308, %v1338
        %v1340 = vmul.f32 %v1312, %v1338
        %v1341 = vmul.f32 %v1316, %v1338
        %v1342 = vmul.f32 %v1320, %v1338
        %v1343 = vmul.f32 %v1324, %v1338
        %v1344 = vmul.f32 %v1328, %v1338
        %v1345 = vmul.f32 %v1332, %v1338
        %v1346 = vmul.f32 %v1336, %v1338
        %v1347 = vadd.f32 %v1297, %v1339
        %v1348 = vadd.f32 %v1298, %v1340
        %v1349 = vadd.f32 %v1299, %v1341
        %v1350 = vadd.f32 %v1300, %v1342
        %v1351 = vadd.f32 %v1301, %v1343
        %v1352 = vadd.f32 %v1302, %v1344
        %v1353 = vadd.f32 %v1303, %v1345
        %v1354 = vadd.f32 %v1304, %v1346
        %v1355 = vld [vmem:[%s1019 + $0x1] sm:$0xff]
        %v1356 = vld [vmem:[%s1019 + $0x11] sm:$0xff]
        %v1357 = vld [vmem:[%s1019 + $0x21] sm:$0xff]
        %v1358 = vld [vmem:[%s1019 + $0x31] sm:$0xff]
        %v1359 = vld [vmem:[%s1019 + $0x41] sm:$0xff]
        %v1360 = vld [vmem:[%s1019 + $0x51] sm:$0xff]
        %v1361 = vld [vmem:[%s1019 + $0x61] sm:$0xff]
        %v1362 = vld [vmem:[%s1019 + $0x71] sm:$0xff]
        %s1363 = scalar_lea.vmem %s1, 20
        %v1364 = vld [vmem:[%s1363] sm:$0x1]
        %1366 = vset.pattern.permute.xlu0 0
        %1367 = vperm.xlu0 %1366, %v1355
        %v1368 = vpop.permute.xlu0 %1367
        %1371 = vset.pattern.permute.xlu0 0
        %1372 = vperm.xlu0 %1371, %v1356
        %v1373 = vpop.permute.xlu0 %1372
        %1376 = vset.pattern.permute.xlu0 0
        %1377 = vperm.xlu0 %1376, %v1357
        %v1378 = vpop.permute.xlu0 %1377
        %1381 = vset.pattern.permute.xlu0 0
        %1382 = vperm.xlu0 %1381, %v1358
        %v1383 = vpop.permute.xlu0 %1382
        %1386 = vset.pattern.permute.xlu0 0
        %1387 = vperm.xlu0 %1386, %v1359
        %v1388 = vpop.permute.xlu0 %1387
        %1391 = vset.pattern.permute.xlu0 0
        %1392 = vperm.xlu0 %1391, %v1360
        %v1393 = vpop.permute.xlu0 %1392
        %1396 = vset.pattern.permute.xlu0 0
        %1397 = vperm.xlu0 %1396, %v1361
        %v1398 = vpop.permute.xlu0 %1397
        %1401 = vset.pattern.permute.xlu0 0
        %1402 = vperm.xlu0 %1401, %v1362
        %v1403 = vpop.permute.xlu0 %1402
        %v1405 = vperm.slane %v1364, 0
        %v1406 = vmul.f32 %v1368, %v1405
        %v1407 = vmul.f32 %v1373, %v1405
        %v1408 = vmul.f32 %v1378, %v1405
        %v1409 = vmul.f32 %v1383, %v1405
        %v1410 = vmul.f32 %v1388, %v1405
        %v1411 = vmul.f32 %v1393, %v1405
        %v1412 = vmul.f32 %v1398, %v1405
        %v1413 = vmul.f32 %v1403, %v1405
        %v1414 = vadd.f32 %v1347, %v1406
        %v1415 = vadd.f32 %v1348, %v1407
        %v1416 = vadd.f32 %v1349, %v1408
        %v1417 = vadd.f32 %v1350, %v1409
        %v1418 = vadd.f32 %v1351, %v1410
        %v1419 = vadd.f32 %v1352, %v1411
        %v1420 = vadd.f32 %v1353, %v1412
        %v1421 = vadd.f32 %v1354, %v1413
        %v1422 = vld [vmem:[%s1363 + $0x1] sm:$0x1]
        %1423 = vset.pattern.permute.xlu0 1
        %1424 = vperm.xlu0 %1423, %v1355
        %v1425 = vpop.permute.xlu0 %1424
        %1427 = vset.pattern.permute.xlu0 1
        %1428 = vperm.xlu0 %1427, %v1356
        %v1429 = vpop.permute.xlu0 %1428
        %1431 = vset.pattern.permute.xlu0 1
        %1432 = vperm.xlu0 %1431, %v1357
        %v1433 = vpop.permute.xlu0 %1432
        %1435 = vset.pattern.permute.xlu0 1
        %1436 = vperm.xlu0 %1435, %v1358
        %v1437 = vpop.permute.xlu0 %1436
        %1439 = vset.pattern.permute.xlu0 1
        %1440 = vperm.xlu0 %1439, %v1359
        %v1441 = vpop.permute.xlu0 %1440
        %1443 = vset.pattern.permute.xlu0 1
        %1444 = vperm.xlu0 %1443, %v1360
        %v1445 = vpop.permute.xlu0 %1444
        %1447 = vset.pattern.permute.xlu0 1
        %1448 = vperm.xlu0 %1447, %v1361
        %v1449 = vpop.permute.xlu0 %1448
        %1451 = vset.pattern.permute.xlu0 1
        %1452 = vperm.xlu0 %1451, %v1362
        %v1453 = vpop.permute.xlu0 %1452
        %v1455 = vperm.slane %v1422, 0
        %v1456 = vmul.f32 %v1425, %v1455
        %v1457 = vmul.f32 %v1429, %v1455
        %v1458 = vmul.f32 %v1433, %v1455
        %v1459 = vmul.f32 %v1437, %v1455
        %v1460 = vmul.f32 %v1441, %v1455
        %v1461 = vmul.f32 %v1445, %v1455
        %v1462 = vmul.f32 %v1449, %v1455
        %v1463 = vmul.f32 %v1453, %v1455
        %v1464 = vadd.f32 %v1414, %v1456
        %v1465 = vadd.f32 %v1415, %v1457
        %v1466 = vadd.f32 %v1416, %v1458
        %v1467 = vadd.f32 %v1417, %v1459
        %v1468 = vadd.f32 %v1418, %v1460
        %v1469 = vadd.f32 %v1419, %v1461
        %v1470 = vadd.f32 %v1420, %v1462
        %v1471 = vadd.f32 %v1421, %v1463
        %v1472 = vld [vmem:[%s1363 + $0x2] sm:$0x1]
        %1473 = vset.pattern.permute.xlu0 2
        %1474 = vperm.xlu0 %1473, %v1355
        %v1475 = vpop.permute.xlu0 %1474
        %1477 = vset.pattern.permute.xlu0 2
        %1478 = vperm.xlu0 %1477, %v1356
        %v1479 = vpop.permute.xlu0 %1478
        %1481 = vset.pattern.permute.xlu0 2
        %1482 = vperm.xlu0 %1481, %v1357
        %v1483 = vpop.permute.xlu0 %1482
        %1485 = vset.pattern.permute.xlu0 2
        %1486 = vperm.xlu0 %1485, %v1358
        %v1487 = vpop.permute.xlu0 %1486
        %1489 = vset.pattern.permute.xlu0 2
        %1490 = vperm.xlu0 %1489, %v1359
        %v1491 = vpop.permute.xlu0 %1490
        %1493 = vset.pattern.permute.xlu0 2
        %1494 = vperm.xlu0 %1493, %v1360
        %v1495 = vpop.permute.xlu0 %1494
        %1497 = vset.pattern.permute.xlu0 2
        %1498 = vperm.xlu0 %1497, %v1361
        %v1499 = vpop.permute.xlu0 %1498
        %1501 = vset.pattern.permute.xlu0 2
        %1502 = vperm.xlu0 %1501, %v1362
        %v1503 = vpop.permute.xlu0 %1502
        %v1505 = vperm.slane %v1472, 0
        %v1506 = vmul.f32 %v1475, %v1505
        %v1507 = vmul.f32 %v1479, %v1505
        %v1508 = vmul.f32 %v1483, %v1505
        %v1509 = vmul.f32 %v1487, %v1505
        %v1510 = vmul.f32 %v1491, %v1505
        %v1511 = vmul.f32 %v1495, %v1505
        %v1512 = vmul.f32 %v1499, %v1505
        %v1513 = vmul.f32 %v1503, %v1505
        %v1514 = vadd.f32 %v1464, %v1506
        %v1515 = vadd.f32 %v1465, %v1507
        %v1516 = vadd.f32 %v1466, %v1508
        %v1517 = vadd.f32 %v1467, %v1509
        %v1518 = vadd.f32 %v1468, %v1510
        %v1519 = vadd.f32 %v1469, %v1511
        %v1520 = vadd.f32 %v1470, %v1512
        %v1521 = vadd.f32 %v1471, %v1513
        %s1522 = scalar_lea.vmem %s490, 16 [#allocation2]
        %v1523 = vld [vmem:[%s1522] sm:$0xff]
        %v1524 = vld [vmem:[%s1522 + $0x10] sm:$0xff]
        %v1525 = vld [vmem:[%s1522 + $0x20] sm:$0xff]
        %v1526 = vld [vmem:[%s1522 + $0x30] sm:$0xff]
        %v1527 = vld [vmem:[%s1522 + $0x40] sm:$0xff]
        %v1528 = vld [vmem:[%s1522 + $0x50] sm:$0xff]
        %v1529 = vld [vmem:[%s1522 + $0x60] sm:$0xff]
        %v1530 = vld [vmem:[%s1522 + $0x70] sm:$0xff]
        %s1531 = scalar_lea.vmem %s1, 24
        %v1532 = vld [vmem:[%s1531] sm:$0x1]
        %1534 = vset.pattern.permute.xlu0 0
        %1535 = vperm.xlu0 %1534, %v1523
        %v1536 = vpop.permute.xlu0 %1535
        %1539 = vset.pattern.permute.xlu0 0
        %1540 = vperm.xlu0 %1539, %v1524
        %v1541 = vpop.permute.xlu0 %1540
        %1544 = vset.pattern.permute.xlu0 0
        %1545 = vperm.xlu0 %1544, %v1525
        %v1546 = vpop.permute.xlu0 %1545
        %1549 = vset.pattern.permute.xlu0 0
        %1550 = vperm.xlu0 %1549, %v1526
        %v1551 = vpop.permute.xlu0 %1550
        %1554 = vset.pattern.permute.xlu0 0
        %1555 = vperm.xlu0 %1554, %v1527
        %v1556 = vpop.permute.xlu0 %1555
        %1559 = vset.pattern.permute.xlu0 0
        %1560 = vperm.xlu0 %1559, %v1528
        %v1561 = vpop.permute.xlu0 %1560
        %1564 = vset.pattern.permute.xlu0 0
        %1565 = vperm.xlu0 %1564, %v1529
        %v1566 = vpop.permute.xlu0 %1565
        %1569 = vset.pattern.permute.xlu0 0
        %1570 = vperm.xlu0 %1569, %v1530
        %v1571 = vpop.permute.xlu0 %1570
        %v1573 = vperm.slane %v1532, 0
        %v1574 = vmul.f32 %v1536, %v1573
        %v1575 = vmul.f32 %v1541, %v1573
        %v1576 = vmul.f32 %v1546, %v1573
        %v1577 = vmul.f32 %v1551, %v1573
        %v1578 = vmul.f32 %v1556, %v1573
        %v1579 = vmul.f32 %v1561, %v1573
        %v1580 = vmul.f32 %v1566, %v1573
        %v1581 = vmul.f32 %v1571, %v1573
        %v1582 = vadd.f32 %v1514, %v1574
        %v1583 = vadd.f32 %v1515, %v1575
        %v1584 = vadd.f32 %v1516, %v1576
        %v1585 = vadd.f32 %v1517, %v1577
        %v1586 = vadd.f32 %v1518, %v1578
        %v1587 = vadd.f32 %v1519, %v1579
        %v1588 = vadd.f32 %v1520, %v1580
        %v1589 = vadd.f32 %v1521, %v1581
        %v1590 = vld [vmem:[%s1531 + $0x1] sm:$0x1]
        %1591 = vset.pattern.permute.xlu0 1
        %1592 = vperm.xlu0 %1591, %v1523
        %v1593 = vpop.permute.xlu0 %1592
        %1595 = vset.pattern.permute.xlu0 1
        %1596 = vperm.xlu0 %1595, %v1524
        %v1597 = vpop.permute.xlu0 %1596
        %1599 = vset.pattern.permute.xlu0 1
        %1600 = vperm.xlu0 %1599, %v1525
        %v1601 = vpop.permute.xlu0 %1600
        %1603 = vset.pattern.permute.xlu0 1
        %1604 = vperm.xlu0 %1603, %v1526
        %v1605 = vpop.permute.xlu0 %1604
        %1607 = vset.pattern.permute.xlu0 1
        %1608 = vperm.xlu0 %1607, %v1527
        %v1609 = vpop.permute.xlu0 %1608
        %1611 = vset.pattern.permute.xlu0 1
        %1612 = vperm.xlu0 %1611, %v1528
        %v1613 = vpop.permute.xlu0 %1612
        %1615 = vset.pattern.permute.xlu0 1
        %1616 = vperm.xlu0 %1615, %v1529
        %v1617 = vpop.permute.xlu0 %1616
        %1619 = vset.pattern.permute.xlu0 1
        %1620 = vperm.xlu0 %1619, %v1530
        %v1621 = vpop.permute.xlu0 %1620
        %v1623 = vperm.slane %v1590, 0
        %v1624 = vmul.f32 %v1593, %v1623
        %v1625 = vmul.f32 %v1597, %v1623
        %v1626 = vmul.f32 %v1601, %v1623
        %v1627 = vmul.f32 %v1605, %v1623
        %v1628 = vmul.f32 %v1609, %v1623
        %v1629 = vmul.f32 %v1613, %v1623
        %v1630 = vmul.f32 %v1617, %v1623
        %v1631 = vmul.f32 %v1621, %v1623
        %v1632 = vadd.f32 %v1582, %v1624
        %v1633 = vadd.f32 %v1583, %v1625
        %v1634 = vadd.f32 %v1584, %v1626
        %v1635 = vadd.f32 %v1585, %v1627
        %v1636 = vadd.f32 %v1586, %v1628
        %v1637 = vadd.f32 %v1587, %v1629
        %v1638 = vadd.f32 %v1588, %v1630
        %v1639 = vadd.f32 %v1589, %v1631
        %v1640 = vld [vmem:[%s1531 + $0x2] sm:$0x1]
        %1641 = vset.pattern.permute.xlu0 2
        %1642 = vperm.xlu0 %1641, %v1523
        %v1643 = vpop.permute.xlu0 %1642
        %1645 = vset.pattern.permute.xlu0 2
        %1646 = vperm.xlu0 %1645, %v1524
        %v1647 = vpop.permute.xlu0 %1646
        %1649 = vset.pattern.permute.xlu0 2
        %1650 = vperm.xlu0 %1649, %v1525
        %v1651 = vpop.permute.xlu0 %1650
        %1653 = vset.pattern.permute.xlu0 2
        %1654 = vperm.xlu0 %1653, %v1526
        %v1655 = vpop.permute.xlu0 %1654
        %1657 = vset.pattern.permute.xlu0 2
        %1658 = vperm.xlu0 %1657, %v1527
        %v1659 = vpop.permute.xlu0 %1658
        %1661 = vset.pattern.permute.xlu0 2
        %1662 = vperm.xlu0 %1661, %v1528
        %v1663 = vpop.permute.xlu0 %1662
        %1665 = vset.pattern.permute.xlu0 2
        %1666 = vperm.xlu0 %1665, %v1529
        %v1667 = vpop.permute.xlu0 %1666
        %1669 = vset.pattern.permute.xlu0 2
        %1670 = vperm.xlu0 %1669, %v1530
        %v1671 = vpop.permute.xlu0 %1670
        %v1673 = vperm.slane %v1640, 0
        %v1674 = vmul.f32 %v1643, %v1673
        %v1675 = vmul.f32 %v1647, %v1673
        %v1676 = vmul.f32 %v1651, %v1673
        %v1677 = vmul.f32 %v1655, %v1673
        %v1678 = vmul.f32 %v1659, %v1673
        %v1679 = vmul.f32 %v1663, %v1673
        %v1680 = vmul.f32 %v1667, %v1673
        %v1681 = vmul.f32 %v1671, %v1673
        %v1682 = vadd.f32 %v1632, %v1674
        %v1683 = vadd.f32 %v1633, %v1675
        %v1684 = vadd.f32 %v1634, %v1676
        %v1685 = vadd.f32 %v1635, %v1677
        %v1686 = vadd.f32 %v1636, %v1678
        %v1687 = vadd.f32 %v1637, %v1679
        %v1688 = vadd.f32 %v1638, %v1680
        %v1689 = vadd.f32 %v1639, %v1681
        %s1690 = scalar_lea.vmem %s490, 160 [#allocation2]
        %v1691 = vld [vmem:[%s1690] sm:$0xff]
        %v1692 = vld [vmem:[%s1690 + $0x10] sm:$0xff]
        %v1693 = vld [vmem:[%s1690 + $0x20] sm:$0xff]
        %v1694 = vld [vmem:[%s1690 + $0x30] sm:$0xff]
        %v1695 = vld [vmem:[%s1690 + $0x40] sm:$0xff]
        %v1696 = vld [vmem:[%s1690 + $0x50] sm:$0xff]
        %v1697 = vld [vmem:[%s1690 + $0x60] sm:$0xff]
        %v1698 = vld [vmem:[%s1690 + $0x70] sm:$0xff]
        %s1699 = scalar_lea.vmem %s1, 28
        %v1700 = vld [vmem:[%s1699] sm:$0x1]
        %1702 = vset.pattern.permute.xlu0 0
        %1703 = vperm.xlu0 %1702, %v1691
        %v1704 = vpop.permute.xlu0 %1703
        %1707 = vset.pattern.permute.xlu0 0
        %1708 = vperm.xlu0 %1707, %v1692
        %v1709 = vpop.permute.xlu0 %1708
        %1712 = vset.pattern.permute.xlu0 0
        %1713 = vperm.xlu0 %1712, %v1693
        %v1714 = vpop.permute.xlu0 %1713
        %1717 = vset.pattern.permute.xlu0 0
        %1718 = vperm.xlu0 %1717, %v1694
        %v1719 = vpop.permute.xlu0 %1718
        %1722 = vset.pattern.permute.xlu0 0
        %1723 = vperm.xlu0 %1722, %v1695
        %v1724 = vpop.permute.xlu0 %1723
        %1727 = vset.pattern.permute.xlu0 0
        %1728 = vperm.xlu0 %1727, %v1696
        %v1729 = vpop.permute.xlu0 %1728
        %1732 = vset.pattern.permute.xlu0 0
        %1733 = vperm.xlu0 %1732, %v1697
        %v1734 = vpop.permute.xlu0 %1733
        %1737 = vset.pattern.permute.xlu0 0
        %1738 = vperm.xlu0 %1737, %v1698
        %v1739 = vpop.permute.xlu0 %1738
        %v1741 = vperm.slane %v1700, 0
        %v1742 = vmul.f32 %v1704, %v1741
        %v1743 = vmul.f32 %v1709, %v1741
        %v1744 = vmul.f32 %v1714, %v1741
        %v1745 = vmul.f32 %v1719, %v1741
        %v1746 = vmul.f32 %v1724, %v1741
        %v1747 = vmul.f32 %v1729, %v1741
        %v1748 = vmul.f32 %v1734, %v1741
        %v1749 = vmul.f32 %v1739, %v1741
        %v1750 = vadd.f32 %v1682, %v1742
        %v1751 = vadd.f32 %v1683, %v1743
        %v1752 = vadd.f32 %v1684, %v1744
        %v1753 = vadd.f32 %v1685, %v1745
        %v1754 = vadd.f32 %v1686, %v1746
        %v1755 = vadd.f32 %v1687, %v1747
        %v1756 = vadd.f32 %v1688, %v1748
        %v1757 = vadd.f32 %v1689, %v1749
        %v1758 = vld [vmem:[%s1699 + $0x1] sm:$0x1]
        %1759 = vset.pattern.permute.xlu0 1
        %1760 = vperm.xlu0 %1759, %v1691
        %v1761 = vpop.permute.xlu0 %1760
        %1763 = vset.pattern.permute.xlu0 1
        %1764 = vperm.xlu0 %1763, %v1692
        %v1765 = vpop.permute.xlu0 %1764
        %1767 = vset.pattern.permute.xlu0 1
        %1768 = vperm.xlu0 %1767, %v1693
        %v1769 = vpop.permute.xlu0 %1768
        %1771 = vset.pattern.permute.xlu0 1
        %1772 = vperm.xlu0 %1771, %v1694
        %v1773 = vpop.permute.xlu0 %1772
        %1775 = vset.pattern.permute.xlu0 1
        %1776 = vperm.xlu0 %1775, %v1695
        %v1777 = vpop.permute.xlu0 %1776
        %1779 = vset.pattern.permute.xlu0 1
        %1780 = vperm.xlu0 %1779, %v1696
        %v1781 = vpop.permute.xlu0 %1780
        %1783 = vset.pattern.permute.xlu0 1
        %1784 = vperm.xlu0 %1783, %v1697
        %v1785 = vpop.permute.xlu0 %1784
        %1787 = vset.pattern.permute.xlu0 1
        %1788 = vperm.xlu0 %1787, %v1698
        %v1789 = vpop.permute.xlu0 %1788
        %v1791 = vperm.slane %v1758, 0
        %v1792 = vmul.f32 %v1761, %v1791
        %v1793 = vmul.f32 %v1765, %v1791
        %v1794 = vmul.f32 %v1769, %v1791
        %v1795 = vmul.f32 %v1773, %v1791
        %v1796 = vmul.f32 %v1777, %v1791
        %v1797 = vmul.f32 %v1781, %v1791
        %v1798 = vmul.f32 %v1785, %v1791
        %v1799 = vmul.f32 %v1789, %v1791
        %v1800 = vadd.f32 %v1750, %v1792
        %v1801 = vadd.f32 %v1751, %v1793
        %v1802 = vadd.f32 %v1752, %v1794
        %v1803 = vadd.f32 %v1753, %v1795
        %v1804 = vadd.f32 %v1754, %v1796
        %v1805 = vadd.f32 %v1755, %v1797
        %v1806 = vadd.f32 %v1756, %v1798
        %v1807 = vadd.f32 %v1757, %v1799
        %v1808 = vld [vmem:[%s1699 + $0x2] sm:$0x1]
        %1809 = vset.pattern.permute.xlu0 2
        %1810 = vperm.xlu0 %1809, %v1691
        %v1811 = vpop.permute.xlu0 %1810
        %1813 = vset.pattern.permute.xlu0 2
        %1814 = vperm.xlu0 %1813, %v1692
        %v1815 = vpop.permute.xlu0 %1814
        %1817 = vset.pattern.permute.xlu0 2
        %1818 = vperm.xlu0 %1817, %v1693
        %v1819 = vpop.permute.xlu0 %1818
        %1821 = vset.pattern.permute.xlu0 2
        %1822 = vperm.xlu0 %1821, %v1694
        %v1823 = vpop.permute.xlu0 %1822
        %1825 = vset.pattern.permute.xlu0 2
        %1826 = vperm.xlu0 %1825, %v1695
        %v1827 = vpop.permute.xlu0 %1826
        %1829 = vset.pattern.permute.xlu0 2
        %1830 = vperm.xlu0 %1829, %v1696
        %v1831 = vpop.permute.xlu0 %1830
        %1833 = vset.pattern.permute.xlu0 2
        %1834 = vperm.xlu0 %1833, %v1697
        %v1835 = vpop.permute.xlu0 %1834
        %1837 = vset.pattern.permute.xlu0 2
        %1838 = vperm.xlu0 %1837, %v1698
        %v1839 = vpop.permute.xlu0 %1838
        %v1841 = vperm.slane %v1808, 0
        %v1842 = vmul.f32 %v1811, %v1841
        %v1843 = vmul.f32 %v1815, %v1841
        %v1844 = vmul.f32 %v1819, %v1841
        %v1845 = vmul.f32 %v1823, %v1841
        %v1846 = vmul.f32 %v1827, %v1841
        %v1847 = vmul.f32 %v1831, %v1841
        %v1848 = vmul.f32 %v1835, %v1841
        %v1849 = vmul.f32 %v1839, %v1841
        %v1850 = vadd.f32 %v1800, %v1842
        %v1851 = vadd.f32 %v1801, %v1843
        %v1852 = vadd.f32 %v1802, %v1844
        %v1853 = vadd.f32 %v1803, %v1845
        %v1854 = vadd.f32 %v1804, %v1846
        %v1855 = vadd.f32 %v1805, %v1847
        %v1856 = vadd.f32 %v1806, %v1848
        %v1857 = vadd.f32 %v1807, %v1849
        %v1858 = vld [vmem:[%s1522 + $0x1] sm:$0xff]
        %v1859 = vld [vmem:[%s1522 + $0x11] sm:$0xff]
        %v1860 = vld [vmem:[%s1522 + $0x21] sm:$0xff]
        %v1861 = vld [vmem:[%s1522 + $0x31] sm:$0xff]
        %v1862 = vld [vmem:[%s1522 + $0x41] sm:$0xff]
        %v1863 = vld [vmem:[%s1522 + $0x51] sm:$0xff]
        %v1864 = vld [vmem:[%s1522 + $0x61] sm:$0xff]
        %v1865 = vld [vmem:[%s1522 + $0x71] sm:$0xff]
        %s1866 = scalar_lea.vmem %s1, 32
        %v1867 = vld [vmem:[%s1866] sm:$0x1]
        %1869 = vset.pattern.permute.xlu0 0
        %1870 = vperm.xlu0 %1869, %v1858
        %v1871 = vpop.permute.xlu0 %1870
        %1874 = vset.pattern.permute.xlu0 0
        %1875 = vperm.xlu0 %1874, %v1859
        %v1876 = vpop.permute.xlu0 %1875
        %1879 = vset.pattern.permute.xlu0 0
        %1880 = vperm.xlu0 %1879, %v1860
        %v1881 = vpop.permute.xlu0 %1880
        %1884 = vset.pattern.permute.xlu0 0
        %1885 = vperm.xlu0 %1884, %v1861
        %v1886 = vpop.permute.xlu0 %1885
        %1889 = vset.pattern.permute.xlu0 0
        %1890 = vperm.xlu0 %1889, %v1862
        %v1891 = vpop.permute.xlu0 %1890
        %1894 = vset.pattern.permute.xlu0 0
        %1895 = vperm.xlu0 %1894, %v1863
        %v1896 = vpop.permute.xlu0 %1895
        %1899 = vset.pattern.permute.xlu0 0
        %1900 = vperm.xlu0 %1899, %v1864
        %v1901 = vpop.permute.xlu0 %1900
        %1904 = vset.pattern.permute.xlu0 0
        %1905 = vperm.xlu0 %1904, %v1865
        %v1906 = vpop.permute.xlu0 %1905
        %v1908 = vperm.slane %v1867, 0
        %v1909 = vmul.f32 %v1871, %v1908
        %v1910 = vmul.f32 %v1876, %v1908
        %v1911 = vmul.f32 %v1881, %v1908
        %v1912 = vmul.f32 %v1886, %v1908
        %v1913 = vmul.f32 %v1891, %v1908
        %v1914 = vmul.f32 %v1896, %v1908
        %v1915 = vmul.f32 %v1901, %v1908
        %v1916 = vmul.f32 %v1906, %v1908
        %v1917 = vadd.f32 %v1850, %v1909
        %v1918 = vadd.f32 %v1851, %v1910
        %v1919 = vadd.f32 %v1852, %v1911
        %v1920 = vadd.f32 %v1853, %v1912
        %v1921 = vadd.f32 %v1854, %v1913
        %v1922 = vadd.f32 %v1855, %v1914
        %v1923 = vadd.f32 %v1856, %v1915
        %v1924 = vadd.f32 %v1857, %v1916
        %v1925 = vld [vmem:[%s1866 + $0x1] sm:$0x1]
        %1926 = vset.pattern.permute.xlu0 1
        %1927 = vperm.xlu0 %1926, %v1858
        %v1928 = vpop.permute.xlu0 %1927
        %1930 = vset.pattern.permute.xlu0 1
        %1931 = vperm.xlu0 %1930, %v1859
        %v1932 = vpop.permute.xlu0 %1931
        %1934 = vset.pattern.permute.xlu0 1
        %1935 = vperm.xlu0 %1934, %v1860
        %v1936 = vpop.permute.xlu0 %1935
        %1938 = vset.pattern.permute.xlu0 1
        %1939 = vperm.xlu0 %1938, %v1861
        %v1940 = vpop.permute.xlu0 %1939
        %1942 = vset.pattern.permute.xlu0 1
        %1943 = vperm.xlu0 %1942, %v1862
        %v1944 = vpop.permute.xlu0 %1943
        %1946 = vset.pattern.permute.xlu0 1
        %1947 = vperm.xlu0 %1946, %v1863
        %v1948 = vpop.permute.xlu0 %1947
        %1950 = vset.pattern.permute.xlu0 1
        %1951 = vperm.xlu0 %1950, %v1864
        %v1952 = vpop.permute.xlu0 %1951
        %1954 = vset.pattern.permute.xlu0 1
        %1955 = vperm.xlu0 %1954, %v1865
        %v1956 = vpop.permute.xlu0 %1955
        %v1958 = vperm.slane %v1925, 0
        %v1959 = vmul.f32 %v1928, %v1958
        %v1960 = vmul.f32 %v1932, %v1958
        %v1961 = vmul.f32 %v1936, %v1958
        %v1962 = vmul.f32 %v1940, %v1958
        %v1963 = vmul.f32 %v1944, %v1958
        %v1964 = vmul.f32 %v1948, %v1958
        %v1965 = vmul.f32 %v1952, %v1958
        %v1966 = vmul.f32 %v1956, %v1958
        %v1967 = vadd.f32 %v1917, %v1959
        %v1968 = vadd.f32 %v1918, %v1960
        %v1969 = vadd.f32 %v1919, %v1961
        %v1970 = vadd.f32 %v1920, %v1962
        %v1971 = vadd.f32 %v1921, %v1963
        %v1972 = vadd.f32 %v1922, %v1964
        %v1973 = vadd.f32 %v1923, %v1965
        %v1974 = vadd.f32 %v1924, %v1966
        %v1975 = vld [vmem:[%s1866 + $0x2] sm:$0x1]
        %1976 = vset.pattern.permute.xlu0 2
        %1977 = vperm.xlu0 %1976, %v1858
        %v1978 = vpop.permute.xlu0 %1977
        %1980 = vset.pattern.permute.xlu0 2
        %1981 = vperm.xlu0 %1980, %v1859
        %v1982 = vpop.permute.xlu0 %1981
        %1984 = vset.pattern.permute.xlu0 2
        %1985 = vperm.xlu0 %1984, %v1860
        %v1986 = vpop.permute.xlu0 %1985
        %1988 = vset.pattern.permute.xlu0 2
        %1989 = vperm.xlu0 %1988, %v1861
        %v1990 = vpop.permute.xlu0 %1989
        %1992 = vset.pattern.permute.xlu0 2
        %1993 = vperm.xlu0 %1992, %v1862
        %v1994 = vpop.permute.xlu0 %1993
        %1996 = vset.pattern.permute.xlu0 2
        %1997 = vperm.xlu0 %1996, %v1863
        %v1998 = vpop.permute.xlu0 %1997
        %2000 = vset.pattern.permute.xlu0 2
        %2001 = vperm.xlu0 %2000, %v1864
        %v2002 = vpop.permute.xlu0 %2001
        %2004 = vset.pattern.permute.xlu0 2
        %2005 = vperm.xlu0 %2004, %v1865
        %v2006 = vpop.permute.xlu0 %2005
        %v2008 = vperm.slane %v1975, 0
        %v2009 = vmul.f32 %v1978, %v2008
        %v2010 = vmul.f32 %v1982, %v2008
        %v2011 = vmul.f32 %v1986, %v2008
        %v2012 = vmul.f32 %v1990, %v2008
        %v2013 = vmul.f32 %v1994, %v2008
        %v2014 = vmul.f32 %v1998, %v2008
        %v2015 = vmul.f32 %v2002, %v2008
        %v2016 = vmul.f32 %v2006, %v2008
        %v2017 = vadd.f32 %v1967, %v2009
        %v2018 = vadd.f32 %v1968, %v2010
        %v2019 = vadd.f32 %v1969, %v2011
        %v2020 = vadd.f32 %v1970, %v2012
        %v2021 = vadd.f32 %v1971, %v2013
        %v2022 = vadd.f32 %v1972, %v2014
        %v2023 = vadd.f32 %v1973, %v2015
        %v2024 = vadd.f32 %v1974, %v2016
        %v2025 = vld [vmem:[%s2] sm:$0x1]
        %v2027 = vperm.slane %v2025, 0
        %v2029 = vmul.f32 %v2017, %v2027
        %v2030 = vmul.f32 %v2018, %v2027
        %v2031 = vmul.f32 %v2019, %v2027
        %v2032 = vmul.f32 %v2020, %v2027
        %v2033 = vmul.f32 %v2021, %v2027
        %v2034 = vmul.f32 %v2022, %v2027
        %v2035 = vmul.f32 %v2023, %v2027
        %v2036 = vmul.f32 %v2024, %v2027
        %v2037 = vld [vmem:[%s3] sm:$0x1]
        %v2039 = vperm.slane %v2037, 0
        %v2041 = vadd.f32 %v2029, %v2039
        %v2042 = vadd.f32 %v2030, %v2039
        %v2043 = vadd.f32 %v2031, %v2039
        %v2044 = vadd.f32 %v2032, %v2039
        %v2045 = vadd.f32 %v2033, %v2039
        %v2046 = vadd.f32 %v2034, %v2039
        %v2047 = vadd.f32 %v2035, %v2039
        %v2048 = vadd.f32 %v2036, %v2039
        %v2049 = vsub.f32 0.0, %v2041
        %v2050 = vsub.f32 0.0, %v2042
        %v2051 = vsub.f32 0.0, %v2043
        %v2052 = vsub.f32 0.0, %v2044
        %v2053 = vsub.f32 0.0, %v2045
        %v2054 = vsub.f32 0.0, %v2046
        %v2055 = vsub.f32 0.0, %v2047
        %v2056 = vsub.f32 0.0, %v2048
        %v2057 = vmul.f32 %v2049, 1.442695
        %v2058 = vpow.pop %v2057
        %v2059 = vmul.f32 %v2050, 1.442695
        %v2060 = vpow.pop %v2059
        %v2061 = vmul.f32 %v2051, 1.442695
        %v2062 = vpow.pop %v2061
        %v2063 = vmul.f32 %v2052, 1.442695
        %v2064 = vpow.pop %v2063
        %v2065 = vmul.f32 %v2053, 1.442695
        %v2066 = vpow.pop %v2065
        %v2067 = vmul.f32 %v2054, 1.442695
        %v2068 = vpow.pop %v2067
        %v2069 = vmul.f32 %v2055, 1.442695
        %v2070 = vpow.pop %v2069
        %v2071 = vmul.f32 %v2056, 1.442695
        %v2072 = vpow.pop %v2071
        %v2073 = vadd.f32 %v2058, 1.0
        %v2074 = vadd.f32 %v2060, 1.0
        %v2075 = vadd.f32 %v2062, 1.0
        %v2076 = vadd.f32 %v2064, 1.0
        %v2077 = vadd.f32 %v2066, 1.0
        %v2078 = vadd.f32 %v2068, 1.0
        %v2079 = vadd.f32 %v2070, 1.0
        %v2080 = vadd.f32 %v2072, 1.0
        %v2081 = vrcp.pop %v2073
        %v2082 = vrcp.pop %v2074
        %v2083 = vrcp.pop %v2075
        %v2084 = vrcp.pop %v2076
        %v2085 = vrcp.pop %v2077
        %v2086 = vrcp.pop %v2078
        %v2087 = vrcp.pop %v2079
        %v2088 = vrcp.pop %v2080
        %v2089 = vmul.f32 %v2041, %v2081
        %v2090 = vmul.f32 %v2042, %v2082
        %v2091 = vmul.f32 %v2043, %v2083
        %v2092 = vmul.f32 %v2044, %v2084
        %v2093 = vmul.f32 %v2045, %v2085
        %v2094 = vmul.f32 %v2046, %v2086
        %v2095 = vmul.f32 %v2047, %v2087
        %v2096 = vmul.f32 %v2048, %v2088
        %v2097 = vpack.c.bf16 %v2089, %v2089
        %v2098 = vpack.c.bf16 %v2090, %v2090
        %v2099 = vpack.c.bf16 %v2091, %v2091
        %v2100 = vpack.c.bf16 %v2092, %v2092
        %v2101 = vpack.c.bf16 %v2093, %v2093
        %v2102 = vpack.c.bf16 %v2094, %v2094
        %v2103 = vpack.c.bf16 %v2095, %v2095
        %v2104 = vpack.c.bf16 %v2096, %v2096
        %2105 = vst [vmem:[%s517] sm:$0xf] %v2097
        %2106 = vst [vmem:[%s517 + $0x4] sm:$0xf] %v2098
        %2107 = vst [vmem:[%s517 + $0x8] sm:$0xf] %v2099
        %2108 = vst [vmem:[%s517 + $0xc] sm:$0xf] %v2100
        %2109 = vst [vmem:[%s517 + $0x10] sm:$0xf] %v2101
        %2110 = vst [vmem:[%s517 + $0x14] sm:$0xf] %v2102
        %2111 = vst [vmem:[%s517 + $0x18] sm:$0xf] %v2103
        %2112 = vst [vmem:[%s517 + $0x1c] sm:$0xf] %v2104
        %p2113 = scmp.lt.s32.totalorder %s15, 1
        %s2114 = scalar_select %p2113, %s15, 1
        %s2115 = smul.addr %s2114, 8
        %s2116 = smul.addr %s2115, 4
        %s2117 = scalar_lea.vmem %s4, %s2116
        // Predicated region
        $region75: #{sen_forward.6} parent=69 // pred_check
          %p2118 = pneg %p122
        $region76: #{sen_forward.6} parent=69 // pred_check_branch
          %2120 = sbr.rel (%p2118) target = $region78
        $region77: #{sen_forward.6} parent=69 // pred_region
          _
        $region78: #{sen_forward.6} parent=69 // pred_fallthru
          _
      $region70: #{sen_forward.6} parent=5 // pred_fallthru
        _
      %p2121 = scmp.le.s32.totalorder 2, %s10
      // Predicated region
      $region79: #{sen_forward.6} parent=5 // pred_check
        %p2122 = pneg %p2121
      $region80: #{sen_forward.6} parent=5 // pred_check_branch
        %2124 = sbr.rel (%p2122) target = $region82
      $region81: #{sen_forward.6} parent=5 // pred_region
        %s2125 = ssub.s32 %s10, 2
        // Predicated region
        $region83: #{sen_forward.6} parent=81 // pred_check
          %p2126 = pneg %p128
        $region84: #{sen_forward.6} parent=81 // pred_check_branch
          %2128 = sbr.rel (%p2126) target = $region86
        $region85: #{sen_forward.6} parent=81 // pred_region
          %p2129 = scmp.lt.s32.totalorder %s16, 1
          %s2130 = scalar_select %p2129, %s16, 1
          %s2131 = smul.addr %s2130, 8
          %s2132 = smul.addr %s2131, 4
          %s2133 = scalar_lea.vmem %s4, %s2132
        $region86: #{sen_forward.6} parent=81 // pred_fallthru
          _
      $region82: #{sen_forward.6} parent=5 // pred_fallthru
        _
    $region6: #{sen_forward.6} parent=1 // loop_footer
      %s14 = sadd.s32 1, %s10
    $region7: #{sen_forward.6} parent=1 // loop_footer_branch
      %9 = sbr.rel target = $region3
    $region8: #{sen_forward.6} parent=1 // loop_exit
      _

// kernel: sen_forward.8
$region0: #{sen_forward.8}
  #allocation0 [shape = 'u32[]', space=smem, size = 0x4, offset = 0x4, fixed_abs, tag = 'smem constant byte address 0x4 - core index']
  #allocation1 [shape = 'u32[72,128]{1,0:T(1,128)}', space=vmem, size = 0x9000, scoped, tag = 'internal scratch']
  %s0 = inlined_call_operand.vmem [shape: bf16[2,10,10,256], index: 0, kind: input, shape index: {}]
  %s1 = inlined_call_operand.vmem [shape: f32[3,3,256], index: 1, kind: input, shape index: {}]
  %s2 = inlined_call_operand.vmem [shape: f32[1,256], index: 2, kind: input, shape index: {}]
  %s3 = inlined_call_operand.vmem [shape: f32[1,256], index: 3, kind: input, shape index: {}]
  %s4 = inlined_call_operand.vmem [shape: bf16[2,8,8,256], index: 4, kind: output, shape index: {0}]
  %s5 = inlined_call_operand.vmem [shape: f32[2,1,256], index: 5, kind: output, shape index: {1}]
  %6 = xla_tuple %s4, %s5
  %s7 = sld [smem:[#allocation0]]
  $region57: #{sen_forward.8} parent=0
    _
  %s9 = ssub.s32 1, %s7
  %s10 = scalar_select 0, %s9, %s7
  loop: start=0, step=1, limit=4
  $region2: #{sen_forward.8} parent=0 // loop_pre_header
    _
  $region3: #{sen_forward.8} parent=0 // loop_header
    %s12 = sphi 0, %s16
    %p13 = scmp.ge.s32.totalorder %s12, 4
    %s22 = sphi 0, %s24
    %s25 = sphi 0, %s22
    %s26 = sphi 0, %s25
    %s42 = sphi 0, %s26
    %s46 = sphi 0, %s46
    %s48 = sphi 0, %s46
    %s49 = sphi 0, %s48
    %s63 = sphi 0, %s49
    %s67 = sphi 0, %s67
    %s69 = sphi 0, %s67
    %s70 = sphi 0, %s69
    %s84 = sphi 0, %s70
    %s88 = sphi 0, %s88
    %s90 = sphi 0, %s88
    %s91 = sphi 0, %s90
    %s105 = sphi 0, %s91
    %s111 = sphi 0, %s113
    %s114 = sphi 0, %s111
    %s115 = sphi 0, %s114
    %s131 = sphi 0, %s115
    %s137 = sphi 0, %s139
    %s140 = sphi 0, %s137
    %s141 = sphi 0, %s140
    %s157 = sphi 0, %s141
  $region4: #{sen_forward.8} parent=0 // loop_header_branch
    %15 = sbr.rel (%p13) target = $region8
  $region5: #{sen_forward.8} parent=0 // loop_body
    %s17 = ssub.s32 %s12, 1
    %s18 = ssub.s32 %s12, 2
    %s19 = sadd.s32 %s12, 1
    %s20 = ssub.s32 %s12, %s19
    %p21 = scmp.eq.s32.totalorder %s20, 0
    %s23 = sadd.s32 %s22, 1
    %s24 = scalar_select %p21, %s22, %s23
    %p27 = pneg %p21
    %p28 = scmp.eq.s32.totalorder %s12, 1
    %p29 = por %p27, %p28
    %p30 = scmp.ne.s32.totalorder %s22, %s25
    %p31 = scmp.eq.s32.totalorder %s12, 0
    %p32 = por %p30, %p31
    %p33 = scmp.ne.s32.totalorder %s22, %s25
    %p34 = scmp.eq.s32.totalorder %s17, 1
    %p35 = por %p33, %p34
    %p36 = scmp.ne.s32.totalorder %s25, %s26
    %p37 = scmp.eq.s32.totalorder %s17, 0
    %p38 = por %p36, %p37
    %p39 = scmp.ne.s32.totalorder %s25, %s26
    %p40 = scmp.eq.s32.totalorder %s18, 1
    %p41 = por %p39, %p40
    %p43 = scmp.ne.s32.totalorder %s26, %s42
    %p44 = scmp.eq.s32.totalorder %s18, 0
    %p45 = por %p43, %p44
    %s47 = sadd.s32 %s46, 1
    %p50 = scmp.eq.s32.totalorder %s12, 1
    %p51 = scmp.ne.s32.totalorder %s46, %s48
    %p52 = scmp.eq.s32.totalorder %s12, 0
    %p53 = por %p51, %p52
    %p54 = scmp.ne.s32.totalorder %s46, %s48
    %p55 = scmp.eq.s32.totalorder %s17, 1
    %p56 = por %p54, %p55
    %p57 = scmp.ne.s32.totalorder %s48, %s49
    %p58 = scmp.eq.s32.totalorder %s17, 0
    %p59 = por %p57, %p58
    %p60 = scmp.ne.s32.totalorder %s48, %s49
    %p61 = scmp.eq.s32.totalorder %s18, 1
    %p62 = por %p60, %p61
    %p64 = scmp.ne.s32.totalorder %s49, %s63
    %p65 = scmp.eq.s32.totalorder %s18, 0
    %p66 = por %p64, %p65
    %s68 = sadd.s32 %s67, 1
    %p71 = scmp.eq.s32.totalorder %s12, 1
    %p72 = scmp.ne.s32.totalorder %s67, %s69
    %p73 = scmp.eq.s32.totalorder %s12, 0
    %p74 = por %p72, %p73
    %p75 = scmp.ne.s32.totalorder %s67, %s69
    %p76 = scmp.eq.s32.totalorder %s17, 1
    %p77 = por %p75, %p76
    %p78 = scmp.ne.s32.totalorder %s69, %s70
    %p79 = scmp.eq.s32.totalorder %s17, 0
    %p80 = por %p78, %p79
    %p81 = scmp.ne.s32.totalorder %s69, %s70
    %p82 = scmp.eq.s32.totalorder %s18, 1
    %p83 = por %p81, %p82
    %p85 = scmp.ne.s32.totalorder %s70, %s84
    %p86 = scmp.eq.s32.totalorder %s18, 0
    %p87 = por %p85, %p86
    %s89 = sadd.s32 %s88, 1
    %p92 = scmp.eq.s32.totalorder %s12, 1
    %p93 = scmp.ne.s32.totalorder %s88, %s90
    %p94 = scmp.eq.s32.totalorder %s12, 0
    %p95 = por %p93, %p94
    %p96 = scmp.ne.s32.totalorder %s88, %s90
    %p97 = scmp.eq.s32.totalorder %s17, 1
    %p98 = por %p96, %p97
    %p99 = scmp.ne.s32.totalorder %s90, %s91
    %p100 = scmp.eq.s32.totalorder %s17, 0
    %p101 = por %p99, %p100
    %p102 = scmp.ne.s32.totalorder %s90, %s91
    %p103 = scmp.eq.s32.totalorder %s18, 1
    %p104 = por %p102, %p103
    %p106 = scmp.ne.s32.totalorder %s91, %s105
    %p107 = scmp.eq.s32.totalorder %s18, 0
    %p108 = por %p106, %p107
    %s109 = ssub.s32 %s12, %s19
    %p110 = scmp.eq.s32.totalorder %s109, 0
    %s112 = sadd.s32 %s111, 1
    %s113 = scalar_select %p110, %s111, %s112
    %p116 = pneg %p110
    %p117 = scmp.eq.s32.totalorder %s12, 1
    %p118 = por %p116, %p117
    %p119 = scmp.ne.s32.totalorder %s111, %s114
    %p120 = scmp.eq.s32.totalorder %s12, 0
    %p121 = por %p119, %p120
    %p122 = scmp.ne.s32.totalorder %s111, %s114
    %p123 = scmp.eq.s32.totalorder %s17, 1
    %p124 = por %p122, %p123
    %p125 = scmp.ne.s32.totalorder %s114, %s115
    %p126 = scmp.eq.s32.totalorder %s17, 0
    %p127 = por %p125, %p126
    %p128 = scmp.ne.s32.totalorder %s114, %s115
    %p129 = scmp.eq.s32.totalorder %s18, 1
    %p130 = por %p128, %p129
    %p132 = scmp.ne.s32.totalorder %s115, %s131
    %p133 = scmp.eq.s32.totalorder %s18, 0
    %p134 = por %p132, %p133
    %s135 = ssub.s32 %s12, %s19
    %p136 = scmp.eq.s32.totalorder %s135, 0
    %s138 = sadd.s32 %s137, 1
    %s139 = scalar_select %p136, %s137, %s138
    %p142 = pneg %p136
    %p143 = scmp.eq.s32.totalorder %s12, 1
    %p144 = por %p142, %p143
    %p145 = scmp.ne.s32.totalorder %s137, %s140
    %p146 = scmp.eq.s32.totalorder %s12, 0
    %p147 = por %p145, %p146
    %p148 = scmp.ne.s32.totalorder %s137, %s140
    %p149 = scmp.eq.s32.totalorder %s17, 1
    %p150 = por %p148, %p149
    %p151 = scmp.ne.s32.totalorder %s140, %s141
    %p152 = scmp.eq.s32.totalorder %s17, 0
    %p153 = por %p151, %p152
    %p154 = scmp.ne.s32.totalorder %s140, %s141
    %p155 = scmp.eq.s32.totalorder %s18, 1
    %p156 = por %p154, %p155
    %p158 = scmp.ne.s32.totalorder %s141, %s157
    %p159 = scmp.eq.s32.totalorder %s18, 0
    %p160 = por %p158, %p159
    %p161 = scmp.le.s32.totalorder 1, %s12
    %p162 = scmp.lt.s32.totalorder %s12, 3
    %p163 = pnand %p161, %p162
    %p164 = pneg %p163
    // Predicated region
    $region9: #{sen_forward.8} parent=5 // pred_check
      _
    $region10: #{sen_forward.8} parent=5 // pred_check_branch
      %166 = sbr.rel (%p163) target = $region12
    $region11: #{sen_forward.8} parent=5 // pred_region
      %s167 = ssub.s32 %s12, 1
      // Predicated region
      $region13: #{sen_forward.8} parent=11 // pred_check
        %p168 = pneg %p59
      $region14: #{sen_forward.8} parent=11 // pred_check_branch
        %170 = sbr.rel (%p168) target = $region16
      $region15: #{sen_forward.8} parent=11 // pred_region
        _
      $region16: #{sen_forward.8} parent=11 // pred_fallthru
        _
      // Predicated region
      $region17: #{sen_forward.8} parent=11 // pred_check
        %p171 = pneg %p80
      $region18: #{sen_forward.8} parent=11 // pred_check_branch
        %173 = sbr.rel (%p171) target = $region20
      $region19: #{sen_forward.8} parent=11 // pred_region
        _
      $region20: #{sen_forward.8} parent=11 // pred_fallthru
        _
      // Predicated region
      $region21: #{sen_forward.8} parent=11 // pred_check
        %p174 = pneg %p101
      $region22: #{sen_forward.8} parent=11 // pred_check_branch
        %176 = sbr.rel (%p174) target = $region24
      $region23: #{sen_forward.8} parent=11 // pred_region
        _
      $region24: #{sen_forward.8} parent=11 // pred_fallthru
        _
    $region12: #{sen_forward.8} parent=5 // pred_fallthru
      _
    %p177 = scmp.lt.s32.totalorder %s12, 2
    // Predicated region
    $region25: #{sen_forward.8} parent=5 // pred_check
      %p178 = pneg %p177
    $region26: #{sen_forward.8} parent=5 // pred_check_branch
      %180 = sbr.rel (%p178) target = $region28
    $region27: #{sen_forward.8} parent=5 // pred_region
      // Predicated region
      $region29: #{sen_forward.8} parent=27 // pred_check
        %p181 = pneg %p32
      $region30: #{sen_forward.8} parent=27 // pred_check_branch
        %183 = sbr.rel (%p181) target = $region32
      $region31: #{sen_forward.8} parent=27 // pred_region
        %p184 = scmp.lt.s32.totalorder %s12, 1
        %s185 = scalar_select %p184, %s12, 1
        %s186 = smul.addr %s185, 40
        %s187 = smul.addr %s186, 4
        %s188 = scalar_lea.vmem %s0, %s187
      $region32: #{sen_forward.8} parent=27 // pred_fallthru
        _
    $region28: #{sen_forward.8} parent=5 // pred_fallthru
      _
    %p189 = scmp.le.s32.totalorder 1, %s12
    %p190 = scmp.lt.s32.totalorder %s12, 3
    %p191 = pnand %p189, %p190
    %p192 = pneg %p191
    // Predicated region
    $region33: #{sen_forward.8} parent=5 // pred_check
      _
    $region34: #{sen_forward.8} parent=5 // pred_check_branch
      %194 = sbr.rel (%p191) target = $region36
    $region35: #{sen_forward.8} parent=5 // pred_region
      %s195 = ssub.s32 %s12, 1
      %p196 = scmp.lt.s32.totalorder %s17, 1
      %s197 = scalar_select %p196, %s17, 1
      %s198 = smul.addr %s197, 40
      %s199 = smul.addr %s198, 4
      %s200 = scalar_lea.vmem %s0, %s199
      %p201 = pneg %p38
      %p202 = pneg %p35
      %p203 = pneg %p59
      %p204 = pneg %p56
      %p205 = pneg %p80
      %p206 = pneg %p77
      %p207 = pneg %p101
      %p208 = pneg %p98
      %p209 = pneg %p127
      %p210 = pneg %p124
      %p211 = scmp.lt.s32.totalorder %s17, 1
      %s212 = scalar_select %p211, %s17, 1
      %s213 = smul.addr %s212, 16
      %s214 = smul.addr %s213, 4
      %s215 = scalar_lea.vmem %s4, %s214
      %p216 = pneg %p153
      %p217 = pneg %p150
      %p218 = scmp.lt.s32.totalorder %s17, 1
      %s219 = scalar_select %p218, %s17, 1
      %s220 = smul.addr %s219, 2
      %s221 = scalar_lea.vmem %s5, %s220
      %p222 = scmp.lt.s32.totalorder %s17, 1
      %s223 = scalar_select %p222, %s17, 1
      %s224 = smul.addr %s223, 40
      %s225 = smul.addr %s224, 4
      %s226 = scalar_lea.vmem %s0, %s225
      %p227 = scmp.lt.s32.totalorder %s17, 1
      %s228 = scalar_select %p227, %s17, 1
      %s229 = smul.addr %s228, 16
      %s230 = smul.addr %s229, 4
      %s231 = scalar_lea.vmem %s4, %s230
      %p232 = scmp.lt.s32.totalorder %s17, 1
      %s233 = scalar_select %p232, %s17, 1
      %s234 = smul.addr %s233, 2
      %s235 = scalar_lea.vmem %s5, %s234
      %v236 = vld [vmem:[%s226] sm:$0xff]
      %v237 = vld [vmem:[%s226 + $0x8] sm:$0x11]
      %v238 = vld [vmem:[%s226 + $0x10] sm:$0xff]
      %v239 = vld [vmem:[%s226 + $0x18] sm:$0x11]
      %v240 = vld [vmem:[%s226 + $0x20] sm:$0xff]
      %v241 = vld [vmem:[%s226 + $0x28] sm:$0x11]
      %v242 = vld [vmem:[%s226 + $0x30] sm:$0xff]
      %v243 = vld [vmem:[%s226 + $0x38] sm:$0x11]
      %v244 = vld [vmem:[%s226 + $0x40] sm:$0xff]
      %v245 = vld [vmem:[%s226 + $0x48] sm:$0x11]
      %v246 = vld [vmem:[%s226 + $0x50] sm:$0xff]
      %v247 = vld [vmem:[%s226 + $0x58] sm:$0x11]
      %v248 = vld [vmem:[%s226 + $0x60] sm:$0xff]
      %v249 = vld [vmem:[%s226 + $0x68] sm:$0x11]
      %v250 = vld [vmem:[%s226 + $0x70] sm:$0xff]
      %v251 = vld [vmem:[%s226 + $0x78] sm:$0x11]
      %v252 = vld [vmem:[%s226 + $0x80] sm:$0xff]
      %v253 = vld [vmem:[%s226 + $0x88] sm:$0x11]
      %v254 = vld [vmem:[%s226 + $0x90] sm:$0xff]
      %v255 = vld [vmem:[%s226 + $0x98] sm:$0x11]
      %v256 = vunpack.c.l.bf16 %v236
      %v257 = vunpack.c.h.bf16 %v236
      %v258 = vunpack.c.l.bf16 %v237
      %v259 = vunpack.c.h.bf16 %v237
      %v260 = vunpack.c.l.bf16 %v238
      %v261 = vunpack.c.h.bf16 %v238
      %v262 = vunpack.c.l.bf16 %v239
      %v263 = vunpack.c.h.bf16 %v239
      %v264 = vunpack.c.l.bf16 %v240
      %v265 = vunpack.c.h.bf16 %v240
      %v266 = vunpack.c.l.bf16 %v241
      %v267 = vunpack.c.h.bf16 %v241
      %v268 = vunpack.c.l.bf16 %v242
      %v269 = vunpack.c.h.bf16 %v242
      %v270 = vunpack.c.l.bf16 %v243
      %v271 = vunpack.c.h.bf16 %v243
      %v272 = vunpack.c.l.bf16 %v244
      %v273 = vunpack.c.h.bf16 %v244
      %v274 = vunpack.c.l.bf16 %v245
      %v275 = vunpack.c.h.bf16 %v245
      %v276 = vunpack.c.l.bf16 %v246
      %v277 = vunpack.c.h.bf16 %v246
      %v278 = vunpack.c.l.bf16 %v247
      %v279 = vunpack.c.h.bf16 %v247
      %v280 = vunpack.c.l.bf16 %v248
      %v281 = vunpack.c.h.bf16 %v248
      %v282 = vunpack.c.l.bf16 %v249
      %v283 = vunpack.c.h.bf16 %v249
      %v284 = vunpack.c.l.bf16 %v250
      %v285 = vunpack.c.h.bf16 %v250
      %v286 = vunpack.c.l.bf16 %v251
      %v287 = vunpack.c.h.bf16 %v251
      %v288 = vunpack.c.l.bf16 %v252
      %v289 = vunpack.c.h.bf16 %v252
      %v290 = vunpack.c.l.bf16 %v253
      %v291 = vunpack.c.h.bf16 %v253
      %v292 = vunpack.c.l.bf16 %v254
      %v293 = vunpack.c.h.bf16 %v254
      %v294 = vunpack.c.l.bf16 %v255
      %v295 = vunpack.c.h.bf16 %v255
      %v296 = vld [vmem:[%s1] ss:$4 sm:$0x3]
      %v298 = vperm.slane %v296, 0
      %v299 = vperm.slane %v296, 1
      %v302 = vmul.f32 %v256, %v298
      %v303 = vmul.f32 %v257, %v299
      %v304 = vmul.f32 %v260, %v298
      %v305 = vmul.f32 %v261, %v299
      %v306 = vmul.f32 %v264, %v298
      %v307 = vmul.f32 %v265, %v299
      %v308 = vmul.f32 %v268, %v298
      %v309 = vmul.f32 %v269, %v299
      %v310 = vmul.f32 %v272, %v298
      %v311 = vmul.f32 %v273, %v299
      %v312 = vmul.f32 %v276, %v298
      %v313 = vmul.f32 %v277, %v299
      %v314 = vmul.f32 %v280, %v298
      %v315 = vmul.f32 %v281, %v299
      %v316 = vmul.f32 %v284, %v298
      %v317 = vmul.f32 %v285, %v299
      %v318 = vadd.f32 %v302, 0.0
      %v319 = vadd.f32 %v303, 0.0
      %v320 = vadd.f32 %v304, 0.0
      %v321 = vadd.f32 %v305, 0.0
      %v322 = vadd.f32 %v306, 0.0
      %v323 = vadd.f32 %v307, 0.0
      %v324 = vadd.f32 %v308, 0.0
      %v325 = vadd.f32 %v309, 0.0
      %v326 = vadd.f32 %v310, 0.0
      %v327 = vadd.f32 %v311, 0.0
      %v328 = vadd.f32 %v312, 0.0
      %v329 = vadd.f32 %v313, 0.0
      %v330 = vadd.f32 %v314, 0.0
      %v331 = vadd.f32 %v315, 0.0
      %v332 = vadd.f32 %v316, 0.0
      %v333 = vadd.f32 %v317, 0.0
      %s334 = scalar_lea.vmem %s1, 1
      %v335 = vld [vmem:[%s334] ss:$4 sm:$0x3]
      %v337 = vperm.slane %v335, 0
      %v338 = vperm.slane %v335, 1
      %v341 = vmul.f32 %v256, %v337
      %v342 = vmul.f32 %v257, %v338
      %v343 = vmul.f32 %v258, %v337
      %v344 = vmul.f32 %v259, %v338
      %v345 = vmul.f32 %v260, %v337
      %v346 = vmul.f32 %v261, %v338
      %v347 = vmul.f32 %v262, %v337
      %v348 = vmul.f32 %v263, %v338
      %v349 = vmul.f32 %v264, %v337
      %v350 = vmul.f32 %v265, %v338
      %v351 = vmul.f32 %v266, %v337
      %v352 = vmul.f32 %v267, %v338
      %v353 = vmul.f32 %v268, %v337
      %v354 = vmul.f32 %v269, %v338
      %v355 = vmul.f32 %v270, %v337
      %v356 = vmul.f32 %v271, %v338
      %v357 = vmul.f32 %v272, %v337
      %v358 = vmul.f32 %v273, %v338
      %v359 = vmul.f32 %v274, %v337
      %v360 = vmul.f32 %v275, %v338
      %v361 = vmul.f32 %v276, %v337
      %v362 = vmul.f32 %v277, %v338
      %v363 = vmul.f32 %v278, %v337
      %v364 = vmul.f32 %v279, %v338
      %v365 = vmul.f32 %v280, %v337
      %v366 = vmul.f32 %v281, %v338
      %v367 = vmul.f32 %v282, %v337
      %v368 = vmul.f32 %v283, %v338
      %v369 = vmul.f32 %v284, %v337
      %v370 = vmul.f32 %v285, %v338
      %v371 = vmul.f32 %v286, %v337
      %v372 = vmul.f32 %v287, %v338
      %vm405 = vcmask 1046528
      %v406 = vrot.slane %v341, 1
      %v407 = vrot.slane %v343, 1
      %v408 = vsel %vm405, %v406, %v407
      %v409 = vrot.slane %v342, 1
      %v410 = vrot.slane %v344, 1
      %v411 = vsel %vm405, %v409, %v410
      %v412 = vrot.slane %v345, 1
      %v413 = vrot.slane %v347, 1
      %v414 = vsel %vm405, %v412, %v413
      %v415 = vrot.slane %v346, 1
      %v416 = vrot.slane %v348, 1
      %v417 = vsel %vm405, %v415, %v416
      %v418 = vrot.slane %v349, 1
      %v419 = vrot.slane %v351, 1
      %v420 = vsel %vm405, %v418, %v419
      %v421 = vrot.slane %v350, 1
      %v422 = vrot.slane %v352, 1
      %v423 = vsel %vm405, %v421, %v422
      %v424 = vrot.slane %v353, 1
      %v425 = vrot.slane %v355, 1
      %v426 = vsel %vm405, %v424, %v425
      %v427 = vrot.slane %v354, 1
      %v428 = vrot.slane %v356, 1
      %v429 = vsel %vm405, %v427, %v428
      %v430 = vrot.slane %v357, 1
      %v431 = vrot.slane %v359, 1
      %v432 = vsel %vm405, %v430, %v431
      %v433 = vrot.slane %v358, 1
      %v434 = vrot.slane %v360, 1
      %v435 = vsel %vm405, %v433, %v434
      %v436 = vrot.slane %v361, 1
      %v437 = vrot.slane %v363, 1
      %v438 = vsel %vm405, %v436, %v437
      %v439 = vrot.slane %v362, 1
      %v440 = vrot.slane %v364, 1
      %v441 = vsel %vm405, %v439, %v440
      %v442 = vrot.slane %v365, 1
      %v443 = vrot.slane %v367, 1
      %v444 = vsel %vm405, %v442, %v443
      %v445 = vrot.slane %v366, 1
      %v446 = vrot.slane %v368, 1
      %v447 = vsel %vm405, %v445, %v446
      %v448 = vrot.slane %v369, 1
      %v449 = vrot.slane %v371, 1
      %v450 = vsel %vm405, %v448, %v449
      %v451 = vrot.slane %v370, 1
      %v452 = vrot.slane %v372, 1
      %v453 = vsel %vm405, %v451, %v452
      %v470 = vadd.f32 %v318, %v408
      %v471 = vadd.f32 %v319, %v411
      %v472 = vadd.f32 %v320, %v414
      %v473 = vadd.f32 %v321, %v417
      %v474 = vadd.f32 %v322, %v420
      %v475 = vadd.f32 %v323, %v423
      %v476 = vadd.f32 %v324, %v426
      %v477 = vadd.f32 %v325, %v429
      %v478 = vadd.f32 %v326, %v432
      %v479 = vadd.f32 %v327, %v435
      %v480 = vadd.f32 %v328, %v438
      %v481 = vadd.f32 %v329, %v441
      %v482 = vadd.f32 %v330, %v444
      %v483 = vadd.f32 %v331, %v447
      %v484 = vadd.f32 %v332, %v450
      %v485 = vadd.f32 %v333, %v453
      %s486 = scalar_lea.vmem %s1, 2
      %v487 = vld [vmem:[%s486] ss:$4 sm:$0x3]
      %v489 = vperm.slane %v487, 0
      %v490 = vperm.slane %v487, 1
      %v493 = vmul.f32 %v256, %v489
      %v494 = vmul.f32 %v257, %v490
      %v495 = vmul.f32 %v258, %v489
      %v496 = vmul.f32 %v259, %v490
      %v497 = vmul.f32 %v260, %v489
      %v498 = vmul.f32 %v261, %v490
      %v499 = vmul.f32 %v262, %v489
      %v500 = vmul.f32 %v263, %v490
      %v501 = vmul.f32 %v264, %v489
      %v502 = vmul.f32 %v265, %v490
      %v503 = vmul.f32 %v266, %v489
      %v504 = vmul.f32 %v267, %v490
      %v505 = vmul.f32 %v268, %v489
      %v506 = vmul.f32 %v269, %v490
      %v507 = vmul.f32 %v270, %v489
      %v508 = vmul.f32 %v271, %v490
      %v509 = vmul.f32 %v272, %v489
      %v510 = vmul.f32 %v273, %v490
      %v511 = vmul.f32 %v274, %v489
      %v512 = vmul.f32 %v275, %v490
      %v513 = vmul.f32 %v276, %v489
      %v514 = vmul.f32 %v277, %v490
      %v515 = vmul.f32 %v278, %v489
      %v516 = vmul.f32 %v279, %v490
      %v517 = vmul.f32 %v280, %v489
      %v518 = vmul.f32 %v281, %v490
      %v519 = vmul.f32 %v282, %v489
      %v520 = vmul.f32 %v283, %v490
      %v521 = vmul.f32 %v284, %v489
      %v522 = vmul.f32 %v285, %v490
      %v523 = vmul.f32 %v286, %v489
      %v524 = vmul.f32 %v287, %v490
      %vm557 = vcmask 1045504
      %v558 = vrot.slane %v493, 2
      %v559 = vrot.slane %v495, 2
      %v560 = vsel %vm557, %v558, %v559
      %v561 = vrot.slane %v494, 2
      %v562 = vrot.slane %v496, 2
      %v563 = vsel %vm557, %v561, %v562
      %v564 = vrot.slane %v497, 2
      %v565 = vrot.slane %v499, 2
      %v566 = vsel %vm557, %v564, %v565
      %v567 = vrot.slane %v498, 2
      %v568 = vrot.slane %v500, 2
      %v569 = vsel %vm557, %v567, %v568
      %v570 = vrot.slane %v501, 2
      %v571 = vrot.slane %v503, 2
      %v572 = vsel %vm557, %v570, %v571
      %v573 = vrot.slane %v502, 2
      %v574 = vrot.slane %v504, 2
      %v575 = vsel %vm557, %v573, %v574
      %v576 = vrot.slane %v505, 2
      %v577 = vrot.slane %v507, 2
      %v578 = vsel %vm557, %v576, %v577
      %v579 = vrot.slane %v506, 2
      %v580 = vrot.slane %v508, 2
      %v581 = vsel %vm557, %v579, %v580
      %v582 = vrot.slane %v509, 2
      %v583 = vrot.slane %v511, 2
      %v584 = vsel %vm557, %v582, %v583
      %v585 = vrot.slane %v510, 2
      %v586 = vrot.slane %v512, 2
      %v587 = vsel %vm557, %v585, %v586
      %v588 = vrot.slane %v513, 2
      %v589 = vrot.slane %v515, 2
      %v590 = vsel %vm557, %v588, %v589
      %v591 = vrot.slane %v514, 2
      %v592 = vrot.slane %v516, 2
      %v593 = vsel %vm557, %v591, %v592
      %v594 = vrot.slane %v517, 2
      %v595 = vrot.slane %v519, 2
      %v596 = vsel %vm557, %v594, %v595
      %v597 = vrot.slane %v518, 2
      %v598 = vrot.slane %v520, 2
      %v599 = vsel %vm557, %v597, %v598
      %v600 = vrot.slane %v521, 2
      %v601 = vrot.slane %v523, 2
      %v602 = vsel %vm557, %v600, %v601
      %v603 = vrot.slane %v522, 2
      %v604 = vrot.slane %v524, 2
      %v605 = vsel %vm557, %v603, %v604
      %v622 = vadd.f32 %v470, %v560
      %v623 = vadd.f32 %v471, %v563
      %v624 = vadd.f32 %v472, %v566
      %v625 = vadd.f32 %v473, %v569
      %v626 = vadd.f32 %v474, %v572
      %v627 = vadd.f32 %v475, %v575
      %v628 = vadd.f32 %v476, %v578
      %v629 = vadd.f32 %v477, %v581
      %v630 = vadd.f32 %v478, %v584
      %v631 = vadd.f32 %v479, %v587
      %v632 = vadd.f32 %v480, %v590
      %v633 = vadd.f32 %v481, %v593
      %v634 = vadd.f32 %v482, %v596
      %v635 = vadd.f32 %v483, %v599
      %v636 = vadd.f32 %v484, %v602
      %v637 = vadd.f32 %v485, %v605
      %s638 = scalar_lea.vmem %s1, 8
      %v639 = vld [vmem:[%s638] ss:$4 sm:$0x3]
      %v641 = vperm.slane %v639, 0
      %v642 = vperm.slane %v639, 1
      %v645 = vmul.f32 %v260, %v641
      %v646 = vmul.f32 %v261, %v642
      %v647 = vmul.f32 %v264, %v641
      %v648 = vmul.f32 %v265, %v642
      %v649 = vmul.f32 %v268, %v641
      %v650 = vmul.f32 %v269, %v642
      %v651 = vmul.f32 %v272, %v641
      %v652 = vmul.f32 %v273, %v642
      %v653 = vmul.f32 %v276, %v641
      %v654 = vmul.f32 %v277, %v642
      %v655 = vmul.f32 %v280, %v641
      %v656 = vmul.f32 %v281, %v642
      %v657 = vmul.f32 %v284, %v641
      %v658 = vmul.f32 %v285, %v642
      %v659 = vmul.f32 %v288, %v641
      %v660 = vmul.f32 %v289, %v642
      %v661 = vadd.f32 %v622, %v645
      %v662 = vadd.f32 %v623, %v646
      %v663 = vadd.f32 %v624, %v647
      %v664 = vadd.f32 %v625, %v648
      %v665 = vadd.f32 %v626, %v649
      %v666 = vadd.f32 %v627, %v650
      %v667 = vadd.f32 %v628, %v651
      %v668 = vadd.f32 %v629, %v652
      %v669 = vadd.f32 %v630, %v653
      %v670 = vadd.f32 %v631, %v654
      %v671 = vadd.f32 %v632, %v655
      %v672 = vadd.f32 %v633, %v656
      %v673 = vadd.f32 %v634, %v657
      %v674 = vadd.f32 %v635, %v658
      %v675 = vadd.f32 %v636, %v659
      %v676 = vadd.f32 %v637, %v660
      %s677 = scalar_lea.vmem %s638, 1
      %v678 = vld [vmem:[%s677] ss:$4 sm:$0x3]
      %v680 = vperm.slane %v678, 0
      %v681 = vperm.slane %v678, 1
      %v684 = vmul.f32 %v260, %v680
      %v685 = vmul.f32 %v261, %v681
      %v686 = vmul.f32 %v262, %v680
      %v687 = vmul.f32 %v263, %v681
      %v688 = vmul.f32 %v264, %v680
      %v689 = vmul.f32 %v265, %v681
      %v690 = vmul.f32 %v266, %v680
      %v691 = vmul.f32 %v267, %v681
      %v692 = vmul.f32 %v268, %v680
      %v693 = vmul.f32 %v269, %v681
      %v694 = vmul.f32 %v270, %v680
      %v695 = vmul.f32 %v271, %v681
      %v696 = vmul.f32 %v272, %v680
      %v697 = vmul.f32 %v273, %v681
      %v698 = vmul.f32 %v274, %v680
      %v699 = vmul.f32 %v275, %v681
      %v700 = vmul.f32 %v276, %v680
      %v701 = vmul.f32 %v277, %v681
      %v702 = vmul.f32 %v278, %v680
      %v703 = vmul.f32 %v279, %v681
      %v704 = vmul.f32 %v280, %v680
      %v705 = vmul.f32 %v281, %v681
      %v706 = vmul.f32 %v282, %v680
      %v707 = vmul.f32 %v283, %v681
      %v708 = vmul.f32 %v284, %v680
      %v709 = vmul.f32 %v285, %v681
      %v710 = vmul.f32 %v286, %v680
      %v711 = vmul.f32 %v287, %v681
      %v712 = vmul.f32 %v288, %v680
      %v713 = vmul.f32 %v289, %v681
      %v714 = vmul.f32 %v290, %v680
      %v715 = vmul.f32 %v291, %v681
      %v748 = vrot.slane %v684, 1
      %v749 = vrot.slane %v686, 1
      %v750 = vsel %vm405, %v748, %v749
      %v751 = vrot.slane %v685, 1
      %v752 = vrot.slane %v687, 1
      %v753 = vsel %vm405, %v751, %v752
      %v754 = vrot.slane %v688, 1
      %v755 = vrot.slane %v690, 1
      %v756 = vsel %vm405, %v754, %v755
      %v757 = vrot.slane %v689, 1
      %v758 = vrot.slane %v691, 1
      %v759 = vsel %vm405, %v757, %v758
      %v760 = vrot.slane %v692, 1
      %v761 = vrot.slane %v694, 1
      %v762 = vsel %vm405, %v760, %v761
      %v763 = vrot.slane %v693, 1
      %v764 = vrot.slane %v695, 1
      %v765 = vsel %vm405, %v763, %v764
      %v766 = vrot.slane %v696, 1
      %v767 = vrot.slane %v698, 1
      %v768 = vsel %vm405, %v766, %v767
      %v769 = vrot.slane %v697, 1
      %v770 = vrot.slane %v699, 1
      %v771 = vsel %vm405, %v769, %v770
      %v772 = vrot.slane %v700, 1
      %v773 = vrot.slane %v702, 1
      %v774 = vsel %vm405, %v772, %v773
      %v775 = vrot.slane %v701, 1
      %v776 = vrot.slane %v703, 1
      %v777 = vsel %vm405, %v775, %v776
      %v778 = vrot.slane %v704, 1
      %v779 = vrot.slane %v706, 1
      %v780 = vsel %vm405, %v778, %v779
      %v781 = vrot.slane %v705, 1
      %v782 = vrot.slane %v707, 1
      %v783 = vsel %vm405, %v781, %v782
      %v784 = vrot.slane %v708, 1
      %v785 = vrot.slane %v710, 1
      %v786 = vsel %vm405, %v784, %v785
      %v787 = vrot.slane %v709, 1
      %v788 = vrot.slane %v711, 1
      %v789 = vsel %vm405, %v787, %v788
      %v790 = vrot.slane %v712, 1
      %v791 = vrot.slane %v714, 1
      %v792 = vsel %vm405, %v790, %v791
      %v793 = vrot.slane %v713, 1
      %v794 = vrot.slane %v715, 1
      %v795 = vsel %vm405, %v793, %v794
      %v812 = vadd.f32 %v661, %v750
      %v813 = vadd.f32 %v662, %v753
      %v814 = vadd.f32 %v663, %v756
      %v815 = vadd.f32 %v664, %v759
      %v816 = vadd.f32 %v665, %v762
      %v817 = vadd.f32 %v666, %v765
      %v818 = vadd.f32 %v667, %v768
      %v819 = vadd.f32 %v668, %v771
      %v820 = vadd.f32 %v669, %v774
      %v821 = vadd.f32 %v670, %v777
      %v822 = vadd.f32 %v671, %v780
      %v823 = vadd.f32 %v672, %v783
      %v824 = vadd.f32 %v673, %v786
      %v825 = vadd.f32 %v674, %v789
      %v826 = vadd.f32 %v675, %v792
      %v827 = vadd.f32 %v676, %v795
      %s828 = scalar_lea.vmem %s638, 2
      %v829 = vld [vmem:[%s828] ss:$4 sm:$0x3]
      %v831 = vperm.slane %v829, 0
      %v832 = vperm.slane %v829, 1
      %v835 = vmul.f32 %v260, %v831
      %v836 = vmul.f32 %v261, %v832
      %v837 = vmul.f32 %v262, %v831
      %v838 = vmul.f32 %v263, %v832
      %v839 = vmul.f32 %v264, %v831
      %v840 = vmul.f32 %v265, %v832
      %v841 = vmul.f32 %v266, %v831
      %v842 = vmul.f32 %v267, %v832
      %v843 = vmul.f32 %v268, %v831
      %v844 = vmul.f32 %v269, %v832
      %v845 = vmul.f32 %v270, %v831
      %v846 = vmul.f32 %v271, %v832
      %v847 = vmul.f32 %v272, %v831
      %v848 = vmul.f32 %v273, %v832
      %v849 = vmul.f32 %v274, %v831
      %v850 = vmul.f32 %v275, %v832
      %v851 = vmul.f32 %v276, %v831
      %v852 = vmul.f32 %v277, %v832
      %v853 = vmul.f32 %v278, %v831
      %v854 = vmul.f32 %v279, %v832
      %v855 = vmul.f32 %v280, %v831
      %v856 = vmul.f32 %v281, %v832
      %v857 = vmul.f32 %v282, %v831
      %v858 = vmul.f32 %v283, %v832
      %v859 = vmul.f32 %v284, %v831
      %v860 = vmul.f32 %v285, %v832
      %v861 = vmul.f32 %v286, %v831
      %v862 = vmul.f32 %v287, %v832
      %v863 = vmul.f32 %v288, %v831
      %v864 = vmul.f32 %v289, %v832
      %v865 = vmul.f32 %v290, %v831
      %v866 = vmul.f32 %v291, %v832
      %v899 = vrot.slane %v835, 2
      %v900 = vrot.slane %v837, 2
      %v901 = vsel %vm557, %v899, %v900
      %v902 = vrot.slane %v836, 2
      %v903 = vrot.slane %v838, 2
      %v904 = vsel %vm557, %v902, %v903
      %v905 = vrot.slane %v839, 2
      %v906 = vrot.slane %v841, 2
      %v907 = vsel %vm557, %v905, %v906
      %v908 = vrot.slane %v840, 2
      %v909 = vrot.slane %v842, 2
      %v910 = vsel %vm557, %v908, %v909
      %v911 = vrot.slane %v843, 2
      %v912 = vrot.slane %v845, 2
      %v913 = vsel %vm557, %v911, %v912
      %v914 = vrot.slane %v844, 2
      %v915 = vrot.slane %v846, 2
      %v916 = vsel %vm557, %v914, %v915
      %v917 = vrot.slane %v847, 2
      %v918 = vrot.slane %v849, 2
      %v919 = vsel %vm557, %v917, %v918
      %v920 = vrot.slane %v848, 2
      %v921 = vrot.slane %v850, 2
      %v922 = vsel %vm557, %v920, %v921
      %v923 = vrot.slane %v851, 2
      %v924 = vrot.slane %v853, 2
      %v925 = vsel %vm557, %v923, %v924
      %v926 = vrot.slane %v852, 2
      %v927 = vrot.slane %v854, 2
      %v928 = vsel %vm557, %v926, %v927
      %v929 = vrot.slane %v855, 2
      %v930 = vrot.slane %v857, 2
      %v931 = vsel %vm557, %v929, %v930
      %v932 = vrot.slane %v856, 2
      %v933 = vrot.slane %v858, 2
      %v934 = vsel %vm557, %v932, %v933
      %v935 = vrot.slane %v859, 2
      %v936 = vrot.slane %v861, 2
      %v937 = vsel %vm557, %v935, %v936
      %v938 = vrot.slane %v860, 2
      %v939 = vrot.slane %v862, 2
      %v940 = vsel %vm557, %v938, %v939
      %v941 = vrot.slane %v863, 2
      %v942 = vrot.slane %v865, 2
      %v943 = vsel %vm557, %v941, %v942
      %v944 = vrot.slane %v864, 2
      %v945 = vrot.slane %v866, 2
      %v946 = vsel %vm557, %v944, %v945
      %v963 = vadd.f32 %v812, %v901
      %v964 = vadd.f32 %v813, %v904
      %v965 = vadd.f32 %v814, %v907
      %v966 = vadd.f32 %v815, %v910
      %v967 = vadd.f32 %v816, %v913
      %v968 = vadd.f32 %v817, %v916
      %v969 = vadd.f32 %v818, %v919
      %v970 = vadd.f32 %v819, %v922
      %v971 = vadd.f32 %v820, %v925
      %v972 = vadd.f32 %v821, %v928
      %v973 = vadd.f32 %v822, %v931
      %v974 = vadd.f32 %v823, %v934
      %v975 = vadd.f32 %v824, %v937
      %v976 = vadd.f32 %v825, %v940
      %v977 = vadd.f32 %v826, %v943
      %v978 = vadd.f32 %v827, %v946
      %s979 = scalar_lea.vmem %s1, 16
      %v980 = vld [vmem:[%s979] ss:$4 sm:$0x3]
      %v982 = vperm.slane %v980, 0
      %v983 = vperm.slane %v980, 1
      %v986 = vmul.f32 %v264, %v982
      %v987 = vmul.f32 %v265, %v983
      %v988 = vmul.f32 %v268, %v982
      %v989 = vmul.f32 %v269, %v983
      %v990 = vmul.f32 %v272, %v982
      %v991 = vmul.f32 %v273, %v983
      %v992 = vmul.f32 %v276, %v982
      %v993 = vmul.f32 %v277, %v983
      %v994 = vmul.f32 %v280, %v982
      %v995 = vmul.f32 %v281, %v983
      %v996 = vmul.f32 %v284, %v982
      %v997 = vmul.f32 %v285, %v983
      %v998 = vmul.f32 %v288, %v982
      %v999 = vmul.f32 %v289, %v983
      %v1000 = vmul.f32 %v292, %v982
      %v1001 = vmul.f32 %v293, %v983
      %v1002 = vadd.f32 %v963, %v986
      %v1003 = vadd.f32 %v964, %v987
      %v1004 = vadd.f32 %v965, %v988
      %v1005 = vadd.f32 %v966, %v989
      %v1006 = vadd.f32 %v967, %v990
      %v1007 = vadd.f32 %v968, %v991
      %v1008 = vadd.f32 %v969, %v992
      %v1009 = vadd.f32 %v970, %v993
      %v1010 = vadd.f32 %v971, %v994
      %v1011 = vadd.f32 %v972, %v995
      %v1012 = vadd.f32 %v973, %v996
      %v1013 = vadd.f32 %v974, %v997
      %v1014 = vadd.f32 %v975, %v998
      %v1015 = vadd.f32 %v976, %v999
      %v1016 = vadd.f32 %v977, %v1000
      %v1017 = vadd.f32 %v978, %v1001
      %s1018 = scalar_lea.vmem %s979, 1
      %v1019 = vld [vmem:[%s1018] ss:$4 sm:$0x3]
      %v1021 = vperm.slane %v1019, 0
      %v1022 = vperm.slane %v1019, 1
      %v1025 = vmul.f32 %v264, %v1021
      %v1026 = vmul.f32 %v265, %v1022
      %v1027 = vmul.f32 %v266, %v1021
      %v1028 = vmul.f32 %v267, %v1022
      %v1029 = vmul.f32 %v268, %v1021
      %v1030 = vmul.f32 %v269, %v1022
      %v1031 = vmul.f32 %v270, %v1021
      %v1032 = vmul.f32 %v271, %v1022
      %v1033 = vmul.f32 %v272, %v1021
      %v1034 = vmul.f32 %v273, %v1022
      %v1035 = vmul.f32 %v274, %v1021
      %v1036 = vmul.f32 %v275, %v1022
      %v1037 = vmul.f32 %v276, %v1021
      %v1038 = vmul.f32 %v277, %v1022
      %v1039 = vmul.f32 %v278, %v1021
      %v1040 = vmul.f32 %v279, %v1022
      %v1041 = vmul.f32 %v280, %v1021
      %v1042 = vmul.f32 %v281, %v1022
      %v1043 = vmul.f32 %v282, %v1021
      %v1044 = vmul.f32 %v283, %v1022
      %v1045 = vmul.f32 %v284, %v1021
      %v1046 = vmul.f32 %v285, %v1022
      %v1047 = vmul.f32 %v286, %v1021
      %v1048 = vmul.f32 %v287, %v1022
      %v1049 = vmul.f32 %v288, %v1021
      %v1050 = vmul.f32 %v289, %v1022
      %v1051 = vmul.f32 %v290, %v1021
      %v1052 = vmul.f32 %v291, %v1022
      %v1053 = vmul.f32 %v292, %v1021
      %v1054 = vmul.f32 %v293, %v1022
      %v1055 = vmul.f32 %v294, %v1021
      %v1056 = vmul.f32 %v295, %v1022
      %v1089 = vrot.slane %v1025, 1
      %v1090 = vrot.slane %v1027, 1
      %v1091 = vsel %vm405, %v1089, %v1090
      %v1092 = vrot.slane %v1026, 1
      %v1093 = vrot.slane %v1028, 1
      %v1094 = vsel %vm405, %v1092, %v1093
      %v1095 = vrot.slane %v1029, 1
      %v1096 = vrot.slane %v1031, 1
      %v1097 = vsel %vm405, %v1095, %v1096
      %v1098 = vrot.slane %v1030, 1
      %v1099 = vrot.slane %v1032, 1
      %v1100 = vsel %vm405, %v1098, %v1099
      %v1101 = vrot.slane %v1033, 1
      %v1102 = vrot.slane %v1035, 1
      %v1103 = vsel %vm405, %v1101, %v1102
      %v1104 = vrot.slane %v1034, 1
      %v1105 = vrot.slane %v1036, 1
      %v1106 = vsel %vm405, %v1104, %v1105
      %v1107 = vrot.slane %v1037, 1
      %v1108 = vrot.slane %v1039, 1
      %v1109 = vsel %vm405, %v1107, %v1108
      %v1110 = vrot.slane %v1038, 1
      %v1111 = vrot.slane %v1040, 1
      %v1112 = vsel %vm405, %v1110, %v1111
      %v1113 = vrot.slane %v1041, 1
      %v1114 = vrot.slane %v1043, 1
      %v1115 = vsel %vm405, %v1113, %v1114
      %v1116 = vrot.slane %v1042, 1
      %v1117 = vrot.slane %v1044, 1
      %v1118 = vsel %vm405, %v1116, %v1117
      %v1119 = vrot.slane %v1045, 1
      %v1120 = vrot.slane %v1047, 1
      %v1121 = vsel %vm405, %v1119, %v1120
      %v1122 = vrot.slane %v1046, 1
      %v1123 = vrot.slane %v1048, 1
      %v1124 = vsel %vm405, %v1122, %v1123
      %v1125 = vrot.slane %v1049, 1
      %v1126 = vrot.slane %v1051, 1
      %v1127 = vsel %vm405, %v1125, %v1126
      %v1128 = vrot.slane %v1050, 1
      %v1129 = vrot.slane %v1052, 1
      %v1130 = vsel %vm405, %v1128, %v1129
      %v1131 = vrot.slane %v1053, 1
      %v1132 = vrot.slane %v1055, 1
      %v1133 = vsel %vm405, %v1131, %v1132
      %v1134 = vrot.slane %v1054, 1
      %v1135 = vrot.slane %v1056, 1
      %v1136 = vsel %vm405, %v1134, %v1135
      %v1153 = vadd.f32 %v1002, %v1091
      %v1154 = vadd.f32 %v1003, %v1094
      %v1155 = vadd.f32 %v1004, %v1097
      %v1156 = vadd.f32 %v1005, %v1100
      %v1157 = vadd.f32 %v1006, %v1103
      %v1158 = vadd.f32 %v1007, %v1106
      %v1159 = vadd.f32 %v1008, %v1109
      %v1160 = vadd.f32 %v1009, %v1112
      %v1161 = vadd.f32 %v1010, %v1115
      %v1162 = vadd.f32 %v1011, %v1118
      %v1163 = vadd.f32 %v1012, %v1121
      %v1164 = vadd.f32 %v1013, %v1124
      %v1165 = vadd.f32 %v1014, %v1127
      %v1166 = vadd.f32 %v1015, %v1130
      %v1167 = vadd.f32 %v1016, %v1133
      %v1168 = vadd.f32 %v1017, %v1136
      %s1169 = scalar_lea.vmem %s979, 2
      %v1170 = vld [vmem:[%s1169] ss:$4 sm:$0x3]
      %v1172 = vperm.slane %v1170, 0
      %v1173 = vperm.slane %v1170, 1
      %v1176 = vmul.f32 %v264, %v1172
      %v1177 = vmul.f32 %v265, %v1173
      %v1178 = vmul.f32 %v266, %v1172
      %v1179 = vmul.f32 %v267, %v1173
      %v1180 = vmul.f32 %v268, %v1172
      %v1181 = vmul.f32 %v269, %v1173
      %v1182 = vmul.f32 %v270, %v1172
      %v1183 = vmul.f32 %v271, %v1173
      %v1184 = vmul.f32 %v272, %v1172
      %v1185 = vmul.f32 %v273, %v1173
      %v1186 = vmul.f32 %v274, %v1172
      %v1187 = vmul.f32 %v275, %v1173
      %v1188 = vmul.f32 %v276, %v1172
      %v1189 = vmul.f32 %v277, %v1173
      %v1190 = vmul.f32 %v278, %v1172
      %v1191 = vmul.f32 %v279, %v1173
      %v1192 = vmul.f32 %v280, %v1172
      %v1193 = vmul.f32 %v281, %v1173
      %v1194 = vmul.f32 %v282, %v1172
      %v1195 = vmul.f32 %v283, %v1173
      %v1196 = vmul.f32 %v284, %v1172
      %v1197 = vmul.f32 %v285, %v1173
      %v1198 = vmul.f32 %v286, %v1172
      %v1199 = vmul.f32 %v287, %v1173
      %v1200 = vmul.f32 %v288, %v1172
      %v1201 = vmul.f32 %v289, %v1173
      %v1202 = vmul.f32 %v290, %v1172
      %v1203 = vmul.f32 %v291, %v1173
      %v1204 = vmul.f32 %v292, %v1172
      %v1205 = vmul.f32 %v293, %v1173
      %v1206 = vmul.f32 %v294, %v1172
      %v1207 = vmul.f32 %v295, %v1173
      %v1240 = vrot.slane %v1176, 2
      %v1241 = vrot.slane %v1178, 2
      %v1242 = vsel %vm557, %v1240, %v1241
      %v1243 = vrot.slane %v1177, 2
      %v1244 = vrot.slane %v1179, 2
      %v1245 = vsel %vm557, %v1243, %v1244
      %v1246 = vrot.slane %v1180, 2
      %v1247 = vrot.slane %v1182, 2
      %v1248 = vsel %vm557, %v1246, %v1247
      %v1249 = vrot.slane %v1181, 2
      %v1250 = vrot.slane %v1183, 2
      %v1251 = vsel %vm557, %v1249, %v1250
      %v1252 = vrot.slane %v1184, 2
      %v1253 = vrot.slane %v1186, 2
      %v1254 = vsel %vm557, %v1252, %v1253
      %v1255 = vrot.slane %v1185, 2
      %v1256 = vrot.slane %v1187, 2
      %v1257 = vsel %vm557, %v1255, %v1256
      %v1258 = vrot.slane %v1188, 2
      %v1259 = vrot.slane %v1190, 2
      %v1260 = vsel %vm557, %v1258, %v1259
      %v1261 = vrot.slane %v1189, 2
      %v1262 = vrot.slane %v1191, 2
      %v1263 = vsel %vm557, %v1261, %v1262
      %v1264 = vrot.slane %v1192, 2
      %v1265 = vrot.slane %v1194, 2
      %v1266 = vsel %vm557, %v1264, %v1265
      %v1267 = vrot.slane %v1193, 2
      %v1268 = vrot.slane %v1195, 2
      %v1269 = vsel %vm557, %v1267, %v1268
      %v1270 = vrot.slane %v1196, 2
      %v1271 = vrot.slane %v1198, 2
      %v1272 = vsel %vm557, %v1270, %v1271
      %v1273 = vrot.slane %v1197, 2
      %v1274 = vrot.slane %v1199, 2
      %v1275 = vsel %vm557, %v1273, %v1274
      %v1276 = vrot.slane %v1200, 2
      %v1277 = vrot.slane %v1202, 2
      %v1278 = vsel %vm557, %v1276, %v1277
      %v1279 = vrot.slane %v1201, 2
      %v1280 = vrot.slane %v1203, 2
      %v1281 = vsel %vm557, %v1279, %v1280
      %v1282 = vrot.slane %v1204, 2
      %v1283 = vrot.slane %v1206, 2
      %v1284 = vsel %vm557, %v1282, %v1283
      %v1285 = vrot.slane %v1205, 2
      %v1286 = vrot.slane %v1207, 2
      %v1287 = vsel %vm557, %v1285, %v1286
      %v1304 = vadd.f32 %v1153, %v1242
      %v1305 = vadd.f32 %v1154, %v1245
      %v1306 = vadd.f32 %v1155, %v1248
      %v1307 = vadd.f32 %v1156, %v1251
      %v1308 = vadd.f32 %v1157, %v1254
      %v1309 = vadd.f32 %v1158, %v1257
      %v1310 = vadd.f32 %v1159, %v1260
      %v1311 = vadd.f32 %v1160, %v1263
      %v1312 = vadd.f32 %v1161, %v1266
      %v1313 = vadd.f32 %v1162, %v1269
      %v1314 = vadd.f32 %v1163, %v1272
      %v1315 = vadd.f32 %v1164, %v1275
      %v1316 = vadd.f32 %v1165, %v1278
      %v1317 = vadd.f32 %v1166, %v1281
      %v1318 = vadd.f32 %v1167, %v1284
      %v1319 = vadd.f32 %v1168, %v1287
      %v1320 = vld [vmem:[%s2] sm:$0x3]
      %v1322 = vperm.slane %v1320, 0
      %v1323 = vperm.slane %v1320, 1
      %v1326 = vmul.f32 %v1304, %v1322
      %v1327 = vmul.f32 %v1305, %v1323
      %v1328 = vmul.f32 %v1306, %v1322
      %v1329 = vmul.f32 %v1307, %v1323
      %v1330 = vmul.f32 %v1308, %v1322
      %v1331 = vmul.f32 %v1309, %v1323
      %v1332 = vmul.f32 %v1310, %v1322
      %v1333 = vmul.f32 %v1311, %v1323
      %v1334 = vmul.f32 %v1312, %v1322
      %v1335 = vmul.f32 %v1313, %v1323
      %v1336 = vmul.f32 %v1314, %v1322
      %v1337 = vmul.f32 %v1315, %v1323
      %v1338 = vmul.f32 %v1316, %v1322
      %v1339 = vmul.f32 %v1317, %v1323
      %v1340 = vmul.f32 %v1318, %v1322
      %v1341 = vmul.f32 %v1319, %v1323
      %v1342 = vld [vmem:[%s3] sm:$0x3]
      %v1344 = vperm.slane %v1342, 0
      %v1345 = vperm.slane %v1342, 1
      %v1348 = vadd.f32 %v1326, %v1344
      %v1349 = vadd.f32 %v1327, %v1345
      %v1350 = vadd.f32 %v1328, %v1344
      %v1351 = vadd.f32 %v1329, %v1345
      %v1352 = vadd.f32 %v1330, %v1344
      %v1353 = vadd.f32 %v1331, %v1345
      %v1354 = vadd.f32 %v1332, %v1344
      %v1355 = vadd.f32 %v1333, %v1345
      %v1356 = vadd.f32 %v1334, %v1344
      %v1357 = vadd.f32 %v1335, %v1345
      %v1358 = vadd.f32 %v1336, %v1344
      %v1359 = vadd.f32 %v1337, %v1345
      %v1360 = vadd.f32 %v1338, %v1344
      %v1361 = vadd.f32 %v1339, %v1345
      %v1362 = vadd.f32 %v1340, %v1344
      %v1363 = vadd.f32 %v1341, %v1345
      %v1364 = vsub.f32 0.0, %v1348
      %v1365 = vsub.f32 0.0, %v1349
      %v1366 = vsub.f32 0.0, %v1350
      %v1367 = vsub.f32 0.0, %v1351
      %v1368 = vsub.f32 0.0, %v1352
      %v1369 = vsub.f32 0.0, %v1353
      %v1370 = vsub.f32 0.0, %v1354
      %v1371 = vsub.f32 0.0, %v1355
      %v1372 = vsub.f32 0.0, %v1356
      %v1373 = vsub.f32 0.0, %v1357
      %v1374 = vsub.f32 0.0, %v1358
      %v1375 = vsub.f32 0.0, %v1359
      %v1376 = vsub.f32 0.0, %v1360
      %v1377 = vsub.f32 0.0, %v1361
      %v1378 = vsub.f32 0.0, %v1362
      %v1379 = vsub.f32 0.0, %v1363
      %v1380 = vmul.f32 %v1364, 1.442695
      %v1381 = vpow.pop %v1380
      %v1382 = vmul.f32 %v1365, 1.442695
      %v1383 = vpow.pop %v1382
      %v1384 = vmul.f32 %v1366, 1.442695
      %v1385 = vpow.pop %v1384
      %v1386 = vmul.f32 %v1367, 1.442695
      %v1387 = vpow.pop %v1386
      %v1388 = vmul.f32 %v1368, 1.442695
      %v1389 = vpow.pop %v1388
      %v1390 = vmul.f32 %v1369, 1.442695
      %v1391 = vpow.pop %v1390
      %v1392 = vmul.f32 %v1370, 1.442695
      %v1393 = vpow.pop %v1392
      %v1394 = vmul.f32 %v1371, 1.442695
      %v1395 = vpow.pop %v1394
      %v1396 = vmul.f32 %v1372, 1.442695
      %v1397 = vpow.pop %v1396
      %v1398 = vmul.f32 %v1373, 1.442695
      %v1399 = vpow.pop %v1398
      %v1400 = vmul.f32 %v1374, 1.442695
      %v1401 = vpow.pop %v1400
      %v1402 = vmul.f32 %v1375, 1.442695
      %v1403 = vpow.pop %v1402
      %v1404 = vmul.f32 %v1376, 1.442695
      %v1405 = vpow.pop %v1404
      %v1406 = vmul.f32 %v1377, 1.442695
      %v1407 = vpow.pop %v1406
      %v1408 = vmul.f32 %v1378, 1.442695
      %v1409 = vpow.pop %v1408
      %v1410 = vmul.f32 %v1379, 1.442695
      %v1411 = vpow.pop %v1410
      %v1412 = vadd.f32 %v1381, 1.0
      %v1413 = vadd.f32 %v1383, 1.0
      %v1414 = vadd.f32 %v1385, 1.0
      %v1415 = vadd.f32 %v1387, 1.0
      %v1416 = vadd.f32 %v1389, 1.0
      %v1417 = vadd.f32 %v1391, 1.0
      %v1418 = vadd.f32 %v1393, 1.0
      %v1419 = vadd.f32 %v1395, 1.0
      %v1420 = vadd.f32 %v1397, 1.0
      %v1421 = vadd.f32 %v1399, 1.0
      %v1422 = vadd.f32 %v1401, 1.0
      %v1423 = vadd.f32 %v1403, 1.0
      %v1424 = vadd.f32 %v1405, 1.0
      %v1425 = vadd.f32 %v1407, 1.0
      %v1426 = vadd.f32 %v1409, 1.0
      %v1427 = vadd.f32 %v1411, 1.0
      %v1428 = vrcp.pop %v1412
      %v1429 = vrcp.pop %v1413
      %v1430 = vrcp.pop %v1414
      %v1431 = vrcp.pop %v1415
      %v1432 = vrcp.pop %v1416
      %v1433 = vrcp.pop %v1417
      %v1434 = vrcp.pop %v1418
      %v1435 = vrcp.pop %v1419
      %v1436 = vrcp.pop %v1420
      %v1437 = vrcp.pop %v1421
      %v1438 = vrcp.pop %v1422
      %v1439 = vrcp.pop %v1423
      %v1440 = vrcp.pop %v1424
      %v1441 = vrcp.pop %v1425
      %v1442 = vrcp.pop %v1426
      %v1443 = vrcp.pop %v1427
      %v1444 = vmul.f32 %v1348, %v1428
      %v1445 = vmul.f32 %v1349, %v1429
      %v1446 = vmul.f32 %v1350, %v1430
      %v1447 = vmul.f32 %v1351, %v1431
      %v1448 = vmul.f32 %v1352, %v1432
      %v1449 = vmul.f32 %v1353, %v1433
      %v1450 = vmul.f32 %v1354, %v1434
      %v1451 = vmul.f32 %v1355, %v1435
      %v1452 = vmul.f32 %v1356, %v1436
      %v1453 = vmul.f32 %v1357, %v1437
      %v1454 = vmul.f32 %v1358, %v1438
      %v1455 = vmul.f32 %v1359, %v1439
      %v1456 = vmul.f32 %v1360, %v1440
      %v1457 = vmul.f32 %v1361, %v1441
      %v1458 = vmul.f32 %v1362, %v1442
      %v1459 = vmul.f32 %v1363, %v1443
      %v1460 = vpack.c.bf16 %v1445, %v1444
      %v1461 = vpack.c.bf16 %v1447, %v1446
      %v1462 = vpack.c.bf16 %v1449, %v1448
      %v1463 = vpack.c.bf16 %v1451, %v1450
      %v1464 = vpack.c.bf16 %v1453, %v1452
      %v1465 = vpack.c.bf16 %v1455, %v1454
      %v1466 = vpack.c.bf16 %v1457, %v1456
      %v1467 = vpack.c.bf16 %v1459, %v1458
      %1468 = vst [vmem:[%s231] sm:$0xff] %v1460
      %1469 = vst [vmem:[%s231 + $0x8] sm:$0xff] %v1461
      %1470 = vst [vmem:[%s231 + $0x10] sm:$0xff] %v1462
      %1471 = vst [vmem:[%s231 + $0x18] sm:$0xff] %v1463
      %1472 = vst [vmem:[%s231 + $0x20] sm:$0xff] %v1464
      %1473 = vst [vmem:[%s231 + $0x28] sm:$0xff] %v1465
      %1474 = vst [vmem:[%s231 + $0x30] sm:$0xff] %v1466
      %1475 = vst [vmem:[%s231 + $0x38] sm:$0xff] %v1467
      %v1476 = vadd.f32 %v1444, %v1446
      %v1477 = vadd.f32 %v1476, %v1448
      %v1478 = vadd.f32 %v1477, %v1450
      %v1479 = vadd.f32 %v1478, %v1452
      %v1480 = vadd.f32 %v1479, %v1454
      %v1481 = vadd.f32 %v1480, %v1456
      %v1482 = vadd.f32 %v1481, %v1458
      %v1483 = vrot.slane %v1482, 4
      %v1484 = vadd.f32 %v1482, %v1483
      %v1485 = vrot.slane %v1484, 2
      %v1486 = vadd.f32 %v1484, %v1485
      %v1487 = vrot.slane %v1486, 1
      %v1488 = vadd.f32 %v1486, %v1487
      %v1489 = vadd.f32 %v1445, %v1447
      %v1490 = vadd.f32 %v1489, %v1449
      %v1491 = vadd.f32 %v1490, %v1451
      %v1492 = vadd.f32 %v1491, %v1453
      %v1493 = vadd.f32 %v1492, %v1455
      %v1494 = vadd.f32 %v1493, %v1457
      %v1495 = vadd.f32 %v1494, %v1459
      %v1496 = vrot.slane %v1495, 4
      %v1497 = vadd.f32 %v1495, %v1496
      %v1498 = vrot.slane %v1497, 2
      %v1499 = vadd.f32 %v1497, %v1498
      %v1500 = vrot.slane %v1499, 1
      %v1501 = vadd.f32 %v1499, %v1500
      %v1504 = vrot.slane %v1501, 7
      %vm1505 = vcmask 1040384
      %v1506 = vsel %vm1505, %v1488, %v1504
      %v1508 = vlaneseq
      %vm1509 = vcmp.ge.s32.totalorder %v1508, 0
      %vm1510 = vcmp.lt.s32.totalorder %v1508, 256
      %vm1511 = vmand %vm1509, %vm1510
      %1512 = vst.msk [vmem:[%s235] sm:$0x3] %vm1511, %v1506
      %p1513 = scmp.lt.s32.totalorder %s17, 1
      %s1514 = scalar_select %p1513, %s17, 1
      %s1515 = smul.addr %s1514, 16
      %s1516 = smul.addr %s1515, 4
      %s1517 = scalar_lea.vmem %s4, %s1516
      %p1518 = scmp.lt.s32.totalorder %s17, 1
      %s1519 = scalar_select %p1518, %s17, 1
      %s1520 = smul.addr %s1519, 2
      %s1521 = scalar_lea.vmem %s5, %s1520
      // Predicated region
      $region37: #{sen_forward.8} parent=35 // pred_check
        %p1522 = pneg %p124
      $region38: #{sen_forward.8} parent=35 // pred_check_branch
        %1524 = sbr.rel (%p1522) target = $region40
      $region39: #{sen_forward.8} parent=35 // pred_region
        _
      $region40: #{sen_forward.8} parent=35 // pred_fallthru
        _
      // Predicated region
      $region41: #{sen_forward.8} parent=35 // pred_check
        %p1525 = pneg %p150
      $region42: #{sen_forward.8} parent=35 // pred_check_branch
        %1527 = sbr.rel (%p1525) target = $region44
      $region43: #{sen_forward.8} parent=35 // pred_region
        _
      $region44: #{sen_forward.8} parent=35 // pred_fallthru
        _
    $region36: #{sen_forward.8} parent=5 // pred_fallthru
      _
    %p1528 = scmp.le.s32.totalorder 2, %s12
    // Predicated region
    $region45: #{sen_forward.8} parent=5 // pred_check
      %p1529 = pneg %p1528
    $region46: #{sen_forward.8} parent=5 // pred_check_branch
      %1531 = sbr.rel (%p1529) target = $region48
    $region47: #{sen_forward.8} parent=5 // pred_region
      %s1532 = ssub.s32 %s12, 2
      // Predicated region
      $region49: #{sen_forward.8} parent=47 // pred_check
        %p1533 = pneg %p130
      $region50: #{sen_forward.8} parent=47 // pred_check_branch
        %1535 = sbr.rel (%p1533) target = $region52
      $region51: #{sen_forward.8} parent=47 // pred_region
        %p1536 = scmp.lt.s32.totalorder %s18, 1
        %s1537 = scalar_select %p1536, %s18, 1
        %s1538 = smul.addr %s1537, 16
        %s1539 = smul.addr %s1538, 4
        %s1540 = scalar_lea.vmem %s4, %s1539
      $region52: #{sen_forward.8} parent=47 // pred_fallthru
        _
      // Predicated region
      $region53: #{sen_forward.8} parent=47 // pred_check
        %p1541 = pneg %p156
      $region54: #{sen_forward.8} parent=47 // pred_check_branch
        %1543 = sbr.rel (%p1541) target = $region56
      $region55: #{sen_forward.8} parent=47 // pred_region
        %p1544 = scmp.lt.s32.totalorder %s18, 1
        %s1545 = scalar_select %p1544, %s18, 1
        %s1546 = smul.addr %s1545, 2
        %s1547 = scalar_lea.vmem %s5, %s1546
      $region56: #{sen_forward.8} parent=47 // pred_fallthru
        _
    $region48: #{sen_forward.8} parent=5 // pred_fallthru
      _
  $region6: #{sen_forward.8} parent=0 // loop_footer
    %s16 = sadd.s32 1, %s12
  $region7: #{sen_forward.8} parent=0 // loop_footer_branch
    %11 = sbr.rel target = $region3
  $region8: #{sen_forward.8} parent=0 // loop_exit
    _

// kernel: sen_forward.10
$region0: #{sen_forward.10}
  #allocation0 [shape = 'u32[]', space=smem, size = 0x4, offset = 0x4, fixed_abs, tag = 'smem constant byte address 0x4 - core index']
  #allocation1 [shape = 'u32[72,128]{1,0:T(1,128)}', space=vmem, size = 0x9000, scoped, tag = 'internal scratch']
  %s0 = inlined_call_operand.vmem [shape: bf16[2,64,256], index: 0, kind: input, shape index: {}]
  %s1 = inlined_call_operand.vmem [shape: f32[2,1,256], index: 1, kind: input, shape index: {}]
  %s2 = inlined_call_operand.vmem [shape: bf16[256,128], index: 2, kind: input, shape index: {}]
  %s3 = inlined_call_operand.vmem [shape: f32[1,128], index: 3, kind: input, shape index: {}]
  %s4 = inlined_call_operand.vmem [shape: f32[1,128], index: 4, kind: input, shape index: {}]
  %s5 = inlined_call_operand.vmem [shape: bf16[2,64,128], index: 5, kind: output, shape index: {}]
  %s6 = sld [smem:[#allocation0]]
  $region53: #{sen_forward.10} parent=0
    _
  %s8 = ssub.s32 1, %s6
  %s9 = scalar_select 0, %s8, %s6
  loop: start=0, step=1, limit=4
  $region2: #{sen_forward.10} parent=0 // loop_pre_header
    _
  $region3: #{sen_forward.10} parent=0 // loop_header
    %s11 = sphi 0, %s15
    %p12 = scmp.ge.s32.totalorder %s11, 4
    %s18 = sphi 0, %s30
    %s19 = sphi 0, %s26
    %s20 = sphi 0, %s18
    %s21 = sphi 0, %s19
    %s22 = sphi 0, %s20
    %s23 = sphi 0, %s21
    %s35 = sphi 0, %s37
    %s38 = sphi 0, %s35
    %s39 = sphi 0, %s38
    %s55 = sphi 0, %s39
    %s61 = sphi 0, %s63
    %s64 = sphi 0, %s61
    %s65 = sphi 0, %s64
    %s81 = sphi 0, %s65
    %s85 = sphi 0, %s85
    %s87 = sphi 0, %s85
    %s88 = sphi 0, %s87
    %s102 = sphi 0, %s88
    %s106 = sphi 0, %s106
    %s108 = sphi 0, %s106
    %s109 = sphi 0, %s108
    %s123 = sphi 0, %s109
    %s127 = sphi 0, %s127
    %s129 = sphi 0, %s127
    %s130 = sphi 0, %s129
    %s144 = sphi 0, %s130
    %s152 = sphi 0, %s154
    %s155 = sphi 0, %s152
    %s156 = sphi 0, %s155
    %s172 = sphi 0, %s156
  $region4: #{sen_forward.10} parent=0 // loop_header_branch
    %14 = sbr.rel (%p12) target = $region8
  $region5: #{sen_forward.10} parent=0 // loop_body
    %s16 = ssub.s32 %s11, 1
    %s17 = ssub.s32 %s11, 2
    %s24 = sadd.s32 1, %s19
    %p25 = scmp.ge.s32.totalorder %s24, 1
    %s26 = scalar_select %p25, 0, %s24
    %s27 = sadd.s32 1, %s18
    %s28 = scalar_select %p25, %s27, %s18
    %p29 = scmp.ge.s32.totalorder %s28, 2
    %s30 = scalar_select %p29, 0, %s28
    %s31 = ssub.s32 %s18, %s30
    %s32 = ssub.s32 %s19, %s26
    %s33 = sor.u32 %s31, %s32
    %p34 = scmp.eq.s32.totalorder %s33, 0
    %s36 = sadd.s32 %s35, 1
    %s37 = scalar_select %p34, %s35, %s36
    %p40 = pneg %p34
    %p41 = scmp.eq.s32.totalorder %s11, 1
    %p42 = por %p40, %p41
    %p43 = scmp.ne.s32.totalorder %s35, %s38
    %p44 = scmp.eq.s32.totalorder %s11, 0
    %p45 = por %p43, %p44
    %p46 = scmp.ne.s32.totalorder %s35, %s38
    %p47 = scmp.eq.s32.totalorder %s16, 1
    %p48 = por %p46, %p47
    %p49 = scmp.ne.s32.totalorder %s38, %s39
    %p50 = scmp.eq.s32.totalorder %s16, 0
    %p51 = por %p49, %p50
    %p52 = scmp.ne.s32.totalorder %s38, %s39
    %p53 = scmp.eq.s32.totalorder %s17, 1
    %p54 = por %p52, %p53
    %p56 = scmp.ne.s32.totalorder %s39, %s55
    %p57 = scmp.eq.s32.totalorder %s17, 0
    %p58 = por %p56, %p57
    %s59 = ssub.s32 %s18, %s30
    %p60 = scmp.eq.s32.totalorder %s59, 0
    %s62 = sadd.s32 %s61, 1
    %s63 = scalar_select %p60, %s61, %s62
    %p66 = pneg %p60
    %p67 = scmp.eq.s32.totalorder %s11, 1
    %p68 = por %p66, %p67
    %p69 = scmp.ne.s32.totalorder %s61, %s64
    %p70 = scmp.eq.s32.totalorder %s11, 0
    %p71 = por %p69, %p70
    %p72 = scmp.ne.s32.totalorder %s61, %s64
    %p73 = scmp.eq.s32.totalorder %s16, 1
    %p74 = por %p72, %p73
    %p75 = scmp.ne.s32.totalorder %s64, %s65
    %p76 = scmp.eq.s32.totalorder %s16, 0
    %p77 = por %p75, %p76
    %p78 = scmp.ne.s32.totalorder %s64, %s65
    %p79 = scmp.eq.s32.totalorder %s17, 1
    %p80 = por %p78, %p79
    %p82 = scmp.ne.s32.totalorder %s65, %s81
    %p83 = scmp.eq.s32.totalorder %s17, 0
    %p84 = por %p82, %p83
    %s86 = sadd.s32 %s85, 1
    %p89 = scmp.eq.s32.totalorder %s11, 1
    %p90 = scmp.ne.s32.totalorder %s85, %s87
    %p91 = scmp.eq.s32.totalorder %s11, 0
    %p92 = por %p90, %p91
    %p93 = scmp.ne.s32.totalorder %s85, %s87
    %p94 = scmp.eq.s32.totalorder %s16, 1
    %p95 = por %p93, %p94
    %p96 = scmp.ne.s32.totalorder %s87, %s88
    %p97 = scmp.eq.s32.totalorder %s16, 0
    %p98 = por %p96, %p97
    %p99 = scmp.ne.s32.totalorder %s87, %s88
    %p100 = scmp.eq.s32.totalorder %s17, 1
    %p101 = por %p99, %p100
    %p103 = scmp.ne.s32.totalorder %s88, %s102
    %p104 = scmp.eq.s32.totalorder %s17, 0
    %p105 = por %p103, %p104
    %s107 = sadd.s32 %s106, 1
    %p110 = scmp.eq.s32.totalorder %s11, 1
    %p111 = scmp.ne.s32.totalorder %s106, %s108
    %p112 = scmp.eq.s32.totalorder %s11, 0
    %p113 = por %p111, %p112
    %p114 = scmp.ne.s32.totalorder %s106, %s108
    %p115 = scmp.eq.s32.totalorder %s16, 1
    %p116 = por %p114, %p115
    %p117 = scmp.ne.s32.totalorder %s108, %s109
    %p118 = scmp.eq.s32.totalorder %s16, 0
    %p119 = por %p117, %p118
    %p120 = scmp.ne.s32.totalorder %s108, %s109
    %p121 = scmp.eq.s32.totalorder %s17, 1
    %p122 = por %p120, %p121
    %p124 = scmp.ne.s32.totalorder %s109, %s123
    %p125 = scmp.eq.s32.totalorder %s17, 0
    %p126 = por %p124, %p125
    %s128 = sadd.s32 %s127, 1
    %p131 = scmp.eq.s32.totalorder %s11, 1
    %p132 = scmp.ne.s32.totalorder %s127, %s129
    %p133 = scmp.eq.s32.totalorder %s11, 0
    %p134 = por %p132, %p133
    %p135 = scmp.ne.s32.totalorder %s127, %s129
    %p136 = scmp.eq.s32.totalorder %s16, 1
    %p137 = por %p135, %p136
    %p138 = scmp.ne.s32.totalorder %s129, %s130
    %p139 = scmp.eq.s32.totalorder %s16, 0
    %p140 = por %p138, %p139
    %p141 = scmp.ne.s32.totalorder %s129, %s130
    %p142 = scmp.eq.s32.totalorder %s17, 1
    %p143 = por %p141, %p142
    %p145 = scmp.ne.s32.totalorder %s130, %s144
    %p146 = scmp.eq.s32.totalorder %s17, 0
    %p147 = por %p145, %p146
    %s148 = ssub.s32 %s18, %s30
    %s149 = ssub.s32 %s19, %s26
    %s150 = sor.u32 %s148, %s149
    %p151 = scmp.eq.s32.totalorder %s150, 0
    %s153 = sadd.s32 %s152, 1
    %s154 = scalar_select %p151, %s152, %s153
    %p157 = pneg %p151
    %p158 = scmp.eq.s32.totalorder %s11, 1
    %p159 = por %p157, %p158
    %p160 = scmp.ne.s32.totalorder %s152, %s155
    %p161 = scmp.eq.s32.totalorder %s11, 0
    %p162 = por %p160, %p161
    %p163 = scmp.ne.s32.totalorder %s152, %s155
    %p164 = scmp.eq.s32.totalorder %s16, 1
    %p165 = por %p163, %p164
    %p166 = scmp.ne.s32.totalorder %s155, %s156
    %p167 = scmp.eq.s32.totalorder %s16, 0
    %p168 = por %p166, %p167
    %p169 = scmp.ne.s32.totalorder %s155, %s156
    %p170 = scmp.eq.s32.totalorder %s17, 1
    %p171 = por %p169, %p170
    %p173 = scmp.ne.s32.totalorder %s156, %s172
    %p174 = scmp.eq.s32.totalorder %s17, 0
    %p175 = por %p173, %p174
    %p176 = scmp.le.s32.totalorder 1, %s11
    %p177 = scmp.lt.s32.totalorder %s11, 3
    %p178 = pnand %p176, %p177
    %p179 = pneg %p178
    // Predicated region
    $region9: #{sen_forward.10} parent=5 // pred_check
      _
    $region10: #{sen_forward.10} parent=5 // pred_check_branch
      %181 = sbr.rel (%p178) target = $region12
    $region11: #{sen_forward.10} parent=5 // pred_region
      %s182 = ssub.s32 %s11, 1
      // Predicated region
      $region13: #{sen_forward.10} parent=11 // pred_check
        %p183 = pneg %p98
      $region14: #{sen_forward.10} parent=11 // pred_check_branch
        %185 = sbr.rel (%p183) target = $region16
      $region15: #{sen_forward.10} parent=11 // pred_region
        _
      $region16: #{sen_forward.10} parent=11 // pred_fallthru
        _
      // Predicated region
      $region17: #{sen_forward.10} parent=11 // pred_check
        %p186 = pneg %p119
      $region18: #{sen_forward.10} parent=11 // pred_check_branch
        %188 = sbr.rel (%p186) target = $region20
      $region19: #{sen_forward.10} parent=11 // pred_region
        _
      $region20: #{sen_forward.10} parent=11 // pred_fallthru
        _
      // Predicated region
      $region21: #{sen_forward.10} parent=11 // pred_check
        %p189 = pneg %p140
      $region22: #{sen_forward.10} parent=11 // pred_check_branch
        %191 = sbr.rel (%p189) target = $region24
      $region23: #{sen_forward.10} parent=11 // pred_region
        _
      $region24: #{sen_forward.10} parent=11 // pred_fallthru
        _
    $region12: #{sen_forward.10} parent=5 // pred_fallthru
      _
    %p192 = scmp.lt.s32.totalorder %s11, 2
    // Predicated region
    $region25: #{sen_forward.10} parent=5 // pred_check
      %p193 = pneg %p192
    $region26: #{sen_forward.10} parent=5 // pred_check_branch
      %195 = sbr.rel (%p193) target = $region28
    $region27: #{sen_forward.10} parent=5 // pred_region
      // Predicated region
      $region29: #{sen_forward.10} parent=27 // pred_check
        %p196 = pneg %p45
      $region30: #{sen_forward.10} parent=27 // pred_check_branch
        %198 = sbr.rel (%p196) target = $region32
      $region31: #{sen_forward.10} parent=27 // pred_region
        %s199 = smul.u32 8, %s19
        %p200 = scmp.lt.s32.totalorder %s18, 1
        %s201 = scalar_select %p200, %s18, 1
        %p202 = scmp.lt.s32.totalorder %s199, 7
        %s203 = scalar_select %p202, %s199, 7
        %s204 = smul.addr %s203, 2
        %s205 = smul.addr %s201, 16
        %s206 = sadd.s32 %s204, %s205
        %s207 = smul.addr %s206, 4
        %s208 = scalar_lea.vmem %s0, %s207
        %s209 = smul.u32 8, %s19
      $region32: #{sen_forward.10} parent=27 // pred_fallthru
        _
      // Predicated region
      $region33: #{sen_forward.10} parent=27 // pred_check
        %p210 = pneg %p71
      $region34: #{sen_forward.10} parent=27 // pred_check_branch
        %212 = sbr.rel (%p210) target = $region36
      $region35: #{sen_forward.10} parent=27 // pred_region
        %p213 = scmp.lt.s32.totalorder %s18, 1
        %s214 = scalar_select %p213, %s18, 1
        %s215 = smul.addr %s214, 2
        %s216 = scalar_lea.vmem %s1, %s215
      $region36: #{sen_forward.10} parent=27 // pred_fallthru
        _
    $region28: #{sen_forward.10} parent=5 // pred_fallthru
      _
    %p217 = scmp.le.s32.totalorder 1, %s11
    %p218 = scmp.lt.s32.totalorder %s11, 3
    %p219 = pnand %p217, %p218
    %p220 = pneg %p219
    // Predicated region
    $region37: #{sen_forward.10} parent=5 // pred_check
      _
    $region38: #{sen_forward.10} parent=5 // pred_check_branch
      %222 = sbr.rel (%p219) target = $region40
    $region39: #{sen_forward.10} parent=5 // pred_region
      %s223 = ssub.s32 %s11, 1
      %s224 = smul.u32 8, %s21
      %p225 = scmp.lt.s32.totalorder %s20, 1
      %s226 = scalar_select %p225, %s20, 1
      %p227 = scmp.lt.s32.totalorder %s224, 7
      %s228 = scalar_select %p227, %s224, 7
      %s229 = smul.addr %s228, 2
      %s230 = smul.addr %s226, 16
      %s231 = sadd.s32 %s229, %s230
      %s232 = smul.addr %s231, 4
      %s233 = scalar_lea.vmem %s0, %s232
      %p234 = pneg %p51
      %p235 = pneg %p48
      %p236 = scmp.lt.s32.totalorder %s20, 1
      %s237 = scalar_select %p236, %s20, 1
      %s238 = smul.addr %s237, 2
      %s239 = scalar_lea.vmem %s1, %s238
      %p240 = pneg %p77
      %p241 = pneg %p74
      %p242 = pneg %p98
      %p243 = pneg %p95
      %p244 = pneg %p119
      %p245 = pneg %p116
      %p246 = pneg %p140
      %p247 = pneg %p137
      %p248 = pneg %p168
      %p249 = pneg %p165
      %s250 = smul.u32 8, %s21
      %p251 = scmp.lt.s32.totalorder %s20, 1
      %s252 = scalar_select %p251, %s20, 1
      %p253 = scmp.lt.s32.totalorder %s250, 7
      %s254 = scalar_select %p253, %s250, 7
      %s255 = smul.addr %s252, 8
      %s256 = sadd.s32 %s254, %s255
      %s257 = smul.addr %s256, 4
      %s258 = scalar_lea.vmem %s5, %s257
      %s259 = smul.u32 8, %s21
      %p260 = scmp.lt.s32.totalorder %s20, 1
      %s261 = scalar_select %p260, %s20, 1
      %p262 = scmp.lt.s32.totalorder %s259, 7
      %s263 = scalar_select %p262, %s259, 7
      %s264 = smul.addr %s263, 2
      %s265 = smul.addr %s261, 16
      %s266 = sadd.s32 %s264, %s265
      %s267 = smul.addr %s266, 4
      %s268 = scalar_lea.vmem %s0, %s267
      %s269 = smul.u32 8, %s21
      %p270 = scmp.lt.s32.totalorder %s20, 1
      %s271 = scalar_select %p270, %s20, 1
      %s272 = smul.addr %s271, 2
      %s273 = scalar_lea.vmem %s1, %s272
      %s274 = smul.u32 8, %s21
      %p275 = scmp.lt.s32.totalorder %s20, 1
      %s276 = scalar_select %p275, %s20, 1
      %p277 = scmp.lt.s32.totalorder %s274, 7
      %s278 = scalar_select %p277, %s274, 7
      %s279 = smul.addr %s276, 8
      %s280 = sadd.s32 %s278, %s279
      %s281 = smul.addr %s280, 4
      %s282 = scalar_lea.vmem %s5, %s281
      %s283 = smul.u32 8, %s21
      %v284 = vld [vmem:[%s268] sm:$0xff]
      %v285 = vld [vmem:[%s268 + $0x8] sm:$0xff]
      %v286 = vld [vmem:[%s268 + $0x10] sm:$0xff]
      %v287 = vld [vmem:[%s268 + $0x18] sm:$0xff]
      %v288 = vld [vmem:[%s268 + $0x20] sm:$0xff]
      %v289 = vld [vmem:[%s268 + $0x28] sm:$0xff]
      %v290 = vld [vmem:[%s268 + $0x30] sm:$0xff]
      %v291 = vld [vmem:[%s268 + $0x38] sm:$0xff]
      %v292 = vunpack.c.l.bf16 %v284
      %v293 = vunpack.c.h.bf16 %v284
      %v294 = vunpack.c.l.bf16 %v285
      %v295 = vunpack.c.h.bf16 %v285
      %v296 = vunpack.c.l.bf16 %v286
      %v297 = vunpack.c.h.bf16 %v286
      %v298 = vunpack.c.l.bf16 %v287
      %v299 = vunpack.c.h.bf16 %v287
      %v300 = vunpack.c.l.bf16 %v288
      %v301 = vunpack.c.h.bf16 %v288
      %v302 = vunpack.c.l.bf16 %v289
      %v303 = vunpack.c.h.bf16 %v289
      %v304 = vunpack.c.l.bf16 %v290
      %v305 = vunpack.c.h.bf16 %v290
      %v306 = vunpack.c.l.bf16 %v291
      %v307 = vunpack.c.h.bf16 %v291
      %v308 = vld [vmem:[%s273] sm:$0x3]
      %v310 = vperm.slane %v308, 0
      %v311 = vperm.slane %v308, 1
      %v314 = vmul.f32 %v292, %v310
      %v315 = vmul.f32 %v293, %v311
      %v316 = vmul.f32 %v294, %v310
      %v317 = vmul.f32 %v295, %v311
      %v318 = vmul.f32 %v296, %v310
      %v319 = vmul.f32 %v297, %v311
      %v320 = vmul.f32 %v298, %v310
      %v321 = vmul.f32 %v299, %v311
      %v322 = vmul.f32 %v300, %v310
      %v323 = vmul.f32 %v301, %v311
      %v324 = vmul.f32 %v302, %v310
      %v325 = vmul.f32 %v303, %v311
      %v326 = vmul.f32 %v304, %v310
      %v327 = vmul.f32 %v305, %v311
      %v328 = vmul.f32 %v306, %v310
      %v329 = vmul.f32 %v307, %v311
      %v330 = vpack.c.bf16 %v316, %v314
      %v331 = vpack.c.bf16 %v317, %v315
      %v332 = vpack.c.bf16 %v320, %v318
      %v333 = vpack.c.bf16 %v321, %v319
      %v334 = vpack.c.bf16 %v324, %v322
      %v335 = vpack.c.bf16 %v325, %v323
      %v336 = vpack.c.bf16 %v328, %v326
      %v337 = vpack.c.bf16 %v329, %v327
      %v338 = vld [vmem:[%s2] sm:$0xf]
      %v339 = vld [vmem:[%s2 + $0x4] sm:$0xf]
      %v340 = vld [vmem:[%s2 + $0x8] sm:$0xf]
      %v341 = vld [vmem:[%s2 + $0xc] sm:$0xf]
      %v342 = vld [vmem:[%s2 + $0x10] sm:$0xf]
      %v343 = vld [vmem:[%s2 + $0x14] sm:$0xf]
      %v344 = vld [vmem:[%s2 + $0x18] sm:$0xf]
      %v345 = vld [vmem:[%s2 + $0x1c] sm:$0xf]
      %v346 = vld [vmem:[%s2 + $0x20] sm:$0xf]
      %v347 = vld [vmem:[%s2 + $0x24] sm:$0xf]
      %v348 = vld [vmem:[%s2 + $0x28] sm:$0xf]
      %v349 = vld [vmem:[%s2 + $0x2c] sm:$0xf]
      %v350 = vld [vmem:[%s2 + $0x30] sm:$0xf]
      %v351 = vld [vmem:[%s2 + $0x34] sm:$0xf]
      %v352 = vld [vmem:[%s2 + $0x38] sm:$0xf]
      %v353 = vld [vmem:[%s2 + $0x3c] sm:$0xf]
      %v354 = vld [vmem:[%s2 + $0x40] sm:$0xf]
      %v355 = vld [vmem:[%s2 + $0x44] sm:$0xf]
      %v356 = vld [vmem:[%s2 + $0x48] sm:$0xf]
      %v357 = vld [vmem:[%s2 + $0x4c] sm:$0xf]
      %v358 = vld [vmem:[%s2 + $0x50] sm:$0xf]
      %v359 = vld [vmem:[%s2 + $0x54] sm:$0xf]
      %v360 = vld [vmem:[%s2 + $0x58] sm:$0xf]
      %v361 = vld [vmem:[%s2 + $0x5c] sm:$0xf]
      %v362 = vld [vmem:[%s2 + $0x60] sm:$0xf]
      %v363 = vld [vmem:[%s2 + $0x64] sm:$0xf]
      %v364 = vld [vmem:[%s2 + $0x68] sm:$0xf]
      %v365 = vld [vmem:[%s2 + $0x6c] sm:$0xf]
      %v366 = vld [vmem:[%s2 + $0x70] sm:$0xf]
      %v367 = vld [vmem:[%s2 + $0x74] sm:$0xf]
      %v368 = vld [vmem:[%s2 + $0x78] sm:$0xf]
      %v369 = vld [vmem:[%s2 + $0x7c] sm:$0xf]
      %v402 = vunpack.c.l.b16 %v338
      %v403 = vunpack.c.l.b16 %v339
      %v404 = vunpack.c.l.b16 %v340
      %v405 = vunpack.c.l.b16 %v341
      %v406 = vunpack.c.l.b16 %v342
      %v407 = vunpack.c.l.b16 %v343
      %v408 = vunpack.c.l.b16 %v344
      %v409 = vunpack.c.l.b16 %v345
      %v410 = vunpack.c.l.b16 %v346
      %v411 = vunpack.c.l.b16 %v347
      %v412 = vunpack.c.l.b16 %v348
      %v413 = vunpack.c.l.b16 %v349
      %v414 = vunpack.c.l.b16 %v350
      %v415 = vunpack.c.l.b16 %v351
      %v416 = vunpack.c.l.b16 %v352
      %v417 = vunpack.c.l.b16 %v353
      %v418 = vunpack.c.l.b16 %v354
      %v419 = vunpack.c.l.b16 %v355
      %v420 = vunpack.c.l.b16 %v356
      %v421 = vunpack.c.l.b16 %v357
      %v422 = vunpack.c.l.b16 %v358
      %v423 = vunpack.c.l.b16 %v359
      %v424 = vunpack.c.l.b16 %v360
      %v425 = vunpack.c.l.b16 %v361
      %v426 = vunpack.c.l.b16 %v362
      %v427 = vunpack.c.l.b16 %v363
      %v428 = vunpack.c.l.b16 %v364
      %v429 = vunpack.c.l.b16 %v365
      %v430 = vunpack.c.l.b16 %v366
      %v431 = vunpack.c.l.b16 %v367
      %v432 = vunpack.c.l.b16 %v368
      %v433 = vunpack.c.l.b16 %v369
      %v434 = vpack.c.b16 %v403, %v402
      %v435 = vpack.c.b16 %v405, %v404
      %v436 = vpack.c.b16 %v407, %v406
      %v437 = vpack.c.b16 %v409, %v408
      %v438 = vpack.c.b16 %v411, %v410
      %v439 = vpack.c.b16 %v413, %v412
      %v440 = vpack.c.b16 %v415, %v414
      %v441 = vpack.c.b16 %v417, %v416
      %v442 = vpack.c.b16 %v419, %v418
      %v443 = vpack.c.b16 %v421, %v420
      %v444 = vpack.c.b16 %v423, %v422
      %v445 = vpack.c.b16 %v425, %v424
      %v446 = vpack.c.b16 %v427, %v426
      %v447 = vpack.c.b16 %v429, %v428
      %v448 = vpack.c.b16 %v431, %v430
      %v449 = vpack.c.b16 %v433, %v432
      %466 = vmatpush.bf16.msra.mxu0 %v441
      %467 = vmatpush.bf16.msra.mxu0 %v440
      %468 = vmatpush.bf16.msra.mxu0 %v439
      %469 = vmatpush.bf16.msra.mxu0 %v438
      %470 = vmatpush.bf16.msra.mxu0 %v437
      %471 = vmatpush.bf16.msra.mxu0 %v436
      %472 = vmatpush.bf16.msra.mxu0 %v435
      %473 = vmatpush.bf16.msra.mxu0 %v434
      %474 = vmatmul.bf16.gmra.mxu0 %v330
      %v475 = vpop.f32.mrf.mxu0
      %v476 = vadd.f32 0.0, %v475
      %v477 = vpop.f32.mrf.mxu0
      %v478 = vadd.f32 0.0, %v477
      %479 = vmatmul.bf16.gmra.mxu0 %v332
      %v480 = vpop.f32.mrf.mxu0
      %v481 = vadd.f32 0.0, %v480
      %v482 = vpop.f32.mrf.mxu0
      %v483 = vadd.f32 0.0, %v482
      %484 = vmatmul.bf16.gmra.mxu0 %v334
      %v485 = vpop.f32.mrf.mxu0
      %v486 = vadd.f32 0.0, %v485
      %v487 = vpop.f32.mrf.mxu0
      %v488 = vadd.f32 0.0, %v487
      %489 = vmatmul.bf16.gmra.mxu0 %v336
      %v490 = vpop.f32.mrf.mxu0
      %v491 = vadd.f32 0.0, %v490
      %v492 = vpop.f32.mrf.mxu0
      %v493 = vadd.f32 0.0, %v492
      %494 = vdwg.mxu0
      %495 = vmatpush.bf16.msra.mxu0 %v449
      %496 = vmatpush.bf16.msra.mxu0 %v448
      %497 = vmatpush.bf16.msra.mxu0 %v447
      %498 = vmatpush.bf16.msra.mxu0 %v446
      %499 = vmatpush.bf16.msra.mxu0 %v445
      %500 = vmatpush.bf16.msra.mxu0 %v444
      %501 = vmatpush.bf16.msra.mxu0 %v443
      %502 = vmatpush.bf16.msra.mxu0 %v442
      %503 = vmatmul.bf16.gmra.mxu0 %v331
      %v504 = vpop.f32.mrf.mxu0
      %v505 = vadd.f32 %v476, %v504
      %v506 = vpop.f32.mrf.mxu0
      %v507 = vadd.f32 %v478, %v506
      %508 = vmatmul.bf16.gmra.mxu0 %v333
      %v509 = vpop.f32.mrf.mxu0
      %v510 = vadd.f32 %v481, %v509
      %v511 = vpop.f32.mrf.mxu0
      %v512 = vadd.f32 %v483, %v511
      %513 = vmatmul.bf16.gmra.mxu0 %v335
      %v514 = vpop.f32.mrf.mxu0
      %v515 = vadd.f32 %v486, %v514
      %v516 = vpop.f32.mrf.mxu0
      %v517 = vadd.f32 %v488, %v516
      %518 = vmatmul.bf16.gmra.mxu0 %v337
      %v519 = vpop.f32.mrf.mxu0
      %v520 = vadd.f32 %v491, %v519
      %v521 = vpop.f32.mrf.mxu0
      %v522 = vadd.f32 %v493, %v521
      %523 = vdwg.mxu0
      %v524 = vld [vmem:[%s3] sm:$0x1]
      %v526 = vperm.slane %v524, 0
      %v528 = vmul.f32 %v505, %v526
      %v529 = vmul.f32 %v507, %v526
      %v530 = vmul.f32 %v510, %v526
      %v531 = vmul.f32 %v512, %v526
      %v532 = vmul.f32 %v515, %v526
      %v533 = vmul.f32 %v517, %v526
      %v534 = vmul.f32 %v520, %v526
      %v535 = vmul.f32 %v522, %v526
      %v536 = vld [vmem:[%s4] sm:$0x1]
      %v538 = vperm.slane %v536, 0
      %v540 = vadd.f32 %v528, %v538
      %v541 = vadd.f32 %v529, %v538
      %v542 = vadd.f32 %v530, %v538
      %v543 = vadd.f32 %v531, %v538
      %v544 = vadd.f32 %v532, %v538
      %v545 = vadd.f32 %v533, %v538
      %v546 = vadd.f32 %v534, %v538
      %v547 = vadd.f32 %v535, %v538
      %v548 = vpack.c.bf16 %v540, %v540
      %v549 = vpack.c.bf16 %v541, %v541
      %v550 = vpack.c.bf16 %v542, %v542
      %v551 = vpack.c.bf16 %v543, %v543
      %v552 = vpack.c.bf16 %v544, %v544
      %v553 = vpack.c.bf16 %v545, %v545
      %v554 = vpack.c.bf16 %v546, %v546
      %v555 = vpack.c.bf16 %v547, %v547
      %556 = vst [vmem:[%s282] sm:$0xf] %v548
      %557 = vst [vmem:[%s282 + $0x4] sm:$0xf] %v549
      %558 = vst [vmem:[%s282 + $0x8] sm:$0xf] %v550
      %559 = vst [vmem:[%s282 + $0xc] sm:$0xf] %v551
      %560 = vst [vmem:[%s282 + $0x10] sm:$0xf] %v552
      %561 = vst [vmem:[%s282 + $0x14] sm:$0xf] %v553
      %562 = vst [vmem:[%s282 + $0x18] sm:$0xf] %v554
      %563 = vst [vmem:[%s282 + $0x1c] sm:$0xf] %v555
      %s564 = smul.u32 8, %s21
      %p565 = scmp.lt.s32.totalorder %s20, 1
      %s566 = scalar_select %p565, %s20, 1
      %p567 = scmp.lt.s32.totalorder %s564, 7
      %s568 = scalar_select %p567, %s564, 7
      %s569 = smul.addr %s566, 8
      %s570 = sadd.s32 %s568, %s569
      %s571 = smul.addr %s570, 4
      %s572 = scalar_lea.vmem %s5, %s571
      // Predicated region
      $region41: #{sen_forward.10} parent=39 // pred_check
        %p573 = pneg %p165
      $region42: #{sen_forward.10} parent=39 // pred_check_branch
        %575 = sbr.rel (%p573) target = $region44
      $region43: #{sen_forward.10} parent=39 // pred_region
        %s576 = smul.u32 8, %s21
      $region44: #{sen_forward.10} parent=39 // pred_fallthru
        _
    $region40: #{sen_forward.10} parent=5 // pred_fallthru
      _
    %p577 = scmp.le.s32.totalorder 2, %s11
    // Predicated region
    $region45: #{sen_forward.10} parent=5 // pred_check
      %p578 = pneg %p577
    $region46: #{sen_forward.10} parent=5 // pred_check_branch
      %580 = sbr.rel (%p578) target = $region48
    $region47: #{sen_forward.10} parent=5 // pred_region
      %s581 = ssub.s32 %s11, 2
      // Predicated region
      $region49: #{sen_forward.10} parent=47 // pred_check
        %p582 = pneg %p171
      $region50: #{sen_forward.10} parent=47 // pred_check_branch
        %584 = sbr.rel (%p582) target = $region52
      $region51: #{sen_forward.10} parent=47 // pred_region
        %s585 = smul.u32 8, %s23
        %p586 = scmp.lt.s32.totalorder %s22, 1
        %s587 = scalar_select %p586, %s22, 1
        %p588 = scmp.lt.s32.totalorder %s585, 7
        %s589 = scalar_select %p588, %s585, 7
        %s590 = smul.addr %s587, 8
        %s591 = sadd.s32 %s589, %s590
        %s592 = smul.addr %s591, 4
        %s593 = scalar_lea.vmem %s5, %s592
      $region52: #{sen_forward.10} parent=47 // pred_fallthru
        _
    $region48: #{sen_forward.10} parent=5 // pred_fallthru
      _
  $region6: #{sen_forward.10} parent=0 // loop_footer
    %s15 = sadd.s32 1, %s11
  $region7: #{sen_forward.10} parent=0 // loop_footer_branch
    %10 = sbr.rel target = $region3
  $region8: #{sen_forward.10} parent=0 // loop_exit
    _

// kernel: sen_forward.9
$region0: #{sen_forward.9}
  #allocation0 [shape = 'u32[]', space=smem, size = 0x4, offset = 0x4, fixed_abs, tag = 'smem constant byte address 0x4 - core index']
  #allocation1 [shape = 'u32[72,128]{1,0:T(1,128)}', space=vmem, size = 0x9000, scoped, tag = 'internal scratch']
  %s0 = inlined_call_operand.vmem [shape: f32[2,256], index: 0, kind: input, shape index: {}]
  %s1 = inlined_call_operand.vmem [shape: bf16[256,32], index: 1, kind: input, shape index: {}]
  %s2 = inlined_call_operand.vmem [shape: f32[1,32], index: 2, kind: input, shape index: {}]
  %s3 = inlined_call_operand.vmem [shape: bf16[32,256], index: 3, kind: input, shape index: {}]
  %s4 = inlined_call_operand.vmem [shape: f32[1,256], index: 4, kind: input, shape index: {}]
  %s5 = inlined_call_operand.vmem [shape: f32[2,256], index: 5, kind: output, shape index: {}]
  %s6 = sld [smem:[#allocation0]]
  $region30: #{sen_forward.9} parent=0
    _
  %s8 = ssub.s32 1, %s6
  %s9 = scalar_select 0, %s8, %s6
  // Predicated region
  $region2: #{sen_forward.9} parent=0 // pred_check
    _
  $region3: #{sen_forward.9} parent=0 // pred_check_branch
    %11 = sbr.rel (0) target = $region5
  $region4: #{sen_forward.9} parent=0 // pred_region
    _
  $region5: #{sen_forward.9} parent=0 // pred_fallthru
    _
  // Predicated region
  $region6: #{sen_forward.9} parent=0 // pred_check
    _
  $region7: #{sen_forward.9} parent=0 // pred_check_branch
    %13 = sbr.rel (0) target = $region9
  $region8: #{sen_forward.9} parent=0 // pred_region
    _
  $region9: #{sen_forward.9} parent=0 // pred_fallthru
    _
  // Predicated region
  $region10: #{sen_forward.9} parent=0 // pred_check
    _
  $region11: #{sen_forward.9} parent=0 // pred_check_branch
    %15 = sbr.rel (0) target = $region13
  $region12: #{sen_forward.9} parent=0 // pred_region
    _
  $region13: #{sen_forward.9} parent=0 // pred_fallthru
    _
  // Predicated region
  $region14: #{sen_forward.9} parent=0 // pred_check
    _
  $region15: #{sen_forward.9} parent=0 // pred_check_branch
    %17 = sbr.rel (0) target = $region17
  $region16: #{sen_forward.9} parent=0 // pred_region
    _
  $region17: #{sen_forward.9} parent=0 // pred_fallthru
    _
  // Predicated region
  $region18: #{sen_forward.9} parent=0 // pred_check
    _
  $region19: #{sen_forward.9} parent=0 // pred_check_branch
    %19 = sbr.rel (0) target = $region21
  $region20: #{sen_forward.9} parent=0 // pred_region
    _
  $region21: #{sen_forward.9} parent=0 // pred_fallthru
    _
  %v21 = vld [vmem:[%s0] sm:$0xf]
  %v22 = vmul.f32 %v21, 0.015625
  %24 = vst [vmem:[#allocation1] ss:$4 sm:$0xff] %v22
  %v25 = vld.sshfl [vmem:[#allocation1] sm:$0xff pattern:$0x73625140]
  %v26 = vld.sshfl [vmem:[#allocation1 + $0x8] sm:$0xff pattern:$0x73625140]
  %v29 = vpack.c.bf16 %v25, %v25
  %v30 = vpack.c.bf16 %v26, %v26
  %v31 = vld [vmem:[%s1] sm:$0xf]
  %v32 = vld [vmem:[%s1 + $0x4] sm:$0xf]
  %v33 = vld [vmem:[%s1 + $0x8] sm:$0xf]
  %v34 = vld [vmem:[%s1 + $0xc] sm:$0xf]
  %v35 = vld [vmem:[%s1 + $0x10] sm:$0xf]
  %v36 = vld [vmem:[%s1 + $0x14] sm:$0xf]
  %v37 = vld [vmem:[%s1 + $0x18] sm:$0xf]
  %v38 = vld [vmem:[%s1 + $0x1c] sm:$0xf]
  %v39 = vld [vmem:[%s1 + $0x20] sm:$0xf]
  %v40 = vld [vmem:[%s1 + $0x24] sm:$0xf]
  %v41 = vld [vmem:[%s1 + $0x28] sm:$0xf]
  %v42 = vld [vmem:[%s1 + $0x2c] sm:$0xf]
  %v43 = vld [vmem:[%s1 + $0x30] sm:$0xf]
  %v44 = vld [vmem:[%s1 + $0x34] sm:$0xf]
  %v45 = vld [vmem:[%s1 + $0x38] sm:$0xf]
  %v46 = vld [vmem:[%s1 + $0x3c] sm:$0xf]
  %v47 = vld [vmem:[%s1 + $0x40] sm:$0xf]
  %v48 = vld [vmem:[%s1 + $0x44] sm:$0xf]
  %v49 = vld [vmem:[%s1 + $0x48] sm:$0xf]
  %v50 = vld [vmem:[%s1 + $0x4c] sm:$0xf]
  %v51 = vld [vmem:[%s1 + $0x50] sm:$0xf]
  %v52 = vld [vmem:[%s1 + $0x54] sm:$0xf]
  %v53 = vld [vmem:[%s1 + $0x58] sm:$0xf]
  %v54 = vld [vmem:[%s1 + $0x5c] sm:$0xf]
  %v55 = vld [vmem:[%s1 + $0x60] sm:$0xf]
  %v56 = vld [vmem:[%s1 + $0x64] sm:$0xf]
  %v57 = vld [vmem:[%s1 + $0x68] sm:$0xf]
  %v58 = vld [vmem:[%s1 + $0x6c] sm:$0xf]
  %v59 = vld [vmem:[%s1 + $0x70] sm:$0xf]
  %v60 = vld [vmem:[%s1 + $0x74] sm:$0xf]
  %v61 = vld [vmem:[%s1 + $0x78] sm:$0xf]
  %v62 = vld [vmem:[%s1 + $0x7c] sm:$0xf]
  %v63 = vld [vmem:[%s2] sm:$0x1]
  %v65 = vperm.slane %v63, 0
  %v99 = vunpack.c.l.b16 %v31
  %v100 = vunpack.c.l.b16 %v32
  %v101 = vunpack.c.l.b16 %v33
  %v102 = vunpack.c.l.b16 %v34
  %v103 = vunpack.c.l.b16 %v35
  %v104 = vunpack.c.l.b16 %v36
  %v105 = vunpack.c.l.b16 %v37
  %v106 = vunpack.c.l.b16 %v38
  %v107 = vunpack.c.l.b16 %v39
  %v108 = vunpack.c.l.b16 %v40
  %v109 = vunpack.c.l.b16 %v41
  %v110 = vunpack.c.l.b16 %v42
  %v111 = vunpack.c.l.b16 %v43
  %v112 = vunpack.c.l.b16 %v44
  %v113 = vunpack.c.l.b16 %v45
  %v114 = vunpack.c.l.b16 %v46
  %v115 = vunpack.c.l.b16 %v47
  %v116 = vunpack.c.l.b16 %v48
  %v117 = vunpack.c.l.b16 %v49
  %v118 = vunpack.c.l.b16 %v50
  %v119 = vunpack.c.l.b16 %v51
  %v120 = vunpack.c.l.b16 %v52
  %v121 = vunpack.c.l.b16 %v53
  %v122 = vunpack.c.l.b16 %v54
  %v123 = vunpack.c.l.b16 %v55
  %v124 = vunpack.c.l.b16 %v56
  %v125 = vunpack.c.l.b16 %v57
  %v126 = vunpack.c.l.b16 %v58
  %v127 = vunpack.c.l.b16 %v59
  %v128 = vunpack.c.l.b16 %v60
  %v129 = vunpack.c.l.b16 %v61
  %v130 = vunpack.c.l.b16 %v62
  %v131 = vpack.c.b16 %v100, %v99
  %v132 = vpack.c.b16 %v102, %v101
  %v133 = vpack.c.b16 %v104, %v103
  %v134 = vpack.c.b16 %v106, %v105
  %v135 = vpack.c.b16 %v108, %v107
  %v136 = vpack.c.b16 %v110, %v109
  %v137 = vpack.c.b16 %v112, %v111
  %v138 = vpack.c.b16 %v114, %v113
  %v139 = vpack.c.b16 %v116, %v115
  %v140 = vpack.c.b16 %v118, %v117
  %v141 = vpack.c.b16 %v120, %v119
  %v142 = vpack.c.b16 %v122, %v121
  %v143 = vpack.c.b16 %v124, %v123
  %v144 = vpack.c.b16 %v126, %v125
  %v145 = vpack.c.b16 %v128, %v127
  %v146 = vpack.c.b16 %v130, %v129
  %163 = vmatpush.bf16.msra.mxu0 %v138
  %164 = vmatpush.bf16.msra.mxu0 %v137
  %165 = vmatpush.bf16.msra.mxu0 %v136
  %166 = vmatpush.bf16.msra.mxu0 %v135
  %167 = vmatpush.bf16.msra.mxu0 %v134
  %168 = vmatpush.bf16.msra.mxu0 %v133
  %169 = vmatpush.bf16.msra.mxu0 %v132
  %170 = vmatpush.bf16.msra.mxu0 %v131
  %171 = vmatmul.bf16.gmra.mxu0 %v29
  %v172 = vpop.f32.mrf.mxu0
  %v173 = vadd.f32 %v65, %v172
  %v174 = vpop.f32.mrf.mxu0
  %175 = vdwg.mxu0
  %176 = vmatpush.bf16.msra.mxu0 %v146
  %177 = vmatpush.bf16.msra.mxu0 %v145
  %178 = vmatpush.bf16.msra.mxu0 %v144
  %179 = vmatpush.bf16.msra.mxu0 %v143
  %180 = vmatpush.bf16.msra.mxu0 %v142
  %181 = vmatpush.bf16.msra.mxu0 %v141
  %182 = vmatpush.bf16.msra.mxu0 %v140
  %183 = vmatpush.bf16.msra.mxu0 %v139
  %184 = vmatmul.bf16.gmra.mxu0 %v30
  %v185 = vpop.f32.mrf.mxu0
  %v186 = vadd.f32 %v173, %v185
  %v187 = vpop.f32.mrf.mxu0
  %188 = vdwg.mxu0
  %v189 = vsub.f32 0.0, %v186
  %v190 = vmul.f32 %v189, 1.442695
  %v191 = vpow.pop %v190
  %v192 = vadd.f32 %v191, 1.0
  %v193 = vrcp.pop %v192
  %v194 = vmul.f32 %v186, %v193
  %v195 = vpack.c.bf16 %v194, %v194
  %v196 = vld [vmem:[%s3] sm:$0xff]
  %v197 = vld [vmem:[%s3 + $0x8] sm:$0xff]
  %v198 = vld [vmem:[%s3 + $0x10] sm:$0xff]
  %v199 = vld [vmem:[%s3 + $0x18] sm:$0xff]
  %v200 = vld [vmem:[%s4] sm:$0x3]
  %v202 = vperm.slane %v200, 0
  %v203 = vperm.slane %v200, 1
  %v210 = vunpack.c.l.b16 %v196
  %v211 = vunpack.c.h.b16 %v196
  %v212 = vunpack.c.l.b16 %v197
  %v213 = vunpack.c.h.b16 %v197
  %v214 = vunpack.c.l.b16 %v198
  %v215 = vunpack.c.h.b16 %v198
  %v216 = vunpack.c.l.b16 %v199
  %v217 = vunpack.c.h.b16 %v199
  %v218 = vpack.c.b16 %v212, %v210
  %v219 = vpack.c.b16 %v213, %v211
  %v220 = vpack.c.b16 %v216, %v214
  %v221 = vpack.c.b16 %v217, %v215
  %vm226 = vcmask 261120
  %v228 = vsel %vm226, %v195, 0
  %230 = vmatpush.bf16.msra.mxu0 0
  %231 = vmatpush.bf16.msra.mxu0 0
  %232 = vmatpush.bf16.msra.mxu0 0
  %233 = vmatpush.bf16.msra.mxu0 0
  %234 = vmatpush.bf16.msra.mxu0 0
  %235 = vmatpush.bf16.msra.mxu0 0
  %236 = vmatpush.bf16.msra.mxu0 %v220
  %237 = vmatpush.bf16.msra.mxu0 %v218
  %238 = vmatmul.bf16.gmra.mxu0 %v228
  %v239 = vpop.f32.mrf.mxu0
  %v240 = vadd.f32 %v202, %v239
  %v241 = vpop.f32.mrf.mxu0
  %242 = vdwg.mxu0
  %243 = vmatpush.bf16.msra.mxu0 0
  %244 = vmatpush.bf16.msra.mxu0 0
  %245 = vmatpush.bf16.msra.mxu0 0
  %246 = vmatpush.bf16.msra.mxu0 0
  %247 = vmatpush.bf16.msra.mxu0 0
  %248 = vmatpush.bf16.msra.mxu0 0
  %249 = vmatpush.bf16.msra.mxu0 %v221
  %250 = vmatpush.bf16.msra.mxu0 %v219
  %251 = vmatmul.bf16.gmra.mxu0 %v228
  %v252 = vpop.f32.mrf.mxu0
  %v253 = vadd.f32 %v203, %v252
  %v254 = vpop.f32.mrf.mxu0
  %255 = vdwg.mxu0
  %v256 = vsub.f32 0.0, %v240
  %v257 = vsub.f32 0.0, %v253
  %v258 = vmul.f32 %v256, 1.442695
  %v259 = vpow.pop %v258
  %v260 = vmul.f32 %v257, 1.442695
  %v261 = vpow.pop %v260
  %v262 = vadd.f32 %v259, 1.0
  %v263 = vadd.f32 %v261, 1.0
  %v264 = vrcp.pop %v262
  %v265 = vrcp.pop %v263
  %v268 = vrot.slane %v265, 6
  %vm269 = vcmask 1041408
  %v270 = vsel %vm269, %v264, %v268
  %272 = vst [vmem:[%s5] sm:$0xf] %v270
  // Predicated region
  $region22: #{sen_forward.9} parent=0 // pred_check
    _
  $region23: #{sen_forward.9} parent=0 // pred_check_branch
    %274 = sbr.rel (0) target = $region25
  $region24: #{sen_forward.9} parent=0 // pred_region
    _
  $region25: #{sen_forward.9} parent=0 // pred_fallthru
    _
  // Predicated region
  $region26: #{sen_forward.9} parent=0 // pred_check
    _
  $region27: #{sen_forward.9} parent=0 // pred_check_branch
    %276 = sbr.rel (0) target = $region29
  $region28: #{sen_forward.9} parent=0 // pred_region
    _
  $region29: #{sen_forward.9} parent=0 // pred_fallthru
    _

// kernel: sen_forward.11
$region0: #{sen_forward.11}
  #allocation0 [shape = 'u32[]', space=smem, size = 0x4, offset = 0x4, fixed_abs, tag = 'smem constant byte address 0x4 - core index']
  #allocation1 [shape = 'u32[72,128]{1,0:T(1,128)}', space=vmem, size = 0x9000, scoped, tag = 'internal scratch']
  %s0 = inlined_call_operand.vmem [shape: bf16[128,128], index: 0, kind: input, shape index: {}]
  %s1 = inlined_call_operand.vmem [shape: bf16[128,128], index: 1, kind: input, shape index: {}]
  %s2 = inlined_call_operand.vmem [shape: f32[1,128], index: 2, kind: input, shape index: {}]
  %s3 = inlined_call_operand.vmem [shape: f32[1,128], index: 3, kind: input, shape index: {}]
  %s4 = inlined_call_operand.hbm [shape: f32[128,128], index: 4, kind: output, shape index: {}]
  %s5 = sld [smem:[#allocation0]]
  $region49: #{sen_forward.11} parent=0
    _
  %s7 = ssub.s32 1, %s5
  %s8 = scalar_select 0, %s7, %s5
  $region1: #{sen_forward.11} parent=0
    #allocation2 [shape = 'u8[65536]{0}', space=vmem, size = 0x10000, scoped, tag = 'output window, operand 0']
    #allocation3 [shape = 's32[2]{0}', space=sflag, size = 0x8, scoped, tag = 'scoped memory for sen_forward.11']
    %9 = vsyncpa [#allocation3], 0
    %s10 = scalar_lea.sflag [#allocation3], 1
    %11 = vsyncpa %s10, 0
    loop: start=0, step=1, limit=4
    $region2: #{sen_forward.11} parent=1 // loop_pre_header
      _
    $region3: #{sen_forward.11} parent=1 // loop_header
      %s13 = sphi 0, %s17
      %p14 = scmp.ge.s32.totalorder %s13, 4
      %s23 = sphi 0, %s25
      %s26 = sphi 0, %s23
      %s27 = sphi 0, %s26
      %s43 = sphi 0, %s27
      %s47 = sphi 0, %s47
      %s49 = sphi 0, %s47
      %s50 = sphi 0, %s49
      %s64 = sphi 0, %s50
      %s68 = sphi 0, %s68
      %s70 = sphi 0, %s68
      %s71 = sphi 0, %s70
      %s85 = sphi 0, %s71
      %s89 = sphi 0, %s89
      %s91 = sphi 0, %s89
      %s92 = sphi 0, %s91
      %s106 = sphi 0, %s92
      %s112 = sphi 0, %s114
      %s115 = sphi 0, %s112
      %s116 = sphi 0, %s115
      %s132 = sphi 0, %s116
    $region4: #{sen_forward.11} parent=1 // loop_header_branch
      %16 = sbr.rel (%p14) target = $region8
    $region5: #{sen_forward.11} parent=1 // loop_body
      %s18 = ssub.s32 %s13, 1
      %s19 = ssub.s32 %s13, 2
      %s20 = sadd.s32 %s13, 1
      %s21 = ssub.s32 %s13, %s20
      %p22 = scmp.eq.s32.totalorder %s21, 0
      %s24 = sadd.s32 %s23, 1
      %s25 = scalar_select %p22, %s23, %s24
      %p28 = pneg %p22
      %p29 = scmp.eq.s32.totalorder %s13, 1
      %p30 = por %p28, %p29
      %p31 = scmp.ne.s32.totalorder %s23, %s26
      %p32 = scmp.eq.s32.totalorder %s13, 0
      %p33 = por %p31, %p32
      %p34 = scmp.ne.s32.totalorder %s23, %s26
      %p35 = scmp.eq.s32.totalorder %s18, 1
      %p36 = por %p34, %p35
      %p37 = scmp.ne.s32.totalorder %s26, %s27
      %p38 = scmp.eq.s32.totalorder %s18, 0
      %p39 = por %p37, %p38
      %p40 = scmp.ne.s32.totalorder %s26, %s27
      %p41 = scmp.eq.s32.totalorder %s19, 1
      %p42 = por %p40, %p41
      %p44 = scmp.ne.s32.totalorder %s27, %s43
      %p45 = scmp.eq.s32.totalorder %s19, 0
      %p46 = por %p44, %p45
      %s48 = sadd.s32 %s47, 1
      %p51 = scmp.eq.s32.totalorder %s13, 1
      %p52 = scmp.ne.s32.totalorder %s47, %s49
      %p53 = scmp.eq.s32.totalorder %s13, 0
      %p54 = por %p52, %p53
      %p55 = scmp.ne.s32.totalorder %s47, %s49
      %p56 = scmp.eq.s32.totalorder %s18, 1
      %p57 = por %p55, %p56
      %p58 = scmp.ne.s32.totalorder %s49, %s50
      %p59 = scmp.eq.s32.totalorder %s18, 0
      %p60 = por %p58, %p59
      %p61 = scmp.ne.s32.totalorder %s49, %s50
      %p62 = scmp.eq.s32.totalorder %s19, 1
      %p63 = por %p61, %p62
      %p65 = scmp.ne.s32.totalorder %s50, %s64
      %p66 = scmp.eq.s32.totalorder %s19, 0
      %p67 = por %p65, %p66
      %s69 = sadd.s32 %s68, 1
      %p72 = scmp.eq.s32.totalorder %s13, 1
      %p73 = scmp.ne.s32.totalorder %s68, %s70
      %p74 = scmp.eq.s32.totalorder %s13, 0
      %p75 = por %p73, %p74
      %p76 = scmp.ne.s32.totalorder %s68, %s70
      %p77 = scmp.eq.s32.totalorder %s18, 1
      %p78 = por %p76, %p77
      %p79 = scmp.ne.s32.totalorder %s70, %s71
      %p80 = scmp.eq.s32.totalorder %s18, 0
      %p81 = por %p79, %p80
      %p82 = scmp.ne.s32.totalorder %s70, %s71
      %p83 = scmp.eq.s32.totalorder %s19, 1
      %p84 = por %p82, %p83
      %p86 = scmp.ne.s32.totalorder %s71, %s85
      %p87 = scmp.eq.s32.totalorder %s19, 0
      %p88 = por %p86, %p87
      %s90 = sadd.s32 %s89, 1
      %p93 = scmp.eq.s32.totalorder %s13, 1
      %p94 = scmp.ne.s32.totalorder %s89, %s91
      %p95 = scmp.eq.s32.totalorder %s13, 0
      %p96 = por %p94, %p95
      %p97 = scmp.ne.s32.totalorder %s89, %s91
      %p98 = scmp.eq.s32.totalorder %s18, 1
      %p99 = por %p97, %p98
      %p100 = scmp.ne.s32.totalorder %s91, %s92
      %p101 = scmp.eq.s32.totalorder %s18, 0
      %p102 = por %p100, %p101
      %p103 = scmp.ne.s32.totalorder %s91, %s92
      %p104 = scmp.eq.s32.totalorder %s19, 1
      %p105 = por %p103, %p104
      %p107 = scmp.ne.s32.totalorder %s92, %s106
      %p108 = scmp.eq.s32.totalorder %s19, 0
      %p109 = por %p107, %p108
      %s110 = ssub.s32 %s13, %s20
      %p111 = scmp.eq.s32.totalorder %s110, 0
      %s113 = sadd.s32 %s112, 1
      %s114 = scalar_select %p111, %s112, %s113
      %p117 = pneg %p111
      %p118 = scmp.eq.s32.totalorder %s13, 1
      %p119 = por %p117, %p118
      %p120 = scmp.ne.s32.totalorder %s112, %s115
      %p121 = scmp.eq.s32.totalorder %s13, 0
      %p122 = por %p120, %p121
      %p123 = scmp.ne.s32.totalorder %s112, %s115
      %p124 = scmp.eq.s32.totalorder %s18, 1
      %p125 = por %p123, %p124
      %p126 = scmp.ne.s32.totalorder %s115, %s116
      %p127 = scmp.eq.s32.totalorder %s18, 0
      %p128 = por %p126, %p127
      %p129 = scmp.ne.s32.totalorder %s115, %s116
      %p130 = scmp.eq.s32.totalorder %s19, 1
      %p131 = por %p129, %p130
      %p133 = scmp.ne.s32.totalorder %s116, %s132
      %p134 = scmp.eq.s32.totalorder %s19, 0
      %p135 = por %p133, %p134
      %p136 = scmp.le.s32.totalorder 1, %s13
      %p137 = scmp.lt.s32.totalorder %s13, 3
      %p138 = pnand %p136, %p137
      %p139 = pneg %p138
      // Predicated region
      $region9: #{sen_forward.11} parent=5 // pred_check
        _
      $region10: #{sen_forward.11} parent=5 // pred_check_branch
        %141 = sbr.rel (%p138) target = $region12
      $region11: #{sen_forward.11} parent=5 // pred_region
        %s142 = ssub.s32 %s13, 1
        // Predicated region
        $region13: #{sen_forward.11} parent=11 // pred_check
          %p143 = pneg %p60
        $region14: #{sen_forward.11} parent=11 // pred_check_branch
          %145 = sbr.rel (%p143) target = $region16
        $region15: #{sen_forward.11} parent=11 // pred_region
          _
        $region16: #{sen_forward.11} parent=11 // pred_fallthru
          _
        // Predicated region
        $region17: #{sen_forward.11} parent=11 // pred_check
          %p146 = pneg %p81
        $region18: #{sen_forward.11} parent=11 // pred_check_branch
          %148 = sbr.rel (%p146) target = $region20
        $region19: #{sen_forward.11} parent=11 // pred_region
          _
        $region20: #{sen_forward.11} parent=11 // pred_fallthru
          _
        // Predicated region
        $region21: #{sen_forward.11} parent=11 // pred_check
          %p149 = pneg %p102
        $region22: #{sen_forward.11} parent=11 // pred_check_branch
          %151 = sbr.rel (%p149) target = $region24
        $region23: #{sen_forward.11} parent=11 // pred_region
          _
        $region24: #{sen_forward.11} parent=11 // pred_fallthru
          _
      $region12: #{sen_forward.11} parent=5 // pred_fallthru
        _
      %p152 = scmp.lt.s32.totalorder %s13, 2
      // Predicated region
      $region25: #{sen_forward.11} parent=5 // pred_check
        %p153 = pneg %p152
      $region26: #{sen_forward.11} parent=5 // pred_check_branch
        %155 = sbr.rel (%p153) target = $region28
      $region27: #{sen_forward.11} parent=5 // pred_region
        // Predicated region
        $region29: #{sen_forward.11} parent=27 // pred_check
          %p156 = pneg %p33
        $region30: #{sen_forward.11} parent=27 // pred_check_branch
          %158 = sbr.rel (%p156) target = $region32
        $region31: #{sen_forward.11} parent=27 // pred_region
          %s159 = smul.u32 8, %s13
          %p160 = scmp.lt.s32.totalorder %s159, 15
          %s161 = scalar_select %p160, %s159, 15
          %s162 = smul.addr %s161, 4
          %s163 = scalar_lea.vmem %s0, %s162
          %s164 = smul.u32 8, %s13
        $region32: #{sen_forward.11} parent=27 // pred_fallthru
          _
      $region28: #{sen_forward.11} parent=5 // pred_fallthru
        _
      %p165 = scmp.le.s32.totalorder 1, %s13
      %p166 = scmp.lt.s32.totalorder %s13, 3
      %p167 = pnand %p165, %p166
      %p168 = pneg %p167
      // Predicated region
      $region33: #{sen_forward.11} parent=5 // pred_check
        _
      $region34: #{sen_forward.11} parent=5 // pred_check_branch
        %170 = sbr.rel (%p167) target = $region36
      $region35: #{sen_forward.11} parent=5 // pred_region
        %s171 = ssub.s32 %s13, 1
        %s172 = smul.u32 8, %s18
        %p173 = scmp.lt.s32.totalorder %s172, 15
        %s174 = scalar_select %p173, %s172, 15
        %s175 = smul.addr %s174, 4
        %s176 = scalar_lea.vmem %s0, %s175
        %p177 = pneg %p39
        %p178 = pneg %p36
        %p179 = pneg %p60
        %p180 = pneg %p57
        %p181 = pneg %p81
        %p182 = pneg %p78
        %p183 = pneg %p102
        %p184 = pneg %p99
        %p185 = pneg %p128
        %p186 = pneg %p125
        %s187 = sand.u32 %s115, 1
        %s188 = scalar_lea.sflag [#allocation3], %s187
        %s189 = sand.u32 %s115, 1
        %s190 = smul.addr %s189, 64
        %s191 = scalar_lea.vmem [#allocation2], %s190
        %s192 = smul.u32 8, %s18
        %p193 = scmp.lt.s32.totalorder %s192, 15
        %s194 = scalar_select %p193, %s192, 15
        %s195 = smul.addr %s194, 4
        %s196 = scalar_lea.vmem %s0, %s195
        %s197 = smul.u32 8, %s18
        %s198 = smul.u32 8, %s18
        %v199 = vld [vmem:[%s196] sm:$0xf]
        %v200 = vld [vmem:[%s196 + $0x4] sm:$0xf]
        %v201 = vld [vmem:[%s196 + $0x8] sm:$0xf]
        %v202 = vld [vmem:[%s196 + $0xc] sm:$0xf]
        %v203 = vld [vmem:[%s196 + $0x10] sm:$0xf]
        %v204 = vld [vmem:[%s196 + $0x14] sm:$0xf]
        %v205 = vld [vmem:[%s196 + $0x18] sm:$0xf]
        %v206 = vld [vmem:[%s196 + $0x1c] sm:$0xf]
        %v207 = vld [vmem:[%s1] sm:$0xf]
        %v208 = vld [vmem:[%s1 + $0x4] sm:$0xf]
        %v209 = vld [vmem:[%s1 + $0x8] sm:$0xf]
        %v210 = vld [vmem:[%s1 + $0xc] sm:$0xf]
        %v211 = vld [vmem:[%s1 + $0x10] sm:$0xf]
        %v212 = vld [vmem:[%s1 + $0x14] sm:$0xf]
        %v213 = vld [vmem:[%s1 + $0x18] sm:$0xf]
        %v214 = vld [vmem:[%s1 + $0x1c] sm:$0xf]
        %v215 = vld [vmem:[%s1 + $0x20] sm:$0xf]
        %v216 = vld [vmem:[%s1 + $0x24] sm:$0xf]
        %v217 = vld [vmem:[%s1 + $0x28] sm:$0xf]
        %v218 = vld [vmem:[%s1 + $0x2c] sm:$0xf]
        %v219 = vld [vmem:[%s1 + $0x30] sm:$0xf]
        %v220 = vld [vmem:[%s1 + $0x34] sm:$0xf]
        %v221 = vld [vmem:[%s1 + $0x38] sm:$0xf]
        %v222 = vld [vmem:[%s1 + $0x3c] sm:$0xf]
        %v231 = vunpack.c.l.b16 %v199
        %v232 = vunpack.c.l.b16 %v200
        %v233 = vunpack.c.l.b16 %v201
        %v234 = vunpack.c.l.b16 %v202
        %v235 = vunpack.c.l.b16 %v203
        %v236 = vunpack.c.l.b16 %v204
        %v237 = vunpack.c.l.b16 %v205
        %v238 = vunpack.c.l.b16 %v206
        %v239 = vpack.c.b16 %v232, %v231
        %v240 = vpack.c.b16 %v234, %v233
        %v241 = vpack.c.b16 %v236, %v235
        %v242 = vpack.c.b16 %v238, %v237
        %v263 = vunpack.c.l.b16 %v207
        %v264 = vunpack.c.l.b16 %v208
        %v265 = vunpack.c.l.b16 %v209
        %v266 = vunpack.c.l.b16 %v210
        %v267 = vunpack.c.l.b16 %v211
        %v268 = vunpack.c.l.b16 %v212
        %v269 = vunpack.c.l.b16 %v213
        %v270 = vunpack.c.l.b16 %v214
        %v271 = vunpack.c.l.b16 %v215
        %v272 = vunpack.c.l.b16 %v216
        %v273 = vunpack.c.l.b16 %v217
        %v274 = vunpack.c.l.b16 %v218
        %v275 = vunpack.c.l.b16 %v219
        %v276 = vunpack.c.l.b16 %v220
        %v277 = vunpack.c.l.b16 %v221
        %v278 = vunpack.c.l.b16 %v222
        %v279 = vpack.c.b16 %v264, %v263
        %v280 = vpack.c.b16 %v266, %v265
        %v281 = vpack.c.b16 %v268, %v267
        %v282 = vpack.c.b16 %v270, %v269
        %v283 = vpack.c.b16 %v272, %v271
        %v284 = vpack.c.b16 %v274, %v273
        %v285 = vpack.c.b16 %v276, %v275
        %v286 = vpack.c.b16 %v278, %v277
        %295 = vmatpush.bf16.msra.mxu0 %v286
        %296 = vmatpush.bf16.msra.mxu0 %v285
        %297 = vmatpush.bf16.msra.mxu0 %v284
        %298 = vmatpush.bf16.msra.mxu0 %v283
        %299 = vmatpush.bf16.msra.mxu0 %v282
        %300 = vmatpush.bf16.msra.mxu0 %v281
        %301 = vmatpush.bf16.msra.mxu0 %v280
        %302 = vmatpush.bf16.msra.mxu0 %v279
        %303 = vmatmul.bf16.gmra.mxu0 %v239
        %v304 = vpop.f32.mrf.mxu0
        %v305 = vadd.f32 0.0, %v304
        %v306 = vpop.f32.mrf.mxu0
        %v307 = vadd.f32 0.0, %v306
        %308 = vmatmul.bf16.gmra.mxu0 %v240
        %v309 = vpop.f32.mrf.mxu0
        %v310 = vadd.f32 0.0, %v309
        %v311 = vpop.f32.mrf.mxu0
        %v312 = vadd.f32 0.0, %v311
        %313 = vmatmul.bf16.gmra.mxu0 %v241
        %v314 = vpop.f32.mrf.mxu0
        %v315 = vadd.f32 0.0, %v314
        %v316 = vpop.f32.mrf.mxu0
        %v317 = vadd.f32 0.0, %v316
        %318 = vmatmul.bf16.gmra.mxu0 %v242
        %v319 = vpop.f32.mrf.mxu0
        %v320 = vadd.f32 0.0, %v319
        %v321 = vpop.f32.mrf.mxu0
        %v322 = vadd.f32 0.0, %v321
        %323 = vdwg.mxu0
        %v324 = vld [vmem:[%s2] sm:$0x1]
        %v326 = vperm.slane %v324, 0
        %v328 = vmul.f32 %v305, %v326
        %v329 = vmul.f32 %v307, %v326
        %v330 = vmul.f32 %v310, %v326
        %v331 = vmul.f32 %v312, %v326
        %v332 = vmul.f32 %v315, %v326
        %v333 = vmul.f32 %v317, %v326
        %v334 = vmul.f32 %v320, %v326
        %v335 = vmul.f32 %v322, %v326
        %v336 = vld [vmem:[%s3] sm:$0x1]
        %v338 = vperm.slane %v336, 0
        %v340 = vadd.f32 %v328, %v338
        %v341 = vadd.f32 %v329, %v338
        %v342 = vadd.f32 %v330, %v338
        %v343 = vadd.f32 %v331, %v338
        %v344 = vadd.f32 %v332, %v338
        %v345 = vadd.f32 %v333, %v338
        %v346 = vadd.f32 %v334, %v338
        %v347 = vadd.f32 %v335, %v338
        %v348 = vsub.f32 0.0, %v340
        %v349 = vsub.f32 0.0, %v341
        %v350 = vsub.f32 0.0, %v342
        %v351 = vsub.f32 0.0, %v343
        %v352 = vsub.f32 0.0, %v344
        %v353 = vsub.f32 0.0, %v345
        %v354 = vsub.f32 0.0, %v346
        %v355 = vsub.f32 0.0, %v347
        %v356 = vmul.f32 %v348, 1.442695
        %v357 = vpow.pop %v356
        %v358 = vmul.f32 %v349, 1.442695
        %v359 = vpow.pop %v358
        %v360 = vmul.f32 %v350, 1.442695
        %v361 = vpow.pop %v360
        %v362 = vmul.f32 %v351, 1.442695
        %v363 = vpow.pop %v362
        %v364 = vmul.f32 %v352, 1.442695
        %v365 = vpow.pop %v364
        %v366 = vmul.f32 %v353, 1.442695
        %v367 = vpow.pop %v366
        %v368 = vmul.f32 %v354, 1.442695
        %v369 = vpow.pop %v368
        %v370 = vmul.f32 %v355, 1.442695
        %v371 = vpow.pop %v370
        %v372 = vadd.f32 %v357, 1.0
        %v373 = vadd.f32 %v359, 1.0
        %v374 = vadd.f32 %v361, 1.0
        %v375 = vadd.f32 %v363, 1.0
        %v376 = vadd.f32 %v365, 1.0
        %v377 = vadd.f32 %v367, 1.0
        %v378 = vadd.f32 %v369, 1.0
        %v379 = vadd.f32 %v371, 1.0
        %v380 = vrcp.pop %v372
        %v381 = vrcp.pop %v373
        %v382 = vrcp.pop %v374
        %v383 = vrcp.pop %v375
        %v384 = vrcp.pop %v376
        %v385 = vrcp.pop %v377
        %v386 = vrcp.pop %v378
        %v387 = vrcp.pop %v379
        %v388 = vmul.f32 %v340, %v380
        %v389 = vmul.f32 %v341, %v381
        %v390 = vmul.f32 %v342, %v382
        %v391 = vmul.f32 %v343, %v383
        %v392 = vmul.f32 %v344, %v384
        %v393 = vmul.f32 %v345, %v385
        %v394 = vmul.f32 %v346, %v386
        %v395 = vmul.f32 %v347, %v387
        %396 = vst [vmem:[%s191] sm:$0xff] %v388
        %397 = vst [vmem:[%s191 + $0x8] sm:$0xff] %v389
        %398 = vst [vmem:[%s191 + $0x10] sm:$0xff] %v390
        %399 = vst [vmem:[%s191 + $0x18] sm:$0xff] %v391
        %400 = vst [vmem:[%s191 + $0x20] sm:$0xff] %v392
        %401 = vst [vmem:[%s191 + $0x28] sm:$0xff] %v393
        %402 = vst [vmem:[%s191 + $0x30] sm:$0xff] %v394
        %403 = vst [vmem:[%s191 + $0x38] sm:$0xff] %v395
        %s404 = sand.u32 %s115, 1
        %s405 = scalar_lea.sflag [#allocation3], %s404
        %s406 = sand.u32 %s115, 1
        %s407 = smul.addr %s406, 64
        %s408 = scalar_lea.vmem [#allocation2], %s407
        // Predicated region
        $region37: #{sen_forward.11} parent=35 // pred_check
          %p409 = pneg %p125
        $region38: #{sen_forward.11} parent=35 // pred_check_branch
          %411 = sbr.rel (%p409) target = $region40
        $region39: #{sen_forward.11} parent=35 // pred_region
          %s412 = smul.u32 8, %s18
          %414 = vsyncadd %s405, 0
          %s415 = smul.addr %s412, 8
          %s416 = scalar_lea.hbm %s4, %s415
          %s417 = sshll.u32 %s408, 4
          %s418 = int_to_ptr.vmem [resolvable:$true] %s417
          %s419 = sshll.u32 %s416, 4
          %s420 = int_to_ptr.hbm [resolvable:$true] %s419
          %425 = dma.vmem_to_hbm [thread:$0]  %s418, 1024, %s420, %s405, 128, 128, 8
        $region40: #{sen_forward.11} parent=35 // pred_fallthru
          _
      $region36: #{sen_forward.11} parent=5 // pred_fallthru
        _
      %p426 = scmp.le.s32.totalorder 2, %s13
      // Predicated region
      $region41: #{sen_forward.11} parent=5 // pred_check
        %p427 = pneg %p426
      $region42: #{sen_forward.11} parent=5 // pred_check_branch
        %429 = sbr.rel (%p427) target = $region44
      $region43: #{sen_forward.11} parent=5 // pred_region
        %s430 = ssub.s32 %s13, 2
        // Predicated region
        $region45: #{sen_forward.11} parent=43 // pred_check
          %p431 = pneg %p131
        $region46: #{sen_forward.11} parent=43 // pred_check_branch
          %433 = sbr.rel (%p431) target = $region48
        $region47: #{sen_forward.11} parent=43 // pred_region
          %s434 = sand.u32 %s116, 1
          %s435 = scalar_lea.sflag [#allocation3], %s434
          %s436 = sand.u32 %s116, 1
          %s437 = smul.addr %s436, 64
          %s438 = scalar_lea.vmem [#allocation2], %s437
          %440 = dma.done %s435, 1024
        $region48: #{sen_forward.11} parent=43 // pred_fallthru
          _
      $region44: #{sen_forward.11} parent=5 // pred_fallthru
        _
    $region6: #{sen_forward.11} parent=1 // loop_footer
      %s17 = sadd.s32 1, %s13
    $region7: #{sen_forward.11} parent=1 // loop_footer_branch
      %12 = sbr.rel target = $region3
    $region8: #{sen_forward.11} parent=1 // loop_exit
      _
    %441 = vsyncpa [#allocation3], 1
    %s442 = scalar_lea.sflag [#allocation3], 1
    %443 = vsyncpa %s442, 1

</llo_original>
